<compile_context>
chip_gen: v7x
topology: tpu7x:2x2x1
jax: 0.10.0
libtpu: 0.0.40
codegen_flags: <defaults>
</compile_context>

<pallas_src>
import math
from functools import partial

import numpy as np
import jax
import jax.numpy as jnp
from jax import lax
from jax.experimental import pallas as pl
from jax.experimental.pallas import tpu as pltpu

# keep XLA-side matmuls in true f32 so the Pallas path and the reference agree
jax.config.update("jax_default_matmul_precision", "highest")


# ---------------------------------------------------------------------------
# elementwise helpers shared by the Pallas kernels and the pure-JAX reference
# (only ops with straightforward Mosaic lowerings)
# ---------------------------------------------------------------------------
def _softplus(x):
    return jnp.maximum(x, 0.0) + jnp.log(1.0 + jnp.exp(-jnp.abs(x)))


def _silu(x):
    return x / (1.0 + jnp.exp(-x))


# ---------------------------------------------------------------------------
# Pallas kernel 1: fused 4-direction selective scan
#   u_ref, dt_ref : (L, BK, D)    BK = batch * 4 directions, D = d_inner (lanes)
#   b_ref, c_ref  : (L, BK, N)    N  = d_state (compact, shared across D)
#   a_ref         : (N, BK, D)
#   d_ref, bias_ref : (BK, D)
#   y_ref         : (L, BK, D)
#   h_ref (scratch): (N, BK, D)   recurrent state, lives in VMEM
# ---------------------------------------------------------------------------
def _selective_scan_kernel(u_ref, dt_ref, b_ref, c_ref, a_ref, d_ref,
                           bias_ref, y_ref, h_ref):
    L = u_ref.shape[0]
    N = a_ref.shape[0]

    h_ref[...] = jnp.zeros_like(h_ref)
    dskip = d_ref[...]        # (BK, D)  hoisted out of the loop
    bias = bias_ref[...]      # (BK, D)

    def step(l, carry):
        u_l = u_ref[l]                          # (BK, D)
        delta = _softplus(dt_ref[l] + bias)     # (BK, D)
        b_l = b_ref[l]                          # (BK, N)
        c_l = c_ref[l]                          # (BK, N)
        dtu = delta * u_l                       # (BK, D)
        y_acc = dskip * u_l                     # D-skip term
        # N is a small compile-time constant -> unrolled; every op stays 2-D
        # with only native lane broadcasts (no reshapes / dynamic lane slices).
        for n in range(N):
            h_n = jnp.exp(delta * a_ref[n]) * h_ref[n] + dtu * b_l[:, n:n + 1]
            h_ref[n] = h_n
            y_acc = y_acc + c_l[:, n:n + 1] * h_n
        y_ref[l] = y_acc
        return carry

    lax.fori_loop(0, L, step, jnp.int32(0))


def _selective_scan(u_s, dt_s, b_s, c_s, a_s, d_s, bias_s):
    L, BK, D = u_s.shape
    N = a_s.shape[0]
    full = lambda shape: pl.BlockSpec(shape, lambda i: (0,) * len(shape))
    return pl.pallas_call(
        _selective_scan_kernel,
        out_shape=jax.ShapeDtypeStruct((L, BK, D), jnp.float32),
        grid_spec=pltpu.PrefetchScalarGridSpec(
            num_scalar_prefetch=0,
            grid=(1,),
            in_specs=[
                full((L, BK, D)),   # u
                full((L, BK, D)),   # dt (pre-bias, pre-softplus)
                full((L, BK, N)),   # B (compact)
                full((L, BK, N)),   # C (compact)
                full((N, BK, D)),   # A
                full((BK, D)),      # D skip
                full((BK, D)),      # dt bias
            ],
            out_specs=full((L, BK, D)),
            scratch_shapes=[pltpu.VMEM((N, BK, D), jnp.float32)],
        ),
        compiler_params=pltpu.CompilerParams(
            dimension_semantics=("arbitrary",),
            vmem_limit_bytes=32 * 1024 * 1024),
    )(u_s, dt_s, b_s, c_s, a_s, d_s, bias_s)


# ---------------------------------------------------------------------------
# Pallas kernel 2: fused LayerNorm + SiLU gate + out_proj (batch folded)
#   y_ref, z_ref : (B*L, D)    g_ref, b_ref : (1, D)    w_ref : (D, d_model)
# ---------------------------------------------------------------------------
def _out_stage_kernel(y_ref, z_ref, g_ref, b_ref, w_ref, o_ref):
    y = y_ref[...]
    mu = jnp.mean(y, axis=-1, keepdims=True)
    yc = y - mu
    var = jnp.mean(yc * yc, axis=-1, keepdims=True)
    yn = yc * lax.rsqrt(var + 1e-5)
    yn = yn * g_ref[...] + b_ref[...]
    gated = yn * _silu(z_ref[...])
    o_ref[...] = jnp.dot(gated, w_ref[...],
                         preferred_element_type=jnp.float32).astype(o_ref.dtype)


def _out_stage(y2d, z2d, gamma, beta, w_out_t):
    BL, D = y2d.shape
    M = w_out_t.shape[1]
    full = lambda shape: pl.BlockSpec(shape, lambda i: (0,) * len(shape))
    return pl.pallas_call(
        _out_stage_kernel,
        out_shape=jax.ShapeDtypeStruct((BL, M), jnp.float32),
        grid_spec=pltpu.PrefetchScalarGridSpec(
            num_scalar_prefetch=0,
            grid=(1,),
            in_specs=[full((BL, D)), full((BL, D)), full((1, D)),
                      full((1, D)), full((D, M))],
            out_specs=full((BL, M)),
        ),
        compiler_params=pltpu.CompilerParams(
            dimension_semantics=("arbitrary",)),
    )(y2d, z2d, gamma, beta, w_out_t)


# ---------------------------------------------------------------------------
# Full SS2D forward (Pallas path)
# ---------------------------------------------------------------------------
@jax.jit
def ss2d_forward(x, params):
    Bb, H, W, C = x.shape
    L = H * W
    K = 4
    w_in = params["in_proj_w"]
    Dinner = w_in.shape[0] // 2
    N = params["A_logs"].shape[-1]
    R = params["dt_proj_w"].shape[-1]

    # TODO(synk): in_proj, depthwise conv, directional packing and the small
    # per-direction projections stay as jitted XLA glue; they could be folded
    # into Pallas kernels later.
    xz = jnp.einsum("bhwc,oc->bhwo", x, w_in)
    x_in, z = jnp.split(xz, 2, axis=-1)

    xc = jnp.transpose(x_in, (0, 3, 1, 2))                     # (B, D, H, W)
    xc = lax.conv_general_dilated(
        xc, params["conv_w"], window_strides=(1, 1), padding="SAME",
        feature_group_count=Dinner,
        dimension_numbers=("NCHW", "OIHW", "NCHW"))
    xc = _silu(xc + params["conv_b"][None, :, None, None])

    # 4 directional sequences (row-major, col-major, and their reverses)
    x_flat = xc.reshape(Bb, Dinner, L)
    x_tr = jnp.transpose(xc, (0, 1, 3, 2)).reshape(Bb, Dinner, L)
    x_hwwh = jnp.stack([x_flat, x_tr], axis=1)                          # (B,2,D,L)
    xs = jnp.concatenate([x_hwwh, jnp.flip(x_hwwh, axis=-1)], axis=1)   # (B,4,D,L)

    x_dbl = jnp.einsum("bkdl,kcd->bkcl", xs, params["x_proj_w"])
    dts_r, Bs, Cs = jnp.split(x_dbl, [R, R + N], axis=2)
    dts = jnp.einsum("bkrl,kdr->bkdl", dts_r, params["dt_proj_w"])

    # pack for the scan kernel: (L, B*K, ...)
    BK = Bb * K
    u_s = jnp.transpose(xs, (3, 0, 1, 2)).reshape(L, BK, Dinner)
    dt_s = jnp.transpose(dts, (3, 0, 1, 2)).reshape(L, BK, Dinner)
    b_s = jnp.transpose(Bs, (3, 0, 1, 2)).reshape(L, BK, N)
    c_s = jnp.transpose(Cs, (3, 0, 1, 2)).reshape(L, BK, N)

    A_knd = (-jnp.exp(params["A_logs"])).reshape(K, Dinner, N)
    a_s = jnp.broadcast_to(jnp.transpose(A_knd, (2, 0, 1))[:, None],
                           (N, Bb, K, Dinner)).reshape(N, BK, Dinner)
    d_s = jnp.broadcast_to(params["Ds"].reshape(1, K, Dinner),
                           (Bb, K, Dinner)).reshape(BK, Dinner)
    bias_s = jnp.broadcast_to(params["dt_proj_b"].reshape(1, K, Dinner),
                              (Bb, K, Dinner)).reshape(BK, Dinner)

    y_s = _selective_scan(u_s.astype(jnp.float32), dt_s.astype(jnp.float32),
                          b_s.astype(jnp.float32), c_s.astype(jnp.float32),
                          a_s, d_s, bias_s)                     # (L, BK, D)

    # merge the 4 directions back to row-major spatial order
    out_y = jnp.transpose(y_s.reshape(L, Bb, K, Dinner), (1, 2, 3, 0))  # (B,K,D,L)
    inv_y = jnp.flip(out_y[:, 2:4], axis=-1)
    wh_y = jnp.transpose(out_y[:, 1].reshape(Bb, Dinner, W, H),
                         (0, 1, 3, 2)).reshape(Bb, Dinner, L)
    invwh_y = jnp.transpose(inv_y[:, 1].reshape(Bb, Dinner, W, H),
                            (0, 1, 3, 2)).reshape(Bb, Dinner, L)
    y = out_y[:, 0] + inv_y[:, 0] + wh_y + invwh_y              # (B, D, L)

    # fused LayerNorm + gate + out_proj (batch folded to B*L rows)
    y2d = jnp.transpose(y, (0, 2, 1)).reshape(Bb * L, Dinner)
    z2d = z.reshape(Bb * L, Dinner)
    out2d = _out_stage(y2d, z2d,
                       params["ln_gamma"].reshape(1, Dinner),
                       params["ln_beta"].reshape(1, Dinner),
                       jnp.transpose(params["out_proj_w"]))
    return out2d.reshape(Bb, H, W, -1)


# ---------------------------------------------------------------------------
# Pure-JAX reference (no Pallas), same math end to end
# ---------------------------------------------------------------------------
@jax.jit
def ss2d_reference(x, params):
    Bb, H, W, C = x.shape
    L = H * W
    K = 4
    w_in = params["in_proj_w"]
    Dinner = w_in.shape[0] // 2
    N = params["A_logs"].shape[-1]
    R = params["dt_proj_w"].shape[-1]

    xz = jnp.einsum("bhwc,oc->bhwo", x, w_in)
    x_in, z = jnp.split(xz, 2, axis=-1)
    xc = jnp.transpose(x_in, (0, 3, 1, 2))
    xc = lax.conv_general_dilated(
        xc, params["conv_w"], window_strides=(1, 1), padding="SAME",
        feature_group_count=Dinner,
        dimension_numbers=("NCHW", "OIHW", "NCHW"))
    xc = _silu(xc + params["conv_b"][None, :, None, None])

    x_flat = xc.reshape(Bb, Dinner, L)
    x_tr = jnp.transpose(xc, (0, 1, 3, 2)).reshape(Bb, Dinner, L)
    x_hwwh = jnp.stack([x_flat, x_tr], axis=1)
    xs = jnp.concatenate([x_hwwh, jnp.flip(x_hwwh, axis=-1)], axis=1)

    x_dbl = jnp.einsum("bkdl,kcd->bkcl", xs, params["x_proj_w"])
    dts_r, Bs, Cs = jnp.split(x_dbl, [R, R + N], axis=2)
    dts = jnp.einsum("bkrl,kdr->bkdl", dts_r, params["dt_proj_w"])

    KD = K * Dinner
    u = xs.reshape(Bb, KD, L)
    delta = _softplus(dts.reshape(Bb, KD, L)
                      + params["dt_proj_b"].reshape(1, KD, 1))
    A = -jnp.exp(params["A_logs"])                  # (KD, N)
    Dskip = params["Ds"]                            # (KD,)
    Bg = jnp.repeat(Bs, Dinner, axis=1)             # (B, KD, N, L)
    Cg = jnp.repeat(Cs, Dinner, axis=1)

    def step(h, inp):
        u_l, dt_l, B_l, C_l = inp
        dA = jnp.exp(dt_l[..., None] * A[None])
        h = dA * h + (dt_l * u_l)[..., None] * B_l
        y = jnp.sum(C_l * h, axis=-1) + Dskip[None] * u_l
        return h, y

    h0 = jnp.zeros((Bb, KD, N), jnp.float32)
    _, ys = lax.scan(step, h0,
                     (jnp.moveaxis(u, 2, 0), jnp.moveaxis(delta, 2, 0),
                      jnp.moveaxis(Bg, 3, 0), jnp.moveaxis(Cg, 3, 0)))
    out_y = jnp.moveaxis(ys, 0, -1).reshape(Bb, K, Dinner, L)

    inv_y = jnp.flip(out_y[:, 2:4], axis=-1)
    wh_y = jnp.transpose(out_y[:, 1].reshape(Bb, Dinner, W, H),
                         (0, 1, 3, 2)).reshape(Bb, Dinner, L)
    invwh_y = jnp.transpose(inv_y[:, 1].reshape(Bb, Dinner, W, H),
                            (0, 1, 3, 2)).reshape(Bb, Dinner, L)
    y = out_y[:, 0] + inv_y[:, 0] + wh_y + invwh_y

    y = jnp.transpose(y, (0, 2, 1)).reshape(Bb, H, W, Dinner)
    mu = jnp.mean(y, axis=-1, keepdims=True)
    var = jnp.mean((y - mu) ** 2, axis=-1, keepdims=True)
    y = (y - mu) * lax.rsqrt(var + 1e-5) * params["ln_gamma"] + params["ln_beta"]
    y = y * _silu(z)
    return jnp.einsum("bhwd,od->bhwo", y, params["out_proj_w"])


# ---------------------------------------------------------------------------
# deterministic parameter construction (mirrors the module's init scheme)
# ---------------------------------------------------------------------------
def _make_params(key, d_model, d_state, d_conv, expand):
    d_inner = expand * d_model
    dt_rank = max(1, math.ceil(d_model / 16))
    K = 4
    ks = jax.random.split(key, 8)

    def nrm(k, shape, scale):
        return jax.random.normal(k, shape, dtype=jnp.float32) * scale

    params = {
        "in_proj_w": nrm(ks[0], (2 * d_inner, d_model), d_model ** -0.5),
        "conv_w": nrm(ks[1], (d_inner, 1, d_conv, d_conv), 1.0 / d_conv),
        "conv_b": nrm(ks[2], (d_inner,), 0.02),
        "x_proj_w": nrm(ks[3], (K, dt_rank + 2 * d_state, d_inner),
                        d_inner ** -0.5),
        "dt_proj_w": nrm(ks[4], (K, d_inner, dt_rank), dt_rank ** -0.5),
        "out_proj_w": nrm(ks[5], (d_model, d_inner), d_inner ** -0.5),
        "ln_gamma": jnp.ones((d_inner,), jnp.float32),
        "ln_beta": jnp.zeros((d_inner,), jnp.float32),
        "Ds": jnp.ones((K * d_inner,), jnp.float32),
    }
    A = jnp.tile(jnp.arange(1, d_state + 1, dtype=jnp.float32)[None, :],
                 (K * d_inner, 1))
    params["A_logs"] = jnp.log(A)
    dt = jnp.exp(jax.random.uniform(ks[6], (K, d_inner))
                 * (math.log(0.1) - math.log(0.001)) + math.log(0.001))
    params["dt_proj_b"] = jnp.log(jnp.expm1(dt))   # softplus^-1(dt)
    return params


if __name__ == "__main__":
    key = jax.random.PRNGKey(0)
    k_x, k_p = jax.random.split(key)

    # small shapes consistent with the module: d_model=16 -> d_inner=32,
    # d_state=16, dt_rank=1, batch=2, spatial 8x8 (L=64)
    B, H, W, d_model = 2, 8, 8, 16
    d_state, d_conv, expand = 16, 3, 2

    x = jax.random.normal(k_x, (B, H, W, d_model), dtype=jnp.float32)
    params = _make_params(k_p, d_model, d_state, d_conv, expand)

    out = ss2d_forward(x, params)
    out = jax.block_until_ready(out)
    assert out.shape == (B, H, W, d_model)

    ref = jax.block_until_ready(ss2d_reference(x, params))
    np.testing.assert_allclose(np.asarray(out), np.asarray(ref),
                               atol=2e-3, rtol=2e-3)

    print("KERNEL_OK")
</pallas_src>

<mosaic_0001>
module attributes {stable_mosaic.version = 11 : i64} {
  func.func @_selective_scan_kernel(%arg0: i32, %arg1: memref<64x8x32xf32, #tpu.memory_space<vmem>>, %arg2: memref<64x8x32xf32, #tpu.memory_space<vmem>>, %arg3: memref<64x8x16xf32, #tpu.memory_space<vmem>>, %arg4: memref<64x8x16xf32, #tpu.memory_space<vmem>>, %arg5: memref<16x8x32xf32, #tpu.memory_space<vmem>>, %arg6: memref<8x32xf32, #tpu.memory_space<vmem>>, %arg7: memref<8x32xf32, #tpu.memory_space<vmem>>, %arg8: memref<64x8x32xf32, #tpu.memory_space<vmem>>, %arg9: memref<16x8x32xf32, #tpu.memory_space<vmem>>) attributes {dimension_semantics = [#tpu.dimension_semantics<arbitrary>], iteration_bounds = array<i64: 1>, scalar_prefetch = 0 : i64, scratch_operands = 1 : i64, tpu.core_type = #tpu.core_type<tc>, window_params = [{pipeline_mode = #tpu.pipeline_mode<synchronous>, transform_indices = @transform_0, window_bounds = array<i64: 64, 8, 32>}, {pipeline_mode = #tpu.pipeline_mode<synchronous>, transform_indices = @transform_1, window_bounds = array<i64: 64, 8, 32>}, {pipeline_mode = #tpu.pipeline_mode<synchronous>, transform_indices = @transform_2, window_bounds = array<i64: 64, 8, 16>}, {pipeline_mode = #tpu.pipeline_mode<synchronous>, transform_indices = @transform_3, window_bounds = array<i64: 64, 8, 16>}, {pipeline_mode = #tpu.pipeline_mode<synchronous>, transform_indices = @transform_4, window_bounds = array<i64: 16, 8, 32>}, {pipeline_mode = #tpu.pipeline_mode<synchronous>, transform_indices = @transform_5, window_bounds = array<i64: 8, 32>}, {pipeline_mode = #tpu.pipeline_mode<synchronous>, transform_indices = @transform_6, window_bounds = array<i64: 8, 32>}, {pipeline_mode = #tpu.pipeline_mode<synchronous>, transform_indices = @transform_7, window_bounds = array<i64: 64, 8, 32>}]} {
    %cst = arith.constant 0.000000e+00 : f32
    %0 = vector.broadcast %cst : f32 to vector<16x8x32xf32>
    %c0 = arith.constant 0 : index
    %c0_0 = arith.constant 0 : index
    %c0_1 = arith.constant 0 : index
    %1 = vector.load %arg9[%c0, %c0_0, %c0_1] : memref<16x8x32xf32, #tpu.memory_space<vmem>>, vector<16x8x32xf32>
    tpu.vector_store %arg9[%c0, %c0_0, %c0_1], %0 {strides = array<i32>} : memref<16x8x32xf32, #tpu.memory_space<vmem>>, vector<16x8x32xf32>,
    %c0_2 = arith.constant 0 : index
    %c0_3 = arith.constant 0 : index
    %2 = vector.load %arg6[%c0_2, %c0_3] : memref<8x32xf32, #tpu.memory_space<vmem>>, vector<8x32xf32>
    %c0_4 = arith.constant 0 : index
    %c0_5 = arith.constant 0 : index
    %3 = vector.load %arg7[%c0_4, %c0_5] : memref<8x32xf32, #tpu.memory_space<vmem>>, vector<8x32xf32>
    %c0_i32 = arith.constant 0 : i32
    %c64_i32 = arith.constant 64 : i32
    %4 = arith.addi %c0_i32, %c64_i32 : i32
    %c1_i32 = arith.constant 1 : i32
    scf.for %arg10 = %c0_i32 to %4 step %c1_i32  : i32 {
      %5 = arith.index_cast %arg10 : i32 to index
      %c0_7 = arith.constant 0 : index
      %c0_8 = arith.constant 0 : index
      %6 = vector.load %arg1[%5, %c0_7, %c0_8] : memref<64x8x32xf32, #tpu.memory_space<vmem>>, vector<1x8x32xf32>
      %7 = vector.shape_cast %6 : vector<1x8x32xf32> to vector<8x32xf32>
      %8 = arith.index_cast %arg10 : i32 to index
      %c0_9 = arith.constant 0 : index
      %c0_10 = arith.constant 0 : index
      %9 = vector.load %arg2[%8, %c0_9, %c0_10] : memref<64x8x32xf32, #tpu.memory_space<vmem>>, vector<1x8x32xf32>
      %10 = vector.shape_cast %9 : vector<1x8x32xf32> to vector<8x32xf32>
      %11 = arith.addf %10, %3 : vector<8x32xf32>
      %cst_11 = arith.constant 0.000000e+00 : f32
      %12 = vector.broadcast %cst_11 : f32 to vector<8x32xf32>
      %13 = arith.maximumf %11, %12 : vector<8x32xf32>
      %14 = math.absf %11 : vector<8x32xf32>
      %cst_12 = arith.constant 0.000000e+00 : f32
      %15 = vector.broadcast %cst_12 : f32 to vector<8x32xf32>
      %16 = arith.subf %15, %14 : vector<8x32xf32>
      %17 = math.exp %16 : vector<8x32xf32>
      %cst_13 = arith.constant 1.000000e+00 : f32
      %18 = vector.broadcast %cst_13 : f32 to vector<8x32xf32>
      %19 = arith.addf %18, %17 : vector<8x32xf32>
      %20 = math.log %19 : vector<8x32xf32>
      %21 = arith.addf %13, %20 : vector<8x32xf32>
      %22 = arith.index_cast %arg10 : i32 to index
      %c0_14 = arith.constant 0 : index
      %c0_15 = arith.constant 0 : index
      %23 = vector.load %arg3[%22, %c0_14, %c0_15] : memref<64x8x16xf32, #tpu.memory_space<vmem>>, vector<1x8x16xf32>
      %24 = vector.shape_cast %23 : vector<1x8x16xf32> to vector<8x16xf32>
      %25 = arith.index_cast %arg10 : i32 to index
      %c0_16 = arith.constant 0 : index
      %c0_17 = arith.constant 0 : index
      %26 = vector.load %arg4[%25, %c0_16, %c0_17] : memref<64x8x16xf32, #tpu.memory_space<vmem>>, vector<1x8x16xf32>
      %27 = vector.shape_cast %26 : vector<1x8x16xf32> to vector<8x16xf32>
      %28 = arith.mulf %21, %7 : vector<8x32xf32>
      %29 = arith.mulf %2, %7 : vector<8x32xf32>
      %c0_18 = arith.constant 0 : index
      %c0_19 = arith.constant 0 : index
      %c0_20 = arith.constant 0 : index
      %30 = vector.load %arg5[%c0_18, %c0_19, %c0_20] : memref<16x8x32xf32, #tpu.memory_space<vmem>>, vector<1x8x32xf32>
      %31 = vector.shape_cast %30 : vector<1x8x32xf32> to vector<8x32xf32>
      %32 = arith.mulf %21, %31 : vector<8x32xf32>
      %33 = math.exp %32 : vector<8x32xf32>
      %c0_21 = arith.constant 0 : index
      %c0_22 = arith.constant 0 : index
      %c0_23 = arith.constant 0 : index
      %34 = vector.load %arg9[%c0_21, %c0_22, %c0_23] : memref<16x8x32xf32, #tpu.memory_space<vmem>>, vector<1x8x32xf32>
      %35 = vector.shape_cast %34 : vector<1x8x32xf32> to vector<8x32xf32>
      %36 = arith.mulf %33, %35 : vector<8x32xf32>
      %37 = vector.extract_strided_slice %24 {offsets = [0, 0], sizes = [8, 1], strides = [1, 1]} : vector<8x16xf32> to vector<8x1xf32>
      %38 = vector.broadcast %37 : vector<8x1xf32> to vector<8x32xf32>
      %39 = arith.mulf %28, %38 : vector<8x32xf32>
      %40 = arith.addf %36, %39 : vector<8x32xf32>
      %c0_24 = arith.constant 0 : index
      %c0_25 = arith.constant 0 : index
      %c0_26 = arith.constant 0 : index
      %41 = vector.load %arg9[%c0_24, %c0_25, %c0_26] : memref<16x8x32xf32, #tpu.memory_space<vmem>>, vector<1x8x32xf32>
      %42 = vector.shape_cast %41 : vector<1x8x32xf32> to vector<8x32xf32>
      %43 = vector.shape_cast %40 : vector<8x32xf32> to vector<1x8x32xf32>
      tpu.vector_store %arg9[%c0_24, %c0_25, %c0_26], %43 {strides = array<i32>} : memref<16x8x32xf32, #tpu.memory_space<vmem>>, vector<1x8x32xf32>,
      %44 = vector.extract_strided_slice %27 {offsets = [0, 0], sizes = [8, 1], strides = [1, 1]} : vector<8x16xf32> to vector<8x1xf32>
      %45 = vector.broadcast %44 : vector<8x1xf32> to vector<8x32xf32>
      %46 = arith.mulf %45, %40 : vector<8x32xf32>
      %47 = arith.addf %29, %46 : vector<8x32xf32>
      %c1 = arith.constant 1 : index
      %c0_27 = arith.constant 0 : index
      %c0_28 = arith.constant 0 : index
      %48 = vector.load %arg5[%c1, %c0_27, %c0_28] : memref<16x8x32xf32, #tpu.memory_space<vmem>>, vector<1x8x32xf32>
      %49 = vector.shape_cast %48 : vector<1x8x32xf32> to vector<8x32xf32>
      %50 = arith.mulf %21, %49 : vector<8x32xf32>
      %51 = math.exp %50 : vector<8x32xf32>
      %c1_29 = arith.constant 1 : index
      %c0_30 = arith.constant 0 : index
      %c0_31 = arith.constant 0 : index
      %52 = vector.load %arg9[%c1_29, %c0_30, %c0_31] : memref<16x8x32xf32, #tpu.memory_space<vmem>>, vector<1x8x32xf32>
      %53 = vector.shape_cast %52 : vector<1x8x32xf32> to vector<8x32xf32>
      %54 = arith.mulf %51, %53 : vector<8x32xf32>
      %55 = vector.extract_strided_slice %24 {offsets = [0, 1], sizes = [8, 1], strides = [1, 1]} : vector<8x16xf32> to vector<8x1xf32>
      %56 = vector.broadcast %55 : vector<8x1xf32> to vector<8x32xf32>
      %57 = arith.mulf %28, %56 : vector<8x32xf32>
      %58 = arith.addf %54, %57 : vector<8x32xf32>
      %c1_32 = arith.constant 1 : index
      %c0_33 = arith.constant 0 : index
      %c0_34 = arith.constant 0 : index
      %59 = vector.load %arg9[%c1_32, %c0_33, %c0_34] : memref<16x8x32xf32, #tpu.memory_space<vmem>>, vector<1x8x32xf32>
      %60 = vector.shape_cast %59 : vector<1x8x32xf32> to vector<8x32xf32>
      %61 = vector.shape_cast %58 : vector<8x32xf32> to vector<1x8x32xf32>
      tpu.vector_store %arg9[%c1_32, %c0_33, %c0_34], %61 {strides = array<i32>} : memref<16x8x32xf32, #tpu.memory_space<vmem>>, vector<1x8x32xf32>,
      %62 = vector.extract_strided_slice %27 {offsets = [0, 1], sizes = [8, 1], strides = [1, 1]} : vector<8x16xf32> to vector<8x1xf32>
      %63 = vector.broadcast %62 : vector<8x1xf32> to vector<8x32xf32>
      %64 = arith.mulf %63, %58 : vector<8x32xf32>
      %65 = arith.addf %47, %64 : vector<8x32xf32>
      %c2 = arith.constant 2 : index
      %c0_35 = arith.constant 0 : index
      %c0_36 = arith.constant 0 : index
      %66 = vector.load %arg5[%c2, %c0_35, %c0_36] : memref<16x8x32xf32, #tpu.memory_space<vmem>>, vector<1x8x32xf32>
      %67 = vector.shape_cast %66 : vector<1x8x32xf32> to vector<8x32xf32>
      %68 = arith.mulf %21, %67 : vector<8x32xf32>
      %69 = math.exp %68 : vector<8x32xf32>
      %c2_37 = arith.constant 2 : index
      %c0_38 = arith.constant 0 : index
      %c0_39 = arith.constant 0 : index
      %70 = vector.load %arg9[%c2_37, %c0_38, %c0_39] : memref<16x8x32xf32, #tpu.memory_space<vmem>>, vector<1x8x32xf32>
      %71 = vector.shape_cast %70 : vector<1x8x32xf32> to vector<8x32xf32>
      %72 = arith.mulf %69, %71 : vector<8x32xf32>
      %73 = vector.extract_strided_slice %24 {offsets = [0, 2], sizes = [8, 1], strides = [1, 1]} : vector<8x16xf32> to vector<8x1xf32>
      %74 = vector.broadcast %73 : vector<8x1xf32> to vector<8x32xf32>
      %75 = arith.mulf %28, %74 : vector<8x32xf32>
      %76 = arith.addf %72, %75 : vector<8x32xf32>
      %c2_40 = arith.constant 2 : index
      %c0_41 = arith.constant 0 : index
      %c0_42 = arith.constant 0 : index
      %77 = vector.load %arg9[%c2_40, %c0_41, %c0_42] : memref<16x8x32xf32, #tpu.memory_space<vmem>>, vector<1x8x32xf32>
      %78 = vector.shape_cast %77 : vector<1x8x32xf32> to vector<8x32xf32>
      %79 = vector.shape_cast %76 : vector<8x32xf32> to vector<1x8x32xf32>
      tpu.vector_store %arg9[%c2_40, %c0_41, %c0_42], %79 {strides = array<i32>} : memref<16x8x32xf32, #tpu.memory_space<vmem>>, vector<1x8x32xf32>,
      %80 = vector.extract_strided_slice %27 {offsets = [0, 2], sizes = [8, 1], strides = [1, 1]} : vector<8x16xf32> to vector<8x1xf32>
      %81 = vector.broadcast %80 : vector<8x1xf32> to vector<8x32xf32>
      %82 = arith.mulf %81, %76 : vector<8x32xf32>
      %83 = arith.addf %65, %82 : vector<8x32xf32>
      %c3 = arith.constant 3 : index
      %c0_43 = arith.constant 0 : index
      %c0_44 = arith.constant 0 : index
      %84 = vector.load %arg5[%c3, %c0_43, %c0_44] : memref<16x8x32xf32, #tpu.memory_space<vmem>>, vector<1x8x32xf32>
      %85 = vector.shape_cast %84 : vector<1x8x32xf32> to vector<8x32xf32>
      %86 = arith.mulf %21, %85 : vector<8x32xf32>
      %87 = math.exp %86 : vector<8x32xf32>
      %c3_45 = arith.constant 3 : index
      %c0_46 = arith.constant 0 : index
      %c0_47 = arith.constant 0 : index
      %88 = vector.load %arg9[%c3_45, %c0_46, %c0_47] : memref<16x8x32xf32, #tpu.memory_space<vmem>>, vector<1x8x32xf32>
      %89 = vector.shape_cast %88 : vector<1x8x32xf32> to vector<8x32xf32>
      %90 = arith.mulf %87, %89 : vector<8x32xf32>
      %91 = vector.extract_strided_slice %24 {offsets = [0, 3], sizes = [8, 1], strides = [1, 1]} : vector<8x16xf32> to vector<8x1xf32>
      %92 = vector.broadcast %91 : vector<8x1xf32> to vector<8x32xf32>
      %93 = arith.mulf %28, %92 : vector<8x32xf32>
      %94 = arith.addf %90, %93 : vector<8x32xf32>
      %c3_48 = arith.constant 3 : index
      %c0_49 = arith.constant 0 : index
      %c0_50 = arith.constant 0 : index
      %95 = vector.load %arg9[%c3_48, %c0_49, %c0_50] : memref<16x8x32xf32, #tpu.memory_space<vmem>>, vector<1x8x32xf32>
      %96 = vector.shape_cast %95 : vector<1x8x32xf32> to vector<8x32xf32>
      %97 = vector.shape_cast %94 : vector<8x32xf32> to vector<1x8x32xf32>
      tpu.vector_store %arg9[%c3_48, %c0_49, %c0_50], %97 {strides = array<i32>} : memref<16x8x32xf32, #tpu.memory_space<vmem>>, vector<1x8x32xf32>,
      %98 = vector.extract_strided_slice %27 {offsets = [0, 3], sizes = [8, 1], strides = [1, 1]} : vector<8x16xf32> to vector<8x1xf32>
      %99 = vector.broadcast %98 : vector<8x1xf32> to vector<8x32xf32>
      %100 = arith.mulf %99, %94 : vector<8x32xf32>
      %101 = arith.addf %83, %100 : vector<8x32xf32>
      %c4 = arith.constant 4 : index
      %c0_51 = arith.constant 0 : index
      %c0_52 = arith.constant 0 : index
      %102 = vector.load %arg5[%c4, %c0_51, %c0_52] : memref<16x8x32xf32, #tpu.memory_space<vmem>>, vector<1x8x32xf32>
      %103 = vector.shape_cast %102 : vector<1x8x32xf32> to vector<8x32xf32>
      %104 = arith.mulf %21, %103 : vector<8x32xf32>
      %105 = math.exp %104 : vector<8x32xf32>
      %c4_53 = arith.constant 4 : index
      %c0_54 = arith.constant 0 : index
      %c0_55 = arith.constant 0 : index
      %106 = vector.load %arg9[%c4_53, %c0_54, %c0_55] : memref<16x8x32xf32, #tpu.memory_space<vmem>>, vector<1x8x32xf32>
      %107 = vector.shape_cast %106 : vector<1x8x32xf32> to vector<8x32xf32>
      %108 = arith.mulf %105, %107 : vector<8x32xf32>
      %109 = vector.extract_strided_slice %24 {offsets = [0, 4], sizes = [8, 1], strides = [1, 1]} : vector<8x16xf32> to vector<8x1xf32>
      %110 = vector.broadcast %109 : vector<8x1xf32> to vector<8x32xf32>
      %111 = arith.mulf %28, %110 : vector<8x32xf32>
      %112 = arith.addf %108, %111 : vector<8x32xf32>
      %c4_56 = arith.constant 4 : index
      %c0_57 = arith.constant 0 : index
      %c0_58 = arith.constant 0 : index
      %113 = vector.load %arg9[%c4_56, %c0_57, %c0_58] : memref<16x8x32xf32, #tpu.memory_space<vmem>>, vector<1x8x32xf32>
      %114 = vector.shape_cast %113 : vector<1x8x32xf32> to vector<8x32xf32>
      %115 = vector.shape_cast %112 : vector<8x32xf32> to vector<1x8x32xf32>
      tpu.vector_store %arg9[%c4_56, %c0_57, %c0_58], %115 {strides = array<i32>} : memref<16x8x32xf32, #tpu.memory_space<vmem>>, vector<1x8x32xf32>,
      %116 = vector.extract_strided_slice %27 {offsets = [0, 4], sizes = [8, 1], strides = [1, 1]} : vector<8x16xf32> to vector<8x1xf32>
      %117 = vector.broadcast %116 : vector<8x1xf32> to vector<8x32xf32>
      %118 = arith.mulf %117, %112 : vector<8x32xf32>
      %119 = arith.addf %101, %118 : vector<8x32xf32>
      %c5 = arith.constant 5 : index
      %c0_59 = arith.constant 0 : index
      %c0_60 = arith.constant 0 : index
      %120 = vector.load %arg5[%c5, %c0_59, %c0_60] : memref<16x8x32xf32, #tpu.memory_space<vmem>>, vector<1x8x32xf32>
      %121 = vector.shape_cast %120 : vector<1x8x32xf32> to vector<8x32xf32>
      %122 = arith.mulf %21, %121 : vector<8x32xf32>
      %123 = math.exp %122 : vector<8x32xf32>
      %c5_61 = arith.constant 5 : index
      %c0_62 = arith.constant 0 : index
      %c0_63 = arith.constant 0 : index
      %124 = vector.load %arg9[%c5_61, %c0_62, %c0_63] : memref<16x8x32xf32, #tpu.memory_space<vmem>>, vector<1x8x32xf32>
      %125 = vector.shape_cast %124 : vector<1x8x32xf32> to vector<8x32xf32>
      %126 = arith.mulf %123, %125 : vector<8x32xf32>
      %127 = vector.extract_strided_slice %24 {offsets = [0, 5], sizes = [8, 1], strides = [1, 1]} : vector<8x16xf32> to vector<8x1xf32>
      %128 = vector.broadcast %127 : vector<8x1xf32> to vector<8x32xf32>
      %129 = arith.mulf %28, %128 : vector<8x32xf32>
      %130 = arith.addf %126, %129 : vector<8x32xf32>
      %c5_64 = arith.constant 5 : index
      %c0_65 = arith.constant 0 : index
      %c0_66 = arith.constant 0 : index
      %131 = vector.load %arg9[%c5_64, %c0_65, %c0_66] : memref<16x8x32xf32, #tpu.memory_space<vmem>>, vector<1x8x32xf32>
      %132 = vector.shape_cast %131 : vector<1x8x32xf32> to vector<8x32xf32>
      %133 = vector.shape_cast %130 : vector<8x32xf32> to vector<1x8x32xf32>
      tpu.vector_store %arg9[%c5_64, %c0_65, %c0_66], %133 {strides = array<i32>} : memref<16x8x32xf32, #tpu.memory_space<vmem>>, vector<1x8x32xf32>,
      %134 = vector.extract_strided_slice %27 {offsets = [0, 5], sizes = [8, 1], strides = [1, 1]} : vector<8x16xf32> to vector<8x1xf32>
      %135 = vector.broadcast %134 : vector<8x1xf32> to vector<8x32xf32>
      %136 = arith.mulf %135, %130 : vector<8x32xf32>
      %137 = arith.addf %119, %136 : vector<8x32xf32>
      %c6 = arith.constant 6 : index
      %c0_67 = arith.constant 0 : index
      %c0_68 = arith.constant 0 : index
      %138 = vector.load %arg5[%c6, %c0_67, %c0_68] : memref<16x8x32xf32, #tpu.memory_space<vmem>>, vector<1x8x32xf32>
      %139 = vector.shape_cast %138 : vector<1x8x32xf32> to vector<8x32xf32>
      %140 = arith.mulf %21, %139 : vector<8x32xf32>
      %141 = math.exp %140 : vector<8x32xf32>
      %c6_69 = arith.constant 6 : index
      %c0_70 = arith.constant 0 : index
      %c0_71 = arith.constant 0 : index
      %142 = vector.load %arg9[%c6_69, %c0_70, %c0_71] : memref<16x8x32xf32, #tpu.memory_space<vmem>>, vector<1x8x32xf32>
      %143 = vector.shape_cast %142 : vector<1x8x32xf32> to vector<8x32xf32>
      %144 = arith.mulf %141, %143 : vector<8x32xf32>
      %145 = vector.extract_strided_slice %24 {offsets = [0, 6], sizes = [8, 1], strides = [1, 1]} : vector<8x16xf32> to vector<8x1xf32>
      %146 = vector.broadcast %145 : vector<8x1xf32> to vector<8x32xf32>
      %147 = arith.mulf %28, %146 : vector<8x32xf32>
      %148 = arith.addf %144, %147 : vector<8x32xf32>
      %c6_72 = arith.constant 6 : index
      %c0_73 = arith.constant 0 : index
      %c0_74 = arith.constant 0 : index
      %149 = vector.load %arg9[%c6_72, %c0_73, %c0_74] : memref<16x8x32xf32, #tpu.memory_space<vmem>>, vector<1x8x32xf32>
      %150 = vector.shape_cast %149 : vector<1x8x32xf32> to vector<8x32xf32>
      %151 = vector.shape_cast %148 : vector<8x32xf32> to vector<1x8x32xf32>
      tpu.vector_store %arg9[%c6_72, %c0_73, %c0_74], %151 {strides = array<i32>} : memref<16x8x32xf32, #tpu.memory_space<vmem>>, vector<1x8x32xf32>,
      %152 = vector.extract_strided_slice %27 {offsets = [0, 6], sizes = [8, 1], strides = [1, 1]} : vector<8x16xf32> to vector<8x1xf32>
      %153 = vector.broadcast %152 : vector<8x1xf32> to vector<8x32xf32>
      %154 = arith.mulf %153, %148 : vector<8x32xf32>
      %155 = arith.addf %137, %154 : vector<8x32xf32>
      %c7 = arith.constant 7 : index
      %c0_75 = arith.constant 0 : index
      %c0_76 = arith.constant 0 : index
      %156 = vector.load %arg5[%c7, %c0_75, %c0_76] : memref<16x8x32xf32, #tpu.memory_space<vmem>>, vector<1x8x32xf32>
      %157 = vector.shape_cast %156 : vector<1x8x32xf32> to vector<8x32xf32>
      %158 = arith.mulf %21, %157 : vector<8x32xf32>
      %159 = math.exp %158 : vector<8x32xf32>
      %c7_77 = arith.constant 7 : index
      %c0_78 = arith.constant 0 : index
      %c0_79 = arith.constant 0 : index
      %160 = vector.load %arg9[%c7_77, %c0_78, %c0_79] : memref<16x8x32xf32, #tpu.memory_space<vmem>>, vector<1x8x32xf32>
      %161 = vector.shape_cast %160 : vector<1x8x32xf32> to vector<8x32xf32>
      %162 = arith.mulf %159, %161 : vector<8x32xf32>
      %163 = vector.extract_strided_slice %24 {offsets = [0, 7], sizes = [8, 1], strides = [1, 1]} : vector<8x16xf32> to vector<8x1xf32>
      %164 = vector.broadcast %163 : vector<8x1xf32> to vector<8x32xf32>
      %165 = arith.mulf %28, %164 : vector<8x32xf32>
      %166 = arith.addf %162, %165 : vector<8x32xf32>
      %c7_80 = arith.constant 7 : index
      %c0_81 = arith.constant 0 : index
      %c0_82 = arith.constant 0 : index
      %167 = vector.load %arg9[%c7_80, %c0_81, %c0_82] : memref<16x8x32xf32, #tpu.memory_space<vmem>>, vector<1x8x32xf32>
      %168 = vector.shape_cast %167 : vector<1x8x32xf32> to vector<8x32xf32>
      %169 = vector.shape_cast %166 : vector<8x32xf32> to vector<1x8x32xf32>
      tpu.vector_store %arg9[%c7_80, %c0_81, %c0_82], %169 {strides = array<i32>} : memref<16x8x32xf32, #tpu.memory_space<vmem>>, vector<1x8x32xf32>,
      %170 = vector.extract_strided_slice %27 {offsets = [0, 7], sizes = [8, 1], strides = [1, 1]} : vector<8x16xf32> to vector<8x1xf32>
      %171 = vector.broadcast %170 : vector<8x1xf32> to vector<8x32xf32>
      %172 = arith.mulf %171, %166 : vector<8x32xf32>
      %173 = arith.addf %155, %172 : vector<8x32xf32>
      %c8 = arith.constant 8 : index
      %c0_83 = arith.constant 0 : index
      %c0_84 = arith.constant 0 : index
      %174 = vector.load %arg5[%c8, %c0_83, %c0_84] : memref<16x8x32xf32, #tpu.memory_space<vmem>>, vector<1x8x32xf32>
      %175 = vector.shape_cast %174 : vector<1x8x32xf32> to vector<8x32xf32>
      %176 = arith.mulf %21, %175 : vector<8x32xf32>
      %177 = math.exp %176 : vector<8x32xf32>
      %c8_85 = arith.constant 8 : index
      %c0_86 = arith.constant 0 : index
      %c0_87 = arith.constant 0 : index
      %178 = vector.load %arg9[%c8_85, %c0_86, %c0_87] : memref<16x8x32xf32, #tpu.memory_space<vmem>>, vector<1x8x32xf32>
      %179 = vector.shape_cast %178 : vector<1x8x32xf32> to vector<8x32xf32>
      %180 = arith.mulf %177, %179 : vector<8x32xf32>
      %181 = vector.extract_strided_slice %24 {offsets = [0, 8], sizes = [8, 1], strides = [1, 1]} : vector<8x16xf32> to vector<8x1xf32>
      %182 = vector.broadcast %181 : vector<8x1xf32> to vector<8x32xf32>
      %183 = arith.mulf %28, %182 : vector<8x32xf32>
      %184 = arith.addf %180, %183 : vector<8x32xf32>
      %c8_88 = arith.constant 8 : index
      %c0_89 = arith.constant 0 : index
      %c0_90 = arith.constant 0 : index
      %185 = vector.load %arg9[%c8_88, %c0_89, %c0_90] : memref<16x8x32xf32, #tpu.memory_space<vmem>>, vector<1x8x32xf32>
      %186 = vector.shape_cast %185 : vector<1x8x32xf32> to vector<8x32xf32>
      %187 = vector.shape_cast %184 : vector<8x32xf32> to vector<1x8x32xf32>
      tpu.vector_store %arg9[%c8_88, %c0_89, %c0_90], %187 {strides = array<i32>} : memref<16x8x32xf32, #tpu.memory_space<vmem>>, vector<1x8x32xf32>,
      %188 = vector.extract_strided_slice %27 {offsets = [0, 8], sizes = [8, 1], strides = [1, 1]} : vector<8x16xf32> to vector<8x1xf32>
      %189 = vector.broadcast %188 : vector<8x1xf32> to vector<8x32xf32>
      %190 = arith.mulf %189, %184 : vector<8x32xf32>
      %191 = arith.addf %173, %190 : vector<8x32xf32>
      %c9 = arith.constant 9 : index
      %c0_91 = arith.constant 0 : index
      %c0_92 = arith.constant 0 : index
      %192 = vector.load %arg5[%c9, %c0_91, %c0_92] : memref<16x8x32xf32, #tpu.memory_space<vmem>>, vector<1x8x32xf32>
      %193 = vector.shape_cast %192 : vector<1x8x32xf32> to vector<8x32xf32>
      %194 = arith.mulf %21, %193 : vector<8x32xf32>
      %195 = math.exp %194 : vector<8x32xf32>
      %c9_93 = arith.constant 9 : index
      %c0_94 = arith.constant 0 : index
      %c0_95 = arith.constant 0 : index
      %196 = vector.load %arg9[%c9_93, %c0_94, %c0_95] : memref<16x8x32xf32, #tpu.memory_space<vmem>>, vector<1x8x32xf32>
      %197 = vector.shape_cast %196 : vector<1x8x32xf32> to vector<8x32xf32>
      %198 = arith.mulf %195, %197 : vector<8x32xf32>
      %199 = vector.extract_strided_slice %24 {offsets = [0, 9], sizes = [8, 1], strides = [1, 1]} : vector<8x16xf32> to vector<8x1xf32>
      %200 = vector.broadcast %199 : vector<8x1xf32> to vector<8x32xf32>
      %201 = arith.mulf %28, %200 : vector<8x32xf32>
      %202 = arith.addf %198, %201 : vector<8x32xf32>
      %c9_96 = arith.constant 9 : index
      %c0_97 = arith.constant 0 : index
      %c0_98 = arith.constant 0 : index
      %203 = vector.load %arg9[%c9_96, %c0_97, %c0_98] : memref<16x8x32xf32, #tpu.memory_space<vmem>>, vector<1x8x32xf32>
      %204 = vector.shape_cast %203 : vector<1x8x32xf32> to vector<8x32xf32>
      %205 = vector.shape_cast %202 : vector<8x32xf32> to vector<1x8x32xf32>
      tpu.vector_store %arg9[%c9_96, %c0_97, %c0_98], %205 {strides = array<i32>} : memref<16x8x32xf32, #tpu.memory_space<vmem>>, vector<1x8x32xf32>,
      %206 = vector.extract_strided_slice %27 {offsets = [0, 9], sizes = [8, 1], strides = [1, 1]} : vector<8x16xf32> to vector<8x1xf32>
      %207 = vector.broadcast %206 : vector<8x1xf32> to vector<8x32xf32>
      %208 = arith.mulf %207, %202 : vector<8x32xf32>
      %209 = arith.addf %191, %208 : vector<8x32xf32>
      %c10 = arith.constant 10 : index
      %c0_99 = arith.constant 0 : index
      %c0_100 = arith.constant 0 : index
      %210 = vector.load %arg5[%c10, %c0_99, %c0_100] : memref<16x8x32xf32, #tpu.memory_space<vmem>>, vector<1x8x32xf32>
      %211 = vector.shape_cast %210 : vector<1x8x32xf32> to vector<8x32xf32>
      %212 = arith.mulf %21, %211 : vector<8x32xf32>
      %213 = math.exp %212 : vector<8x32xf32>
      %c10_101 = arith.constant 10 : index
      %c0_102 = arith.constant 0 : index
      %c0_103 = arith.constant 0 : index
      %214 = vector.load %arg9[%c10_101, %c0_102, %c0_103] : memref<16x8x32xf32, #tpu.memory_space<vmem>>, vector<1x8x32xf32>
      %215 = vector.shape_cast %214 : vector<1x8x32xf32> to vector<8x32xf32>
      %216 = arith.mulf %213, %215 : vector<8x32xf32>
      %217 = vector.extract_strided_slice %24 {offsets = [0, 10], sizes = [8, 1], strides = [1, 1]} : vector<8x16xf32> to vector<8x1xf32>
      %218 = vector.broadcast %217 : vector<8x1xf32> to vector<8x32xf32>
      %219 = arith.mulf %28, %218 : vector<8x32xf32>
      %220 = arith.addf %216, %219 : vector<8x32xf32>
      %c10_104 = arith.constant 10 : index
      %c0_105 = arith.constant 0 : index
      %c0_106 = arith.constant 0 : index
      %221 = vector.load %arg9[%c10_104, %c0_105, %c0_106] : memref<16x8x32xf32, #tpu.memory_space<vmem>>, vector<1x8x32xf32>
      %222 = vector.shape_cast %221 : vector<1x8x32xf32> to vector<8x32xf32>
      %223 = vector.shape_cast %220 : vector<8x32xf32> to vector<1x8x32xf32>
      tpu.vector_store %arg9[%c10_104, %c0_105, %c0_106], %223 {strides = array<i32>} : memref<16x8x32xf32, #tpu.memory_space<vmem>>, vector<1x8x32xf32>,
      %224 = vector.extract_strided_slice %27 {offsets = [0, 10], sizes = [8, 1], strides = [1, 1]} : vector<8x16xf32> to vector<8x1xf32>
      %225 = vector.broadcast %224 : vector<8x1xf32> to vector<8x32xf32>
      %226 = arith.mulf %225, %220 : vector<8x32xf32>
      %227 = arith.addf %209, %226 : vector<8x32xf32>
      %c11 = arith.constant 11 : index
      %c0_107 = arith.constant 0 : index
      %c0_108 = arith.constant 0 : index
      %228 = vector.load %arg5[%c11, %c0_107, %c0_108] : memref<16x8x32xf32, #tpu.memory_space<vmem>>, vector<1x8x32xf32>
      %229 = vector.shape_cast %228 : vector<1x8x32xf32> to vector<8x32xf32>
      %230 = arith.mulf %21, %229 : vector<8x32xf32>
      %231 = math.exp %230 : vector<8x32xf32>
      %c11_109 = arith.constant 11 : index
      %c0_110 = arith.constant 0 : index
      %c0_111 = arith.constant 0 : index
      %232 = vector.load %arg9[%c11_109, %c0_110, %c0_111] : memref<16x8x32xf32, #tpu.memory_space<vmem>>, vector<1x8x32xf32>
      %233 = vector.shape_cast %232 : vector<1x8x32xf32> to vector<8x32xf32>
      %234 = arith.mulf %231, %233 : vector<8x32xf32>
      %235 = vector.extract_strided_slice %24 {offsets = [0, 11], sizes = [8, 1], strides = [1, 1]} : vector<8x16xf32> to vector<8x1xf32>
      %236 = vector.broadcast %235 : vector<8x1xf32> to vector<8x32xf32>
      %237 = arith.mulf %28, %236 : vector<8x32xf32>
      %238 = arith.addf %234, %237 : vector<8x32xf32>
      %c11_112 = arith.constant 11 : index
      %c0_113 = arith.constant 0 : index
      %c0_114 = arith.constant 0 : index
      %239 = vector.load %arg9[%c11_112, %c0_113, %c0_114] : memref<16x8x32xf32, #tpu.memory_space<vmem>>, vector<1x8x32xf32>
      %240 = vector.shape_cast %239 : vector<1x8x32xf32> to vector<8x32xf32>
      %241 = vector.shape_cast %238 : vector<8x32xf32> to vector<1x8x32xf32>
      tpu.vector_store %arg9[%c11_112, %c0_113, %c0_114], %241 {strides = array<i32>} : memref<16x8x32xf32, #tpu.memory_space<vmem>>, vector<1x8x32xf32>,
      %242 = vector.extract_strided_slice %27 {offsets = [0, 11], sizes = [8, 1], strides = [1, 1]} : vector<8x16xf32> to vector<8x1xf32>
      %243 = vector.broadcast %242 : vector<8x1xf32> to vector<8x32xf32>
      %244 = arith.mulf %243, %238 : vector<8x32xf32>
      %245 = arith.addf %227, %244 : vector<8x32xf32>
      %c12 = arith.constant 12 : index
      %c0_115 = arith.constant 0 : index
      %c0_116 = arith.constant 0 : index
      %246 = vector.load %arg5[%c12, %c0_115, %c0_116] : memref<16x8x32xf32, #tpu.memory_space<vmem>>, vector<1x8x32xf32>
      %247 = vector.shape_cast %246 : vector<1x8x32xf32> to vector<8x32xf32>
      %248 = arith.mulf %21, %247 : vector<8x32xf32>
      %249 = math.exp %248 : vector<8x32xf32>
      %c12_117 = arith.constant 12 : index
      %c0_118 = arith.constant 0 : index
      %c0_119 = arith.constant 0 : index
      %250 = vector.load %arg9[%c12_117, %c0_118, %c0_119] : memref<16x8x32xf32, #tpu.memory_space<vmem>>, vector<1x8x32xf32>
      %251 = vector.shape_cast %250 : vector<1x8x32xf32> to vector<8x32xf32>
      %252 = arith.mulf %249, %251 : vector<8x32xf32>
      %253 = vector.extract_strided_slice %24 {offsets = [0, 12], sizes = [8, 1], strides = [1, 1]} : vector<8x16xf32> to vector<8x1xf32>
      %254 = vector.broadcast %253 : vector<8x1xf32> to vector<8x32xf32>
      %255 = arith.mulf %28, %254 : vector<8x32xf32>
      %256 = arith.addf %252, %255 : vector<8x32xf32>
      %c12_120 = arith.constant 12 : index
      %c0_121 = arith.constant 0 : index
      %c0_122 = arith.constant 0 : index
      %257 = vector.load %arg9[%c12_120, %c0_121, %c0_122] : memref<16x8x32xf32, #tpu.memory_space<vmem>>, vector<1x8x32xf32>
      %258 = vector.shape_cast %257 : vector<1x8x32xf32> to vector<8x32xf32>
      %259 = vector.shape_cast %256 : vector<8x32xf32> to vector<1x8x32xf32>
      tpu.vector_store %arg9[%c12_120, %c0_121, %c0_122], %259 {strides = array<i32>} : memref<16x8x32xf32, #tpu.memory_space<vmem>>, vector<1x8x32xf32>,
      %260 = vector.extract_strided_slice %27 {offsets = [0, 12], sizes = [8, 1], strides = [1, 1]} : vector<8x16xf32> to vector<8x1xf32>
      %261 = vector.broadcast %260 : vector<8x1xf32> to vector<8x32xf32>
      %262 = arith.mulf %261, %256 : vector<8x32xf32>
      %263 = arith.addf %245, %262 : vector<8x32xf32>
      %c13 = arith.constant 13 : index
      %c0_123 = arith.constant 0 : index
      %c0_124 = arith.constant 0 : index
      %264 = vector.load %arg5[%c13, %c0_123, %c0_124] : memref<16x8x32xf32, #tpu.memory_space<vmem>>, vector<1x8x32xf32>
      %265 = vector.shape_cast %264 : vector<1x8x32xf32> to vector<8x32xf32>
      %266 = arith.mulf %21, %265 : vector<8x32xf32>
      %267 = math.exp %266 : vector<8x32xf32>
      %c13_125 = arith.constant 13 : index
      %c0_126 = arith.constant 0 : index
      %c0_127 = arith.constant 0 : index
      %268 = vector.load %arg9[%c13_125, %c0_126, %c0_127] : memref<16x8x32xf32, #tpu.memory_space<vmem>>, vector<1x8x32xf32>
      %269 = vector.shape_cast %268 : vector<1x8x32xf32> to vector<8x32xf32>
      %270 = arith.mulf %267, %269 : vector<8x32xf32>
      %271 = vector.extract_strided_slice %24 {offsets = [0, 13], sizes = [8, 1], strides = [1, 1]} : vector<8x16xf32> to vector<8x1xf32>
      %272 = vector.broadcast %271 : vector<8x1xf32> to vector<8x32xf32>
      %273 = arith.mulf %28, %272 : vector<8x32xf32>
      %274 = arith.addf %270, %273 : vector<8x32xf32>
      %c13_128 = arith.constant 13 : index
      %c0_129 = arith.constant 0 : index
      %c0_130 = arith.constant 0 : index
      %275 = vector.load %arg9[%c13_128, %c0_129, %c0_130] : memref<16x8x32xf32, #tpu.memory_space<vmem>>, vector<1x8x32xf32>
      %276 = vector.shape_cast %275 : vector<1x8x32xf32> to vector<8x32xf32>
      %277 = vector.shape_cast %274 : vector<8x32xf32> to vector<1x8x32xf32>
      tpu.vector_store %arg9[%c13_128, %c0_129, %c0_130], %277 {strides = array<i32>} : memref<16x8x32xf32, #tpu.memory_space<vmem>>, vector<1x8x32xf32>,
      %278 = vector.extract_strided_slice %27 {offsets = [0, 13], sizes = [8, 1], strides = [1, 1]} : vector<8x16xf32> to vector<8x1xf32>
      %279 = vector.broadcast %278 : vector<8x1xf32> to vector<8x32xf32>
      %280 = arith.mulf %279, %274 : vector<8x32xf32>
      %281 = arith.addf %263, %280 : vector<8x32xf32>
      %c14 = arith.constant 14 : index
      %c0_131 = arith.constant 0 : index
      %c0_132 = arith.constant 0 : index
      %282 = vector.load %arg5[%c14, %c0_131, %c0_132] : memref<16x8x32xf32, #tpu.memory_space<vmem>>, vector<1x8x32xf32>
      %283 = vector.shape_cast %282 : vector<1x8x32xf32> to vector<8x32xf32>
      %284 = arith.mulf %21, %283 : vector<8x32xf32>
      %285 = math.exp %284 : vector<8x32xf32>
      %c14_133 = arith.constant 14 : index
      %c0_134 = arith.constant 0 : index
      %c0_135 = arith.constant 0 : index
      %286 = vector.load %arg9[%c14_133, %c0_134, %c0_135] : memref<16x8x32xf32, #tpu.memory_space<vmem>>, vector<1x8x32xf32>
      %287 = vector.shape_cast %286 : vector<1x8x32xf32> to vector<8x32xf32>
      %288 = arith.mulf %285, %287 : vector<8x32xf32>
      %289 = vector.extract_strided_slice %24 {offsets = [0, 14], sizes = [8, 1], strides = [1, 1]} : vector<8x16xf32> to vector<8x1xf32>
      %290 = vector.broadcast %289 : vector<8x1xf32> to vector<8x32xf32>
      %291 = arith.mulf %28, %290 : vector<8x32xf32>
      %292 = arith.addf %288, %291 : vector<8x32xf32>
      %c14_136 = arith.constant 14 : index
      %c0_137 = arith.constant 0 : index
      %c0_138 = arith.constant 0 : index
      %293 = vector.load %arg9[%c14_136, %c0_137, %c0_138] : memref<16x8x32xf32, #tpu.memory_space<vmem>>, vector<1x8x32xf32>
      %294 = vector.shape_cast %293 : vector<1x8x32xf32> to vector<8x32xf32>
      %295 = vector.shape_cast %292 : vector<8x32xf32> to vector<1x8x32xf32>
      tpu.vector_store %arg9[%c14_136, %c0_137, %c0_138], %295 {strides = array<i32>} : memref<16x8x32xf32, #tpu.memory_space<vmem>>, vector<1x8x32xf32>,
      %296 = vector.extract_strided_slice %27 {offsets = [0, 14], sizes = [8, 1], strides = [1, 1]} : vector<8x16xf32> to vector<8x1xf32>
      %297 = vector.broadcast %296 : vector<8x1xf32> to vector<8x32xf32>
      %298 = arith.mulf %297, %292 : vector<8x32xf32>
      %299 = arith.addf %281, %298 : vector<8x32xf32>
      %c15 = arith.constant 15 : index
      %c0_139 = arith.constant 0 : index
      %c0_140 = arith.constant 0 : index
      %300 = vector.load %arg5[%c15, %c0_139, %c0_140] : memref<16x8x32xf32, #tpu.memory_space<vmem>>, vector<1x8x32xf32>
      %301 = vector.shape_cast %300 : vector<1x8x32xf32> to vector<8x32xf32>
      %302 = arith.mulf %21, %301 : vector<8x32xf32>
      %303 = math.exp %302 : vector<8x32xf32>
      %c15_141 = arith.constant 15 : index
      %c0_142 = arith.constant 0 : index
      %c0_143 = arith.constant 0 : index
      %304 = vector.load %arg9[%c15_141, %c0_142, %c0_143] : memref<16x8x32xf32, #tpu.memory_space<vmem>>, vector<1x8x32xf32>
      %305 = vector.shape_cast %304 : vector<1x8x32xf32> to vector<8x32xf32>
      %306 = arith.mulf %303, %305 : vector<8x32xf32>
      %307 = vector.extract_strided_slice %24 {offsets = [0, 15], sizes = [8, 1], strides = [1, 1]} : vector<8x16xf32> to vector<8x1xf32>
      %308 = vector.broadcast %307 : vector<8x1xf32> to vector<8x32xf32>
      %309 = arith.mulf %28, %308 : vector<8x32xf32>
      %310 = arith.addf %306, %309 : vector<8x32xf32>
      %c15_144 = arith.constant 15 : index
      %c0_145 = arith.constant 0 : index
      %c0_146 = arith.constant 0 : index
      %311 = vector.load %arg9[%c15_144, %c0_145, %c0_146] : memref<16x8x32xf32, #tpu.memory_space<vmem>>, vector<1x8x32xf32>
      %312 = vector.shape_cast %311 : vector<1x8x32xf32> to vector<8x32xf32>
      %313 = vector.shape_cast %310 : vector<8x32xf32> to vector<1x8x32xf32>
      tpu.vector_store %arg9[%c15_144, %c0_145, %c0_146], %313 {strides = array<i32>} : memref<16x8x32xf32, #tpu.memory_space<vmem>>, vector<1x8x32xf32>,
      %314 = vector.extract_strided_slice %27 {offsets = [0, 15], sizes = [8, 1], strides = [1, 1]} : vector<8x16xf32> to vector<8x1xf32>
      %315 = vector.broadcast %314 : vector<8x1xf32> to vector<8x32xf32>
      %316 = arith.mulf %315, %310 : vector<8x32xf32>
      %317 = arith.addf %299, %316 : vector<8x32xf32>
      %318 = arith.index_cast %arg10 : i32 to index
      %c0_147 = arith.constant 0 : index
      %c0_148 = arith.constant 0 : index
      %319 = vector.load %arg8[%318, %c0_147, %c0_148] : memref<64x8x32xf32, #tpu.memory_space<vmem>>, vector<1x8x32xf32>
      %320 = vector.shape_cast %319 : vector<1x8x32xf32> to vector<8x32xf32>
      %321 = vector.shape_cast %317 : vector<8x32xf32> to vector<1x8x32xf32>
      tpu.vector_store %arg8[%318, %c0_147, %c0_148], %321 {strides = array<i32>} : memref<64x8x32xf32, #tpu.memory_space<vmem>>, vector<1x8x32xf32>,
    }
    %c64_i32_6 = arith.constant 64 : i32
    return
  }
  func.func @transform_0(%arg0: i32) -> (i32, i32, i32) {
    %c0_i32 = arith.constant 0 : i32
    %c0_i32_0 = arith.constant 0 : i32
    %c0_i32_1 = arith.constant 0 : i32
    %c0_i32_2 = arith.constant 0 : i32
    return %c0_i32, %c0_i32_0, %c0_i32_1 : i32, i32, i32
  }
  func.func @transform_1(%arg0: i32) -> (i32, i32, i32) {
    %c0_i32 = arith.constant 0 : i32
    %c0_i32_0 = arith.constant 0 : i32
    %c0_i32_1 = arith.constant 0 : i32
    %c0_i32_2 = arith.constant 0 : i32
    return %c0_i32, %c0_i32_0, %c0_i32_1 : i32, i32, i32
  }
  func.func @transform_2(%arg0: i32) -> (i32, i32, i32) {
    %c0_i32 = arith.constant 0 : i32
    %c0_i32_0 = arith.constant 0 : i32
    %c0_i32_1 = arith.constant 0 : i32
    %c0_i32_2 = arith.constant 0 : i32
    return %c0_i32, %c0_i32_0, %c0_i32_1 : i32, i32, i32
  }
  func.func @transform_3(%arg0: i32) -> (i32, i32, i32) {
    %c0_i32 = arith.constant 0 : i32
    %c0_i32_0 = arith.constant 0 : i32
    %c0_i32_1 = arith.constant 0 : i32
    %c0_i32_2 = arith.constant 0 : i32
    return %c0_i32, %c0_i32_0, %c0_i32_1 : i32, i32, i32
  }
  func.func @transform_4(%arg0: i32) -> (i32, i32, i32) {
    %c0_i32 = arith.constant 0 : i32
    %c0_i32_0 = arith.constant 0 : i32
    %c0_i32_1 = arith.constant 0 : i32
    %c0_i32_2 = arith.constant 0 : i32
    return %c0_i32, %c0_i32_0, %c0_i32_1 : i32, i32, i32
  }
  func.func @transform_5(%arg0: i32) -> (i32, i32) {
    %c0_i32 = arith.constant 0 : i32
    %c0_i32_0 = arith.constant 0 : i32
    %c0_i32_1 = arith.constant 0 : i32
    return %c0_i32, %c0_i32_0 : i32, i32
  }
  func.func @transform_6(%arg0: i32) -> (i32, i32) {
    %c0_i32 = arith.constant 0 : i32
    %c0_i32_0 = arith.constant 0 : i32
    %c0_i32_1 = arith.constant 0 : i32
    return %c0_i32, %c0_i32_0 : i32, i32
  }
  func.func @transform_7(%arg0: i32) -> (i32, i32, i32) {
    %c0_i32 = arith.constant 0 : i32
    %c0_i32_0 = arith.constant 0 : i32
    %c0_i32_1 = arith.constant 0 : i32
    %c0_i32_2 = arith.constant 0 : i32
    return %c0_i32, %c0_i32_0, %c0_i32_1 : i32, i32, i32
  }
}

module attributes {stable_mosaic.version = 11 : i64} {
  func.func @_out_stage_kernel(%arg0: i32, %arg1: memref<128x32xf32, #tpu.memory_space<vmem>>, %arg2: memref<128x32xf32, #tpu.memory_space<vmem>>, %arg3: memref<1x32xf32, #tpu.memory_space<vmem>>, %arg4: memref<1x32xf32, #tpu.memory_space<vmem>>, %arg5: memref<32x16xf32, #tpu.memory_space<vmem>>, %arg6: memref<128x16xf32, #tpu.memory_space<vmem>>) attributes {dimension_semantics = [#tpu.dimension_semantics<arbitrary>], iteration_bounds = array<i64: 1>, scalar_prefetch = 0 : i64, scratch_operands = 0 : i64, tpu.core_type = #tpu.core_type<tc>, window_params = [{pipeline_mode = #tpu.pipeline_mode<synchronous>, transform_indices = @transform_0, window_bounds = array<i64: 128, 32>}, {pipeline_mode = #tpu.pipeline_mode<synchronous>, transform_indices = @transform_1, window_bounds = array<i64: 128, 32>}, {pipeline_mode = #tpu.pipeline_mode<synchronous>, transform_indices = @transform_2, window_bounds = array<i64: 1, 32>}, {pipeline_mode = #tpu.pipeline_mode<synchronous>, transform_indices = @transform_3, window_bounds = array<i64: 1, 32>}, {pipeline_mode = #tpu.pipeline_mode<synchronous>, transform_indices = @transform_4, window_bounds = array<i64: 32, 16>}, {pipeline_mode = #tpu.pipeline_mode<synchronous>, transform_indices = @transform_5, window_bounds = array<i64: 128, 16>}]} {
    %c0 = arith.constant 0 : index
    %c0_0 = arith.constant 0 : index
    %0 = vector.load %arg1[%c0, %c0_0] : memref<128x32xf32, #tpu.memory_space<vmem>>, vector<128x32xf32>
    %cst = arith.constant dense<0.000000e+00> : vector<128xf32>
    %1 = vector.multi_reduction <add>, %0, %cst [1] : vector<128x32xf32> to vector<128xf32>
    %2 = vector.shape_cast %1 : vector<128xf32> to vector<128x1xf32>
    %cst_1 = arith.constant 3.200000e+01 : f32
    %3 = vector.broadcast %cst_1 : f32 to vector<128x1xf32>
    %4 = arith.divf %2, %3 : vector<128x1xf32>
    %5 = vector.broadcast %4 : vector<128x1xf32> to vector<128x32xf32>
    %6 = arith.subf %0, %5 : vector<128x32xf32>
    %7 = arith.mulf %6, %6 : vector<128x32xf32>
    %cst_2 = arith.constant dense<0.000000e+00> : vector<128xf32>
    %8 = vector.multi_reduction <add>, %7, %cst_2 [1] : vector<128x32xf32> to vector<128xf32>
    %9 = vector.shape_cast %8 : vector<128xf32> to vector<128x1xf32>
    %cst_3 = arith.constant 3.200000e+01 : f32
    %10 = vector.broadcast %cst_3 : f32 to vector<128x1xf32>
    %11 = arith.divf %9, %10 : vector<128x1xf32>
    %cst_4 = arith.constant 9.99999974E-6 : f32
    %12 = vector.broadcast %cst_4 : f32 to vector<128x1xf32>
    %13 = arith.addf %11, %12 : vector<128x1xf32>
    %14 = math.rsqrt %13 : vector<128x1xf32>
    %15 = vector.broadcast %14 : vector<128x1xf32> to vector<128x32xf32>
    %16 = arith.mulf %6, %15 : vector<128x32xf32>
    %c0_5 = arith.constant 0 : index
    %c0_6 = arith.constant 0 : index
    %17 = vector.load %arg3[%c0_5, %c0_6] : memref<1x32xf32, #tpu.memory_space<vmem>>, vector<1x32xf32>
    %18 = vector.broadcast %17 : vector<1x32xf32> to vector<128x32xf32>
    %19 = arith.mulf %16, %18 : vector<128x32xf32>
    %c0_7 = arith.constant 0 : index
    %c0_8 = arith.constant 0 : index
    %20 = vector.load %arg4[%c0_7, %c0_8] : memref<1x32xf32, #tpu.memory_space<vmem>>, vector<1x32xf32>
    %21 = vector.broadcast %20 : vector<1x32xf32> to vector<128x32xf32>
    %22 = arith.addf %19, %21 : vector<128x32xf32>
    %c0_9 = arith.constant 0 : index
    %c0_10 = arith.constant 0 : index
    %23 = vector.load %arg2[%c0_9, %c0_10] : memref<128x32xf32, #tpu.memory_space<vmem>>, vector<128x32xf32>
    %cst_11 = arith.constant 0.000000e+00 : f32
    %24 = vector.broadcast %cst_11 : f32 to vector<128x32xf32>
    %25 = arith.subf %24, %23 : vector<128x32xf32>
    %26 = math.exp %25 : vector<128x32xf32>
    %cst_12 = arith.constant 1.000000e+00 : f32
    %27 = vector.broadcast %cst_12 : f32 to vector<128x32xf32>
    %28 = arith.addf %27, %26 : vector<128x32xf32>
    %29 = arith.divf %23, %28 : vector<128x32xf32>
    %30 = arith.mulf %22, %29 : vector<128x32xf32>
    %c0_13 = arith.constant 0 : index
    %c0_14 = arith.constant 0 : index
    %31 = vector.load %arg5[%c0_13, %c0_14] : memref<32x16xf32, #tpu.memory_space<vmem>>, vector<32x16xf32>
    %cst_15 = arith.constant dense<0.000000e+00> : vector<128x16xf32>
    %32 = tpu.matmul %30, %31, %cst_15 {dimension_numbers = #tpu.dot_dimension_numbers<[1], [0], [0], [1], [0, 0, 1, 1], [], []>, precision = #tpu.contract_precision<fp32>} : vector<128x32xf32>, vector<32x16xf32>, vector<128x16xf32> -> vector<128x16xf32>
    %c0_16 = arith.constant 0 : index
    %c0_17 = arith.constant 0 : index
    %33 = vector.load %arg6[%c0_16, %c0_17] : memref<128x16xf32, #tpu.memory_space<vmem>>, vector<128x16xf32>
    tpu.vector_store %arg6[%c0_16, %c0_17], %32 {strides = array<i32>} : memref<128x16xf32, #tpu.memory_space<vmem>>, vector<128x16xf32>,
    return
  }
  func.func @transform_0(%arg0: i32) -> (i32, i32) {
    %c0_i32 = arith.constant 0 : i32
    %c0_i32_0 = arith.constant 0 : i32
    %c0_i32_1 = arith.constant 0 : i32
    return %c0_i32, %c0_i32_0 : i32, i32
  }
  func.func @transform_1(%arg0: i32) -> (i32, i32) {
    %c0_i32 = arith.constant 0 : i32
    %c0_i32_0 = arith.constant 0 : i32
    %c0_i32_1 = arith.constant 0 : i32
    return %c0_i32, %c0_i32_0 : i32, i32
  }
  func.func @transform_2(%arg0: i32) -> (i32, i32) {
    %c0_i32 = arith.constant 0 : i32
    %c0_i32_0 = arith.constant 0 : i32
    %c0_i32_1 = arith.constant 0 : i32
    return %c0_i32, %c0_i32_0 : i32, i32
  }
  func.func @transform_3(%arg0: i32) -> (i32, i32) {
    %c0_i32 = arith.constant 0 : i32
    %c0_i32_0 = arith.constant 0 : i32
    %c0_i32_1 = arith.constant 0 : i32
    return %c0_i32, %c0_i32_0 : i32, i32
  }
  func.func @transform_4(%arg0: i32) -> (i32, i32) {
    %c0_i32 = arith.constant 0 : i32
    %c0_i32_0 = arith.constant 0 : i32
    %c0_i32_1 = arith.constant 0 : i32
    return %c0_i32, %c0_i32_0 : i32, i32
  }
  func.func @transform_5(%arg0: i32) -> (i32, i32) {
    %c0_i32 = arith.constant 0 : i32
    %c0_i32_0 = arith.constant 0 : i32
    %c0_i32_1 = arith.constant 0 : i32
    return %c0_i32, %c0_i32_0 : i32, i32
  }
}

</mosaic_0001>

<llo_original>
// kernel: split.1
$region0: #{split.1}
  #allocation0 [shape = 'u32[2048]{0}', space=vmem, size = 0x2000, scoped, tag = 'scoped memory for split.1']
  #allocation1 [shape = 'u32[2048]{0}', space=vmem, size = 0x2000, scoped, tag = 'scoped memory for split.1']
  #allocation2 [shape = 'u32[2048]{0}', space=vmem, size = 0x2000, scoped, tag = 'scoped memory for split.1']
  #allocation3 [shape = 'u32[2048]{0}', space=vmem, size = 0x2000, scoped, tag = 'scoped memory for split.1']
  #allocation4 [shape = 'u32[2048]{0}', space=vmem, size = 0x2000, scoped, tag = 'scoped memory for split.1']
  #allocation5 [shape = 's32[1]{0}', space=sflag, size = 0x4, scoped, tag = 'scoped memory for split.1']
  %s0 = inlined_call_operand.vmem [shape: f32[2,4,33,64], index: 0, kind: input, shape index: {}]
  %s1 = inlined_call_operand.vmem [shape: f32[2,4,1,64], index: 1, kind: output, shape index: {}]
  %v2 = vld [vmem:[%s0] sm:$0xff]
  %3 = vst [vmem:[%s1] sm:$0x1] %v2
  %s4 = scalar_lea.vmem %s0, 80
  %v5 = vld [vmem:[%s4] sm:$0xff]
  %s6 = scalar_lea.vmem %s1, 2
  %7 = vst [vmem:[%s6] sm:$0x1] %v5
  %s8 = scalar_lea.vmem %s0, 160
  %v9 = vld [vmem:[%s8] sm:$0xff]
  %s10 = scalar_lea.vmem %s1, 4
  %11 = vst [vmem:[%s10] sm:$0x1] %v9
  %s12 = scalar_lea.vmem %s0, 240
  %v13 = vld [vmem:[%s12] sm:$0xff]
  %s14 = scalar_lea.vmem %s1, 6
  %15 = vst [vmem:[%s14] sm:$0x1] %v13
  %s16 = scalar_lea.vmem %s0, 40
  %v17 = vld [vmem:[%s16] sm:$0xff]
  %s18 = scalar_lea.vmem %s1, 1
  %19 = vst [vmem:[%s18] sm:$0x1] %v17
  %s20 = scalar_lea.vmem %s0, 120
  %v21 = vld [vmem:[%s20] sm:$0xff]
  %s22 = scalar_lea.vmem %s1, 3
  %23 = vst [vmem:[%s22] sm:$0x1] %v21
  %s24 = scalar_lea.vmem %s0, 200
  %v25 = vld [vmem:[%s24] sm:$0xff]
  %s26 = scalar_lea.vmem %s1, 5
  %27 = vst [vmem:[%s26] sm:$0x1] %v25
  %s28 = scalar_lea.vmem %s0, 280
  %v29 = vld [vmem:[%s28] sm:$0xff]
  %s30 = scalar_lea.vmem %s1, 7
  %31 = vst [vmem:[%s30] sm:$0x1] %v29

// kernel: reverse.1
$region0: #{reverse.1}
  %s0 = inlined_call_operand.vmem [shape: f32[2,1,32,64], index: 0, kind: input, shape index: {}]
  %s1 = inlined_call_operand.vmem [shape: f32[2,1,32,64], index: 1, kind: output, shape index: {}]
  $region1: #{reverse.1} parent=0
    #allocation0 [shape = 'u8[65536]{0}', space=vmem, size = 0x10000, scoped, tag = 'operand span for operand 0']
    #allocation1 [shape = 'u8[65536]{0}', space=vmem, size = 0x10000, scoped, tag = 'operand span for operand 1']
    // Predicated region
    $region2: #{reverse.1} parent=1 // pred_check
      _
    $region3: #{reverse.1} parent=1 // pred_check_branch
      %3 = sbr.rel (0) target = $region5
    $region4: #{reverse.1} parent=1 // pred_region
      // Predicated region
      $region6: #{reverse.1} parent=4 // pred_check
        _
      $region7: #{reverse.1} parent=4 // pred_check_branch
        %5 = sbr.rel (0) target = $region9
      $region8: #{reverse.1} parent=4 // pred_region
        // Predicated region
        $region21: #{reverse.1} parent=8 // pred_check
          _
        $region22: #{reverse.1} parent=8 // pred_check_branch
          %50 = sbr.rel (0) target = $region24
        $region23: #{reverse.1} parent=8 // pred_region
          loop: start=0, step=1, limit=1
          $region25: #{reverse.1} parent=23 // loop_pre_header
            _
          $region26: #{reverse.1} parent=23 // loop_header
            %s52 = sphi 0, %s56
            %p53 = scmp.ge.s32.totalorder %s52, 1
            %s57 = sphi %s0, %s0
            %s58 = sphi [#allocation0], [#allocation0]
          $region27: #{reverse.1} parent=23 // loop_header_branch
            %55 = sbr.rel (%p53) target = $region31
          $region28: #{reverse.1} parent=23 // loop_body
            %v59 = vld [vmem:[%s57] sm:$0xff]
            %60 = vst [vmem:[%s58] sm:$0xff] %v59
            %v61 = vld [vmem:[%s57 + $0x8] sm:$0xff]
            %62 = vst [vmem:[%s58 + $0x8] sm:$0xff] %v61
            %v63 = vld [vmem:[%s57 + $0x10] sm:$0xff]
            %64 = vst [vmem:[%s58 + $0x10] sm:$0xff] %v63
            %v65 = vld [vmem:[%s57 + $0x18] sm:$0xff]
            %66 = vst [vmem:[%s58 + $0x18] sm:$0xff] %v65
            %v67 = vld [vmem:[%s57 + $0x20] sm:$0xff]
            %68 = vst [vmem:[%s58 + $0x20] sm:$0xff] %v67
            %v69 = vld [vmem:[%s57 + $0x28] sm:$0xff]
            %70 = vst [vmem:[%s58 + $0x28] sm:$0xff] %v69
            %v71 = vld [vmem:[%s57 + $0x30] sm:$0xff]
            %72 = vst [vmem:[%s58 + $0x30] sm:$0xff] %v71
            %v73 = vld [vmem:[%s57 + $0x38] sm:$0xff]
            %74 = vst [vmem:[%s58 + $0x38] sm:$0xff] %v73
            %v75 = vld [vmem:[%s57 + $0x40] sm:$0xff]
            %76 = vst [vmem:[%s58 + $0x40] sm:$0xff] %v75
            %v77 = vld [vmem:[%s57 + $0x48] sm:$0xff]
            %78 = vst [vmem:[%s58 + $0x48] sm:$0xff] %v77
            %v79 = vld [vmem:[%s57 + $0x50] sm:$0xff]
            %80 = vst [vmem:[%s58 + $0x50] sm:$0xff] %v79
            %v81 = vld [vmem:[%s57 + $0x58] sm:$0xff]
            %82 = vst [vmem:[%s58 + $0x58] sm:$0xff] %v81
            %v83 = vld [vmem:[%s57 + $0x60] sm:$0xff]
            %84 = vst [vmem:[%s58 + $0x60] sm:$0xff] %v83
            %v85 = vld [vmem:[%s57 + $0x68] sm:$0xff]
            %86 = vst [vmem:[%s58 + $0x68] sm:$0xff] %v85
            %v87 = vld [vmem:[%s57 + $0x70] sm:$0xff]
            %88 = vst [vmem:[%s58 + $0x70] sm:$0xff] %v87
            %v89 = vld [vmem:[%s57 + $0x78] sm:$0xff]
            %90 = vst [vmem:[%s58 + $0x78] sm:$0xff] %v89
          $region29: #{reverse.1} parent=23 // loop_footer
            %s56 = sadd.s32 1, %s52
          $region30: #{reverse.1} parent=23 // loop_footer_branch
            %51 = sbr.rel target = $region26
          $region31: #{reverse.1} parent=23 // loop_exit
            _
        $region24: #{reverse.1} parent=8 // pred_fallthru
          _
        // Predicated region
        $region32: #{reverse.1} parent=8 // pred_check
          _
        $region33: #{reverse.1} parent=8 // pred_check_branch
          %92 = sbr.rel target = $region35
        $region34: #{reverse.1} parent=8 // pred_region
          _
        $region35: #{reverse.1} parent=8 // pred_fallthru
          _
      $region9: #{reverse.1} parent=4 // pred_fallthru
        _
      // Predicated region
      $region10: #{reverse.1} parent=4 // pred_check
        _
      $region11: #{reverse.1} parent=4 // pred_check_branch
        %7 = sbr.rel target = $region13
      $region12: #{reverse.1} parent=4 // pred_region
        loop: start=0, step=1, limit=1
        $region14: #{reverse.1} parent=12 // loop_pre_header
          _
        $region15: #{reverse.1} parent=12 // loop_header
          %s10 = sphi 0, %s14
          %p11 = scmp.ge.s32.totalorder %s10, 1
          %s15 = sphi %s0, %s0
          %s16 = sphi [#allocation0], [#allocation0]
        $region16: #{reverse.1} parent=12 // loop_header_branch
          %13 = sbr.rel (%p11) target = $region20
        $region17: #{reverse.1} parent=12 // loop_body
          %v17 = vld [vmem:[%s15] sm:$0xff]
          %18 = vst [vmem:[%s16] sm:$0xff] %v17
          %v19 = vld [vmem:[%s15 + $0x8] sm:$0xff]
          %20 = vst [vmem:[%s16 + $0x8] sm:$0xff] %v19
          %v21 = vld [vmem:[%s15 + $0x10] sm:$0xff]
          %22 = vst [vmem:[%s16 + $0x10] sm:$0xff] %v21
          %v23 = vld [vmem:[%s15 + $0x18] sm:$0xff]
          %24 = vst [vmem:[%s16 + $0x18] sm:$0xff] %v23
          %v25 = vld [vmem:[%s15 + $0x20] sm:$0xff]
          %26 = vst [vmem:[%s16 + $0x20] sm:$0xff] %v25
          %v27 = vld [vmem:[%s15 + $0x28] sm:$0xff]
          %28 = vst [vmem:[%s16 + $0x28] sm:$0xff] %v27
          %v29 = vld [vmem:[%s15 + $0x30] sm:$0xff]
          %30 = vst [vmem:[%s16 + $0x30] sm:$0xff] %v29
          %v31 = vld [vmem:[%s15 + $0x38] sm:$0xff]
          %32 = vst [vmem:[%s16 + $0x38] sm:$0xff] %v31
          %v33 = vld [vmem:[%s15 + $0x40] sm:$0xff]
          %34 = vst [vmem:[%s16 + $0x40] sm:$0xff] %v33
          %v35 = vld [vmem:[%s15 + $0x48] sm:$0xff]
          %36 = vst [vmem:[%s16 + $0x48] sm:$0xff] %v35
          %v37 = vld [vmem:[%s15 + $0x50] sm:$0xff]
          %38 = vst [vmem:[%s16 + $0x50] sm:$0xff] %v37
          %v39 = vld [vmem:[%s15 + $0x58] sm:$0xff]
          %40 = vst [vmem:[%s16 + $0x58] sm:$0xff] %v39
          %v41 = vld [vmem:[%s15 + $0x60] sm:$0xff]
          %42 = vst [vmem:[%s16 + $0x60] sm:$0xff] %v41
          %v43 = vld [vmem:[%s15 + $0x68] sm:$0xff]
          %44 = vst [vmem:[%s16 + $0x68] sm:$0xff] %v43
          %v45 = vld [vmem:[%s15 + $0x70] sm:$0xff]
          %46 = vst [vmem:[%s16 + $0x70] sm:$0xff] %v45
          %v47 = vld [vmem:[%s15 + $0x78] sm:$0xff]
          %48 = vst [vmem:[%s16 + $0x78] sm:$0xff] %v47
        $region18: #{reverse.1} parent=12 // loop_footer
          %s14 = sadd.s32 1, %s10
        $region19: #{reverse.1} parent=12 // loop_footer_branch
          %9 = sbr.rel target = $region15
        $region20: #{reverse.1} parent=12 // loop_exit
          _
      $region13: #{reverse.1} parent=4 // pred_fallthru
        _
    $region5: #{reverse.1} parent=1 // pred_fallthru
      _
    %93 = vnop
    %s94 = scalar_lea.vmem [#allocation0], 56
    %s95 = scalar_lea.vmem %s94, 7 [#allocation0]
    %v96 = vld [vmem:[%s95] ss:$-1 sm:$0xff]
    %97 = vst [vmem:[#allocation1] sm:$0xff] %v96
    %s98 = scalar_lea.vmem [#allocation1], 8
    %s99 = scalar_lea.vmem [#allocation0], 48
    %s100 = scalar_lea.vmem %s99, 7 [#allocation0]
    %v101 = vld [vmem:[%s100] ss:$-1 sm:$0xff]
    %102 = vst [vmem:[%s98] sm:$0xff] %v101
    %s103 = scalar_lea.vmem [#allocation1], 16
    %s104 = scalar_lea.vmem [#allocation0], 40
    %s105 = scalar_lea.vmem %s104, 7 [#allocation0]
    %v106 = vld [vmem:[%s105] ss:$-1 sm:$0xff]
    %107 = vst [vmem:[%s103] sm:$0xff] %v106
    %s108 = scalar_lea.vmem [#allocation1], 24
    %s109 = scalar_lea.vmem [#allocation0], 32
    %s110 = scalar_lea.vmem %s109, 7 [#allocation0]
    %v111 = vld [vmem:[%s110] ss:$-1 sm:$0xff]
    %112 = vst [vmem:[%s108] sm:$0xff] %v111
    %s113 = scalar_lea.vmem [#allocation1], 32
    %s114 = scalar_lea.vmem [#allocation0], 24
    %s115 = scalar_lea.vmem %s114, 7 [#allocation0]
    %v116 = vld [vmem:[%s115] ss:$-1 sm:$0xff]
    %117 = vst [vmem:[%s113] sm:$0xff] %v116
    %s118 = scalar_lea.vmem [#allocation1], 40
    %s119 = scalar_lea.vmem [#allocation0], 16
    %s120 = scalar_lea.vmem %s119, 7 [#allocation0]
    %v121 = vld [vmem:[%s120] ss:$-1 sm:$0xff]
    %122 = vst [vmem:[%s118] sm:$0xff] %v121
    %s123 = scalar_lea.vmem [#allocation1], 48
    %s124 = scalar_lea.vmem [#allocation0], 8
    %s125 = scalar_lea.vmem %s124, 7 [#allocation0]
    %v126 = vld [vmem:[%s125] ss:$-1 sm:$0xff]
    %127 = vst [vmem:[%s123] sm:$0xff] %v126
    %s128 = scalar_lea.vmem [#allocation1], 56
    %s129 = scalar_lea.vmem [#allocation0], 7
    %v130 = vld [vmem:[%s129] ss:$-1 sm:$0xff]
    %131 = vst [vmem:[%s128] sm:$0xff] %v130
    %s132 = scalar_lea.vmem [#allocation1], 64
    %s133 = scalar_lea.vmem [#allocation0], 64
    %s134 = scalar_lea.vmem %s133, 56 [#allocation0]
    %s135 = scalar_lea.vmem %s134, 7 [#allocation0]
    %v136 = vld [vmem:[%s135] ss:$-1 sm:$0xff]
    %137 = vst [vmem:[%s132] sm:$0xff] %v136
    %s138 = scalar_lea.vmem %s132, 8 [#allocation1]
    %s139 = scalar_lea.vmem %s133, 48 [#allocation0]
    %s140 = scalar_lea.vmem %s139, 7 [#allocation0]
    %v141 = vld [vmem:[%s140] ss:$-1 sm:$0xff]
    %142 = vst [vmem:[%s138] sm:$0xff] %v141
    %s143 = scalar_lea.vmem %s132, 16 [#allocation1]
    %s144 = scalar_lea.vmem %s133, 40 [#allocation0]
    %s145 = scalar_lea.vmem %s144, 7 [#allocation0]
    %v146 = vld [vmem:[%s145] ss:$-1 sm:$0xff]
    %147 = vst [vmem:[%s143] sm:$0xff] %v146
    %s148 = scalar_lea.vmem %s132, 24 [#allocation1]
    %s149 = scalar_lea.vmem %s133, 32 [#allocation0]
    %s150 = scalar_lea.vmem %s149, 7 [#allocation0]
    %v151 = vld [vmem:[%s150] ss:$-1 sm:$0xff]
    %152 = vst [vmem:[%s148] sm:$0xff] %v151
    %s153 = scalar_lea.vmem %s132, 32 [#allocation1]
    %s154 = scalar_lea.vmem %s133, 24 [#allocation0]
    %s155 = scalar_lea.vmem %s154, 7 [#allocation0]
    %v156 = vld [vmem:[%s155] ss:$-1 sm:$0xff]
    %157 = vst [vmem:[%s153] sm:$0xff] %v156
    %s158 = scalar_lea.vmem %s132, 40 [#allocation1]
    %s159 = scalar_lea.vmem %s133, 16 [#allocation0]
    %s160 = scalar_lea.vmem %s159, 7 [#allocation0]
    %v161 = vld [vmem:[%s160] ss:$-1 sm:$0xff]
    %162 = vst [vmem:[%s158] sm:$0xff] %v161
    %s163 = scalar_lea.vmem %s132, 48 [#allocation1]
    %s164 = scalar_lea.vmem %s133, 8 [#allocation0]
    %s165 = scalar_lea.vmem %s164, 7 [#allocation0]
    %v166 = vld [vmem:[%s165] ss:$-1 sm:$0xff]
    %167 = vst [vmem:[%s163] sm:$0xff] %v166
    %s168 = scalar_lea.vmem %s132, 56 [#allocation1]
    %s169 = scalar_lea.vmem %s133, 7 [#allocation0]
    %v170 = vld [vmem:[%s169] ss:$-1 sm:$0xff]
    %171 = vst [vmem:[%s168] sm:$0xff] %v170
    // Predicated region
    $region36: #{reverse.1} parent=1 // pred_check
      _
    $region37: #{reverse.1} parent=1 // pred_check_branch
      %173 = sbr.rel (0) target = $region39
    $region38: #{reverse.1} parent=1 // pred_region
      // Predicated region
      $region40: #{reverse.1} parent=38 // pred_check
        _
      $region41: #{reverse.1} parent=38 // pred_check_branch
        %175 = sbr.rel (0) target = $region43
      $region42: #{reverse.1} parent=38 // pred_region
        // Predicated region
        $region55: #{reverse.1} parent=42 // pred_check
          _
        $region56: #{reverse.1} parent=42 // pred_check_branch
          %220 = sbr.rel (0) target = $region58
        $region57: #{reverse.1} parent=42 // pred_region
          loop: start=0, step=1, limit=1
          $region59: #{reverse.1} parent=57 // loop_pre_header
            _
          $region60: #{reverse.1} parent=57 // loop_header
            %s222 = sphi 0, %s226
            %p223 = scmp.ge.s32.totalorder %s222, 1
            %s227 = sphi [#allocation1], [#allocation1]
            %s228 = sphi %s1, %s1
          $region61: #{reverse.1} parent=57 // loop_header_branch
            %225 = sbr.rel (%p223) target = $region65
          $region62: #{reverse.1} parent=57 // loop_body
            %v229 = vld [vmem:[%s227] sm:$0xff]
            %230 = vst [vmem:[%s228] sm:$0xff] %v229
            %v231 = vld [vmem:[%s227 + $0x8] sm:$0xff]
            %232 = vst [vmem:[%s228 + $0x8] sm:$0xff] %v231
            %v233 = vld [vmem:[%s227 + $0x10] sm:$0xff]
            %234 = vst [vmem:[%s228 + $0x10] sm:$0xff] %v233
            %v235 = vld [vmem:[%s227 + $0x18] sm:$0xff]
            %236 = vst [vmem:[%s228 + $0x18] sm:$0xff] %v235
            %v237 = vld [vmem:[%s227 + $0x20] sm:$0xff]
            %238 = vst [vmem:[%s228 + $0x20] sm:$0xff] %v237
            %v239 = vld [vmem:[%s227 + $0x28] sm:$0xff]
            %240 = vst [vmem:[%s228 + $0x28] sm:$0xff] %v239
            %v241 = vld [vmem:[%s227 + $0x30] sm:$0xff]
            %242 = vst [vmem:[%s228 + $0x30] sm:$0xff] %v241
            %v243 = vld [vmem:[%s227 + $0x38] sm:$0xff]
            %244 = vst [vmem:[%s228 + $0x38] sm:$0xff] %v243
            %v245 = vld [vmem:[%s227 + $0x40] sm:$0xff]
            %246 = vst [vmem:[%s228 + $0x40] sm:$0xff] %v245
            %v247 = vld [vmem:[%s227 + $0x48] sm:$0xff]
            %248 = vst [vmem:[%s228 + $0x48] sm:$0xff] %v247
            %v249 = vld [vmem:[%s227 + $0x50] sm:$0xff]
            %250 = vst [vmem:[%s228 + $0x50] sm:$0xff] %v249
            %v251 = vld [vmem:[%s227 + $0x58] sm:$0xff]
            %252 = vst [vmem:[%s228 + $0x58] sm:$0xff] %v251
            %v253 = vld [vmem:[%s227 + $0x60] sm:$0xff]
            %254 = vst [vmem:[%s228 + $0x60] sm:$0xff] %v253
            %v255 = vld [vmem:[%s227 + $0x68] sm:$0xff]
            %256 = vst [vmem:[%s228 + $0x68] sm:$0xff] %v255
            %v257 = vld [vmem:[%s227 + $0x70] sm:$0xff]
            %258 = vst [vmem:[%s228 + $0x70] sm:$0xff] %v257
            %v259 = vld [vmem:[%s227 + $0x78] sm:$0xff]
            %260 = vst [vmem:[%s228 + $0x78] sm:$0xff] %v259
          $region63: #{reverse.1} parent=57 // loop_footer
            %s226 = sadd.s32 1, %s222
          $region64: #{reverse.1} parent=57 // loop_footer_branch
            %221 = sbr.rel target = $region60
          $region65: #{reverse.1} parent=57 // loop_exit
            _
        $region58: #{reverse.1} parent=42 // pred_fallthru
          _
        // Predicated region
        $region66: #{reverse.1} parent=42 // pred_check
          _
        $region67: #{reverse.1} parent=42 // pred_check_branch
          %262 = sbr.rel target = $region69
        $region68: #{reverse.1} parent=42 // pred_region
          _
        $region69: #{reverse.1} parent=42 // pred_fallthru
          _
      $region43: #{reverse.1} parent=38 // pred_fallthru
        _
      // Predicated region
      $region44: #{reverse.1} parent=38 // pred_check
        _
      $region45: #{reverse.1} parent=38 // pred_check_branch
        %177 = sbr.rel target = $region47
      $region46: #{reverse.1} parent=38 // pred_region
        loop: start=0, step=1, limit=1
        $region48: #{reverse.1} parent=46 // loop_pre_header
          _
        $region49: #{reverse.1} parent=46 // loop_header
          %s180 = sphi 0, %s184
          %p181 = scmp.ge.s32.totalorder %s180, 1
          %s185 = sphi [#allocation1], [#allocation1]
          %s186 = sphi %s1, %s1
        $region50: #{reverse.1} parent=46 // loop_header_branch
          %183 = sbr.rel (%p181) target = $region54
        $region51: #{reverse.1} parent=46 // loop_body
          %v187 = vld [vmem:[%s185] sm:$0xff]
          %188 = vst [vmem:[%s186] sm:$0xff] %v187
          %v189 = vld [vmem:[%s185 + $0x8] sm:$0xff]
          %190 = vst [vmem:[%s186 + $0x8] sm:$0xff] %v189
          %v191 = vld [vmem:[%s185 + $0x10] sm:$0xff]
          %192 = vst [vmem:[%s186 + $0x10] sm:$0xff] %v191
          %v193 = vld [vmem:[%s185 + $0x18] sm:$0xff]
          %194 = vst [vmem:[%s186 + $0x18] sm:$0xff] %v193
          %v195 = vld [vmem:[%s185 + $0x20] sm:$0xff]
          %196 = vst [vmem:[%s186 + $0x20] sm:$0xff] %v195
          %v197 = vld [vmem:[%s185 + $0x28] sm:$0xff]
          %198 = vst [vmem:[%s186 + $0x28] sm:$0xff] %v197
          %v199 = vld [vmem:[%s185 + $0x30] sm:$0xff]
          %200 = vst [vmem:[%s186 + $0x30] sm:$0xff] %v199
          %v201 = vld [vmem:[%s185 + $0x38] sm:$0xff]
          %202 = vst [vmem:[%s186 + $0x38] sm:$0xff] %v201
          %v203 = vld [vmem:[%s185 + $0x40] sm:$0xff]
          %204 = vst [vmem:[%s186 + $0x40] sm:$0xff] %v203
          %v205 = vld [vmem:[%s185 + $0x48] sm:$0xff]
          %206 = vst [vmem:[%s186 + $0x48] sm:$0xff] %v205
          %v207 = vld [vmem:[%s185 + $0x50] sm:$0xff]
          %208 = vst [vmem:[%s186 + $0x50] sm:$0xff] %v207
          %v209 = vld [vmem:[%s185 + $0x58] sm:$0xff]
          %210 = vst [vmem:[%s186 + $0x58] sm:$0xff] %v209
          %v211 = vld [vmem:[%s185 + $0x60] sm:$0xff]
          %212 = vst [vmem:[%s186 + $0x60] sm:$0xff] %v211
          %v213 = vld [vmem:[%s185 + $0x68] sm:$0xff]
          %214 = vst [vmem:[%s186 + $0x68] sm:$0xff] %v213
          %v215 = vld [vmem:[%s185 + $0x70] sm:$0xff]
          %216 = vst [vmem:[%s186 + $0x70] sm:$0xff] %v215
          %v217 = vld [vmem:[%s185 + $0x78] sm:$0xff]
          %218 = vst [vmem:[%s186 + $0x78] sm:$0xff] %v217
        $region52: #{reverse.1} parent=46 // loop_footer
          %s184 = sadd.s32 1, %s180
        $region53: #{reverse.1} parent=46 // loop_footer_branch
          %179 = sbr.rel target = $region49
        $region54: #{reverse.1} parent=46 // loop_exit
          _
      $region47: #{reverse.1} parent=38 // pred_fallthru
        _
    $region39: #{reverse.1} parent=1 // pred_fallthru
      _
    %263 = vnop

// kernel: ss2d_forward.2
$region0: #{ss2d_forward.2}
  #allocation0 [shape = 'u32[]', space=smem, size = 0x4, offset = 0x4, fixed_abs, tag = 'smem constant byte address 0x4 - core index']
  #allocation1 [shape = 'u32[144,128]{1,0:T(1,128)}', space=vmem, size = 0x12000, scoped, tag = 'internal scratch']
  #allocation2 [shape = 'f32[16,8,32]{2,1,0:T(8,128)}', space=vmem, size = 0x10000, scoped, tag = 'scratch operand']
  %s0 = inlined_call_operand.vmem [shape: f32[64,8,32], index: 0, kind: input, shape index: {}]
  %s1 = inlined_call_operand.vmem [shape: f32[64,8,32], index: 1, kind: input, shape index: {}]
  %s2 = inlined_call_operand.vmem [shape: f32[64,8,16], index: 2, kind: input, shape index: {}]
  %s3 = inlined_call_operand.vmem [shape: f32[64,8,16], index: 3, kind: input, shape index: {}]
  %s4 = inlined_call_operand.vmem [shape: f32[16,8,32], index: 4, kind: input, shape index: {}]
  %s5 = inlined_call_operand.vmem [shape: f32[8,32], index: 5, kind: input, shape index: {}]
  %s6 = inlined_call_operand.vmem [shape: f32[8,32], index: 6, kind: input, shape index: {}]
  %s7 = inlined_call_operand.vmem [shape: f32[64,8,32], index: 7, kind: output, shape index: {}]
  %s8 = sld [smem:[#allocation0]]
  $region45: #{ss2d_forward.2} parent=0
    _
  %s10 = ssub.s32 1, %s8
  %s11 = scalar_select 0, %s10, %s8
  // Predicated region
  $region2: #{ss2d_forward.2} parent=0 // pred_check
    _
  $region3: #{ss2d_forward.2} parent=0 // pred_check_branch
    %13 = sbr.rel (0) target = $region5
  $region4: #{ss2d_forward.2} parent=0 // pred_region
    _
  $region5: #{ss2d_forward.2} parent=0 // pred_fallthru
    _
  // Predicated region
  $region6: #{ss2d_forward.2} parent=0 // pred_check
    _
  $region7: #{ss2d_forward.2} parent=0 // pred_check_branch
    %15 = sbr.rel (0) target = $region9
  $region8: #{ss2d_forward.2} parent=0 // pred_region
    _
  $region9: #{ss2d_forward.2} parent=0 // pred_fallthru
    _
  // Predicated region
  $region10: #{ss2d_forward.2} parent=0 // pred_check
    _
  $region11: #{ss2d_forward.2} parent=0 // pred_check_branch
    %17 = sbr.rel (0) target = $region13
  $region12: #{ss2d_forward.2} parent=0 // pred_region
    _
  $region13: #{ss2d_forward.2} parent=0 // pred_fallthru
    _
  // Predicated region
  $region14: #{ss2d_forward.2} parent=0 // pred_check
    _
  $region15: #{ss2d_forward.2} parent=0 // pred_check_branch
    %19 = sbr.rel (0) target = $region17
  $region16: #{ss2d_forward.2} parent=0 // pred_region
    _
  $region17: #{ss2d_forward.2} parent=0 // pred_fallthru
    _
  // Predicated region
  $region18: #{ss2d_forward.2} parent=0 // pred_check
    _
  $region19: #{ss2d_forward.2} parent=0 // pred_check_branch
    %21 = sbr.rel (0) target = $region21
  $region20: #{ss2d_forward.2} parent=0 // pred_region
    _
  $region21: #{ss2d_forward.2} parent=0 // pred_fallthru
    _
  // Predicated region
  $region22: #{ss2d_forward.2} parent=0 // pred_check
    _
  $region23: #{ss2d_forward.2} parent=0 // pred_check_branch
    %23 = sbr.rel (0) target = $region25
  $region24: #{ss2d_forward.2} parent=0 // pred_region
    _
  $region25: #{ss2d_forward.2} parent=0 // pred_fallthru
    _
  // Predicated region
  $region26: #{ss2d_forward.2} parent=0 // pred_check
    _
  $region27: #{ss2d_forward.2} parent=0 // pred_check_branch
    %25 = sbr.rel (0) target = $region29
  $region28: #{ss2d_forward.2} parent=0 // pred_region
    _
  $region29: #{ss2d_forward.2} parent=0 // pred_fallthru
    _
  %vm26 = vcmask 261120
  %27 = vst.msk [vmem:[#allocation2] sm:$0xff] %vm26, 0.0
  %28 = vst.msk [vmem:[#allocation2 + $0x8] sm:$0xff] %vm26, 0.0
  %29 = vst.msk [vmem:[#allocation2 + $0x10] sm:$0xff] %vm26, 0.0
  %30 = vst.msk [vmem:[#allocation2 + $0x18] sm:$0xff] %vm26, 0.0
  %31 = vst.msk [vmem:[#allocation2 + $0x20] sm:$0xff] %vm26, 0.0
  %32 = vst.msk [vmem:[#allocation2 + $0x28] sm:$0xff] %vm26, 0.0
  %33 = vst.msk [vmem:[#allocation2 + $0x30] sm:$0xff] %vm26, 0.0
  %34 = vst.msk [vmem:[#allocation2 + $0x38] sm:$0xff] %vm26, 0.0
  %35 = vst.msk [vmem:[#allocation2 + $0x40] sm:$0xff] %vm26, 0.0
  %36 = vst.msk [vmem:[#allocation2 + $0x48] sm:$0xff] %vm26, 0.0
  %37 = vst.msk [vmem:[#allocation2 + $0x50] sm:$0xff] %vm26, 0.0
  %38 = vst.msk [vmem:[#allocation2 + $0x58] sm:$0xff] %vm26, 0.0
  %39 = vst.msk [vmem:[#allocation2 + $0x60] sm:$0xff] %vm26, 0.0
  %40 = vst.msk [vmem:[#allocation2 + $0x68] sm:$0xff] %vm26, 0.0
  %41 = vst.msk [vmem:[#allocation2 + $0x70] sm:$0xff] %vm26, 0.0
  %42 = vst.msk [vmem:[#allocation2 + $0x78] sm:$0xff] %vm26, 0.0
  %v43 = vld [vmem:[%s5] sm:$0xff]
  %v44 = vld [vmem:[%s6] sm:$0xff]
  loop: start=0, step=1, limit=64
  $region30: #{ss2d_forward.2} parent=0 // loop_pre_header
    _
  $region31: #{ss2d_forward.2} parent=0 // loop_header
    %s46 = sphi 0, %s50
    %p47 = scmp.ge.s32.totalorder %s46, 64
  $region32: #{ss2d_forward.2} parent=0 // loop_header_branch
    %49 = sbr.rel (%p47) target = $region36
  $region33: #{ss2d_forward.2} parent=0 // loop_body
    %s51 = smul.u32 %s46, 8
    %s52 = scalar_lea.vmem %s0, %s51
    %v53 = vld [vmem:[%s52] sm:$0xff]
    %s54 = scalar_lea.vmem %s1, %s51
    %v55 = vld [vmem:[%s54] sm:$0xff]
    %v56 = vadd.f32 %v55, %v44
    %v57 = vmax.f32 %v56, 0.0
    %v58 = vand.u32 2147483647, %v56
    %v59 = vsub.f32 0.0, %v58
    %v60 = vmul.f32 %v59, 1.442695
    %v61 = vpow.pop %v60
    %v62 = vadd.f32 %v61, 1.0
    %v63 = vlog2.pop %v62
    %v64 = vmul.f32 %v63, 0.6931472
    %v65 = vadd.f32 %v57, %v64
    %s66 = scalar_lea.vmem %s2, %s51
    %v67 = vld [vmem:[%s66] sm:$0xff]
    %s68 = scalar_lea.vmem %s3, %s51
    %v69 = vld [vmem:[%s68] sm:$0xff]
    %v70 = vmul.f32 %v65, %v53
    %v71 = vmul.f32 %v43, %v53
    %v72 = vld [vmem:[%s4] sm:$0xff]
    %v73 = vmul.f32 %v65, %v72
    %v74 = vmul.f32 %v73, 1.442695
    %v75 = vpow.pop %v74
    %v76 = vld [vmem:[#allocation2] sm:$0xff]
    %v77 = vmul.f32 %v75, %v76
    %79 = vset.pattern.permute.xlu0 0
    %80 = vperm.xlu0 %79, %v67
    %v81 = vpop.permute.xlu0 %80
    %v83 = vmul.f32 %v70, %v81
    %v84 = vadd.f32 %v77, %v83
    %85 = vst.msk [vmem:[#allocation2] sm:$0xff] %vm26, %v84
    %87 = vset.pattern.permute.xlu0 0
    %88 = vperm.xlu0 %87, %v69
    %v89 = vpop.permute.xlu0 %88
    %v91 = vmul.f32 %v89, %v84
    %v92 = vadd.f32 %v71, %v91
    %s93 = scalar_lea.vmem %s4, 8
    %v94 = vld [vmem:[%s93] sm:$0xff]
    %v95 = vmul.f32 %v65, %v94
    %v96 = vmul.f32 %v95, 1.442695
    %v97 = vpow.pop %v96
    %s98 = scalar_lea.vmem [#allocation2], 8
    %v99 = vld [vmem:[%s98] sm:$0xff]
    %v100 = vmul.f32 %v97, %v99
    %101 = vset.pattern.permute.xlu0 1
    %102 = vperm.xlu0 %101, %v67
    %v103 = vpop.permute.xlu0 %102
    %v105 = vmul.f32 %v70, %v103
    %v106 = vadd.f32 %v100, %v105
    %107 = vst.msk [vmem:[%s98] sm:$0xff] %vm26, %v106
    %108 = vset.pattern.permute.xlu0 1
    %109 = vperm.xlu0 %108, %v69
    %v110 = vpop.permute.xlu0 %109
    %v112 = vmul.f32 %v110, %v106
    %v113 = vadd.f32 %v92, %v112
    %s114 = scalar_lea.vmem %s4, 16
    %v115 = vld [vmem:[%s114] sm:$0xff]
    %v116 = vmul.f32 %v65, %v115
    %v117 = vmul.f32 %v116, 1.442695
    %v118 = vpow.pop %v117
    %s119 = scalar_lea.vmem [#allocation2], 16
    %v120 = vld [vmem:[%s119] sm:$0xff]
    %v121 = vmul.f32 %v118, %v120
    %122 = vset.pattern.permute.xlu0 2
    %123 = vperm.xlu0 %122, %v67
    %v124 = vpop.permute.xlu0 %123
    %v126 = vmul.f32 %v70, %v124
    %v127 = vadd.f32 %v121, %v126
    %128 = vst.msk [vmem:[%s119] sm:$0xff] %vm26, %v127
    %129 = vset.pattern.permute.xlu0 2
    %130 = vperm.xlu0 %129, %v69
    %v131 = vpop.permute.xlu0 %130
    %v133 = vmul.f32 %v131, %v127
    %v134 = vadd.f32 %v113, %v133
    %s135 = scalar_lea.vmem %s4, 24
    %v136 = vld [vmem:[%s135] sm:$0xff]
    %v137 = vmul.f32 %v65, %v136
    %v138 = vmul.f32 %v137, 1.442695
    %v139 = vpow.pop %v138
    %s140 = scalar_lea.vmem [#allocation2], 24
    %v141 = vld [vmem:[%s140] sm:$0xff]
    %v142 = vmul.f32 %v139, %v141
    %143 = vset.pattern.permute.xlu0 3
    %144 = vperm.xlu0 %143, %v67
    %v145 = vpop.permute.xlu0 %144
    %v147 = vmul.f32 %v70, %v145
    %v148 = vadd.f32 %v142, %v147
    %149 = vst.msk [vmem:[%s140] sm:$0xff] %vm26, %v148
    %150 = vset.pattern.permute.xlu0 3
    %151 = vperm.xlu0 %150, %v69
    %v152 = vpop.permute.xlu0 %151
    %v154 = vmul.f32 %v152, %v148
    %v155 = vadd.f32 %v134, %v154
    %s156 = scalar_lea.vmem %s4, 32
    %v157 = vld [vmem:[%s156] sm:$0xff]
    %v158 = vmul.f32 %v65, %v157
    %v159 = vmul.f32 %v158, 1.442695
    %v160 = vpow.pop %v159
    %s161 = scalar_lea.vmem [#allocation2], 32
    %v162 = vld [vmem:[%s161] sm:$0xff]
    %v163 = vmul.f32 %v160, %v162
    %164 = vset.pattern.permute.xlu0 4
    %165 = vperm.xlu0 %164, %v67
    %v166 = vpop.permute.xlu0 %165
    %v168 = vmul.f32 %v70, %v166
    %v169 = vadd.f32 %v163, %v168
    %170 = vst.msk [vmem:[%s161] sm:$0xff] %vm26, %v169
    %171 = vset.pattern.permute.xlu0 4
    %172 = vperm.xlu0 %171, %v69
    %v173 = vpop.permute.xlu0 %172
    %v175 = vmul.f32 %v173, %v169
    %v176 = vadd.f32 %v155, %v175
    %s177 = scalar_lea.vmem %s4, 40
    %v178 = vld [vmem:[%s177] sm:$0xff]
    %v179 = vmul.f32 %v65, %v178
    %v180 = vmul.f32 %v179, 1.442695
    %v181 = vpow.pop %v180
    %s182 = scalar_lea.vmem [#allocation2], 40
    %v183 = vld [vmem:[%s182] sm:$0xff]
    %v184 = vmul.f32 %v181, %v183
    %185 = vset.pattern.permute.xlu0 5
    %186 = vperm.xlu0 %185, %v67
    %v187 = vpop.permute.xlu0 %186
    %v189 = vmul.f32 %v70, %v187
    %v190 = vadd.f32 %v184, %v189
    %191 = vst.msk [vmem:[%s182] sm:$0xff] %vm26, %v190
    %192 = vset.pattern.permute.xlu0 5
    %193 = vperm.xlu0 %192, %v69
    %v194 = vpop.permute.xlu0 %193
    %v196 = vmul.f32 %v194, %v190
    %v197 = vadd.f32 %v176, %v196
    %s198 = scalar_lea.vmem %s4, 48
    %v199 = vld [vmem:[%s198] sm:$0xff]
    %v200 = vmul.f32 %v65, %v199
    %v201 = vmul.f32 %v200, 1.442695
    %v202 = vpow.pop %v201
    %s203 = scalar_lea.vmem [#allocation2], 48
    %v204 = vld [vmem:[%s203] sm:$0xff]
    %v205 = vmul.f32 %v202, %v204
    %206 = vset.pattern.permute.xlu0 6
    %207 = vperm.xlu0 %206, %v67
    %v208 = vpop.permute.xlu0 %207
    %v210 = vmul.f32 %v70, %v208
    %v211 = vadd.f32 %v205, %v210
    %212 = vst.msk [vmem:[%s203] sm:$0xff] %vm26, %v211
    %213 = vset.pattern.permute.xlu0 6
    %214 = vperm.xlu0 %213, %v69
    %v215 = vpop.permute.xlu0 %214
    %v217 = vmul.f32 %v215, %v211
    %v218 = vadd.f32 %v197, %v217
    %s219 = scalar_lea.vmem %s4, 56
    %v220 = vld [vmem:[%s219] sm:$0xff]
    %v221 = vmul.f32 %v65, %v220
    %v222 = vmul.f32 %v221, 1.442695
    %v223 = vpow.pop %v222
    %s224 = scalar_lea.vmem [#allocation2], 56
    %v225 = vld [vmem:[%s224] sm:$0xff]
    %v226 = vmul.f32 %v223, %v225
    %227 = vset.pattern.permute.xlu0 7
    %228 = vperm.xlu0 %227, %v67
    %v229 = vpop.permute.xlu0 %228
    %v231 = vmul.f32 %v70, %v229
    %v232 = vadd.f32 %v226, %v231
    %233 = vst.msk [vmem:[%s224] sm:$0xff] %vm26, %v232
    %234 = vset.pattern.permute.xlu0 7
    %235 = vperm.xlu0 %234, %v69
    %v236 = vpop.permute.xlu0 %235
    %v238 = vmul.f32 %v236, %v232
    %v239 = vadd.f32 %v218, %v238
    %s240 = scalar_lea.vmem %s4, 64
    %v241 = vld [vmem:[%s240] sm:$0xff]
    %v242 = vmul.f32 %v65, %v241
    %v243 = vmul.f32 %v242, 1.442695
    %v244 = vpow.pop %v243
    %s245 = scalar_lea.vmem [#allocation2], 64
    %v246 = vld [vmem:[%s245] sm:$0xff]
    %v247 = vmul.f32 %v244, %v246
    %248 = vset.pattern.permute.xlu0 8
    %249 = vperm.xlu0 %248, %v67
    %v250 = vpop.permute.xlu0 %249
    %v252 = vmul.f32 %v70, %v250
    %v253 = vadd.f32 %v247, %v252
    %254 = vst.msk [vmem:[%s245] sm:$0xff] %vm26, %v253
    %255 = vset.pattern.permute.xlu0 8
    %256 = vperm.xlu0 %255, %v69
    %v257 = vpop.permute.xlu0 %256
    %v259 = vmul.f32 %v257, %v253
    %v260 = vadd.f32 %v239, %v259
    %s261 = scalar_lea.vmem %s4, 72
    %v262 = vld [vmem:[%s261] sm:$0xff]
    %v263 = vmul.f32 %v65, %v262
    %v264 = vmul.f32 %v263, 1.442695
    %v265 = vpow.pop %v264
    %s266 = scalar_lea.vmem [#allocation2], 72
    %v267 = vld [vmem:[%s266] sm:$0xff]
    %v268 = vmul.f32 %v265, %v267
    %269 = vset.pattern.permute.xlu0 9
    %270 = vperm.xlu0 %269, %v67
    %v271 = vpop.permute.xlu0 %270
    %v273 = vmul.f32 %v70, %v271
    %v274 = vadd.f32 %v268, %v273
    %275 = vst.msk [vmem:[%s266] sm:$0xff] %vm26, %v274
    %276 = vset.pattern.permute.xlu0 9
    %277 = vperm.xlu0 %276, %v69
    %v278 = vpop.permute.xlu0 %277
    %v280 = vmul.f32 %v278, %v274
    %v281 = vadd.f32 %v260, %v280
    %s282 = scalar_lea.vmem %s4, 80
    %v283 = vld [vmem:[%s282] sm:$0xff]
    %v284 = vmul.f32 %v65, %v283
    %v285 = vmul.f32 %v284, 1.442695
    %v286 = vpow.pop %v285
    %s287 = scalar_lea.vmem [#allocation2], 80
    %v288 = vld [vmem:[%s287] sm:$0xff]
    %v289 = vmul.f32 %v286, %v288
    %290 = vset.pattern.permute.xlu0 10
    %291 = vperm.xlu0 %290, %v67
    %v292 = vpop.permute.xlu0 %291
    %v294 = vmul.f32 %v70, %v292
    %v295 = vadd.f32 %v289, %v294
    %296 = vst.msk [vmem:[%s287] sm:$0xff] %vm26, %v295
    %297 = vset.pattern.permute.xlu0 10
    %298 = vperm.xlu0 %297, %v69
    %v299 = vpop.permute.xlu0 %298
    %v301 = vmul.f32 %v299, %v295
    %v302 = vadd.f32 %v281, %v301
    %s303 = scalar_lea.vmem %s4, 88
    %v304 = vld [vmem:[%s303] sm:$0xff]
    %v305 = vmul.f32 %v65, %v304
    %v306 = vmul.f32 %v305, 1.442695
    %v307 = vpow.pop %v306
    %s308 = scalar_lea.vmem [#allocation2], 88
    %v309 = vld [vmem:[%s308] sm:$0xff]
    %v310 = vmul.f32 %v307, %v309
    %311 = vset.pattern.permute.xlu0 11
    %312 = vperm.xlu0 %311, %v67
    %v313 = vpop.permute.xlu0 %312
    %v315 = vmul.f32 %v70, %v313
    %v316 = vadd.f32 %v310, %v315
    %317 = vst.msk [vmem:[%s308] sm:$0xff] %vm26, %v316
    %318 = vset.pattern.permute.xlu0 11
    %319 = vperm.xlu0 %318, %v69
    %v320 = vpop.permute.xlu0 %319
    %v322 = vmul.f32 %v320, %v316
    %v323 = vadd.f32 %v302, %v322
    %s324 = scalar_lea.vmem %s4, 96
    %v325 = vld [vmem:[%s324] sm:$0xff]
    %v326 = vmul.f32 %v65, %v325
    %v327 = vmul.f32 %v326, 1.442695
    %v328 = vpow.pop %v327
    %s329 = scalar_lea.vmem [#allocation2], 96
    %v330 = vld [vmem:[%s329] sm:$0xff]
    %v331 = vmul.f32 %v328, %v330
    %332 = vset.pattern.permute.xlu0 12
    %333 = vperm.xlu0 %332, %v67
    %v334 = vpop.permute.xlu0 %333
    %v336 = vmul.f32 %v70, %v334
    %v337 = vadd.f32 %v331, %v336
    %338 = vst.msk [vmem:[%s329] sm:$0xff] %vm26, %v337
    %339 = vset.pattern.permute.xlu0 12
    %340 = vperm.xlu0 %339, %v69
    %v341 = vpop.permute.xlu0 %340
    %v343 = vmul.f32 %v341, %v337
    %v344 = vadd.f32 %v323, %v343
    %s345 = scalar_lea.vmem %s4, 104
    %v346 = vld [vmem:[%s345] sm:$0xff]
    %v347 = vmul.f32 %v65, %v346
    %v348 = vmul.f32 %v347, 1.442695
    %v349 = vpow.pop %v348
    %s350 = scalar_lea.vmem [#allocation2], 104
    %v351 = vld [vmem:[%s350] sm:$0xff]
    %v352 = vmul.f32 %v349, %v351
    %353 = vset.pattern.permute.xlu0 13
    %354 = vperm.xlu0 %353, %v67
    %v355 = vpop.permute.xlu0 %354
    %v357 = vmul.f32 %v70, %v355
    %v358 = vadd.f32 %v352, %v357
    %359 = vst.msk [vmem:[%s350] sm:$0xff] %vm26, %v358
    %360 = vset.pattern.permute.xlu0 13
    %361 = vperm.xlu0 %360, %v69
    %v362 = vpop.permute.xlu0 %361
    %v364 = vmul.f32 %v362, %v358
    %v365 = vadd.f32 %v344, %v364
    %s366 = scalar_lea.vmem %s4, 112
    %v367 = vld [vmem:[%s366] sm:$0xff]
    %v368 = vmul.f32 %v65, %v367
    %v369 = vmul.f32 %v368, 1.442695
    %v370 = vpow.pop %v369
    %s371 = scalar_lea.vmem [#allocation2], 112
    %v372 = vld [vmem:[%s371] sm:$0xff]
    %v373 = vmul.f32 %v370, %v372
    %374 = vset.pattern.permute.xlu0 14
    %375 = vperm.xlu0 %374, %v67
    %v376 = vpop.permute.xlu0 %375
    %v378 = vmul.f32 %v70, %v376
    %v379 = vadd.f32 %v373, %v378
    %380 = vst.msk [vmem:[%s371] sm:$0xff] %vm26, %v379
    %381 = vset.pattern.permute.xlu0 14
    %382 = vperm.xlu0 %381, %v69
    %v383 = vpop.permute.xlu0 %382
    %v385 = vmul.f32 %v383, %v379
    %v386 = vadd.f32 %v365, %v385
    %s387 = scalar_lea.vmem %s4, 120
    %v388 = vld [vmem:[%s387] sm:$0xff]
    %v389 = vmul.f32 %v65, %v388
    %v390 = vmul.f32 %v389, 1.442695
    %v391 = vpow.pop %v390
    %s392 = scalar_lea.vmem [#allocation2], 120
    %v393 = vld [vmem:[%s392] sm:$0xff]
    %v394 = vmul.f32 %v391, %v393
    %395 = vset.pattern.permute.xlu0 15
    %396 = vperm.xlu0 %395, %v67
    %v397 = vpop.permute.xlu0 %396
    %v399 = vmul.f32 %v70, %v397
    %v400 = vadd.f32 %v394, %v399
    %401 = vst.msk [vmem:[%s392] sm:$0xff] %vm26, %v400
    %402 = vset.pattern.permute.xlu0 15
    %403 = vperm.xlu0 %402, %v69
    %v404 = vpop.permute.xlu0 %403
    %v406 = vmul.f32 %v404, %v400
    %v407 = vadd.f32 %v386, %v406
    %s408 = scalar_lea.vmem %s7, %s51
    %409 = vst.msk [vmem:[%s408] sm:$0xff] %vm26, %v407
  $region34: #{ss2d_forward.2} parent=0 // loop_footer
    %s50 = sadd.s32 1, %s46
  $region35: #{ss2d_forward.2} parent=0 // loop_footer_branch
    %45 = sbr.rel target = $region31
  $region36: #{ss2d_forward.2} parent=0 // loop_exit
    _
  // Predicated region
  $region37: #{ss2d_forward.2} parent=0 // pred_check
    _
  $region38: #{ss2d_forward.2} parent=0 // pred_check_branch
    %411 = sbr.rel (0) target = $region40
  $region39: #{ss2d_forward.2} parent=0 // pred_region
    _
  $region40: #{ss2d_forward.2} parent=0 // pred_fallthru
    _
  // Predicated region
  $region41: #{ss2d_forward.2} parent=0 // pred_check
    _
  $region42: #{ss2d_forward.2} parent=0 // pred_check_branch
    %413 = sbr.rel (0) target = $region44
  $region43: #{ss2d_forward.2} parent=0 // pred_region
    _
  $region44: #{ss2d_forward.2} parent=0 // pred_fallthru
    _

// kernel: ss2d_forward.3
$region0: #{ss2d_forward.3}
  #allocation0 [shape = 'u32[]', space=smem, size = 0x4, offset = 0x4, fixed_abs, tag = 'smem constant byte address 0x4 - core index']
  #allocation1 [shape = 'u32[144,128]{1,0:T(1,128)}', space=vmem, size = 0x12000, scoped, tag = 'internal scratch']
  %s0 = inlined_call_operand.vmem [shape: f32[128,32], index: 0, kind: input, shape index: {}]
  %s1 = inlined_call_operand.vmem [shape: f32[128,32], index: 1, kind: input, shape index: {}]
  %s2 = inlined_call_operand.vmem [shape: f32[1,32], index: 2, kind: input, shape index: {}]
  %s3 = inlined_call_operand.vmem [shape: f32[1,32], index: 3, kind: input, shape index: {}]
  %s4 = inlined_call_operand.vmem [shape: f32[32,16], index: 4, kind: input, shape index: {}]
  %s5 = inlined_call_operand.hbm [shape: f32[128,16], index: 5, kind: output, shape index: {}]
  %s6 = sld [smem:[#allocation0]]
  $region30: #{ss2d_forward.3} parent=0
    _
  %s8 = ssub.s32 1, %s6
  %s9 = scalar_select 0, %s8, %s6
  $region1: #{ss2d_forward.3} parent=0
    #allocation2 [shape = 'u8[65536]{0}', space=vmem, size = 0x10000, scoped, tag = 'output window, operand 0, single buffered']
    #allocation3 [shape = 's32[1]{0}', space=sflag, size = 0x4, scoped, tag = 'scoped memory for ss2d_forward.3']
    %10 = vsyncpa [#allocation3], 0
    // Predicated region
    $region2: #{ss2d_forward.3} parent=1 // pred_check
      _
    $region3: #{ss2d_forward.3} parent=1 // pred_check_branch
      %12 = sbr.rel (0) target = $region5
    $region4: #{ss2d_forward.3} parent=1 // pred_region
      _
    $region5: #{ss2d_forward.3} parent=1 // pred_fallthru
      _
    // Predicated region
    $region6: #{ss2d_forward.3} parent=1 // pred_check
      _
    $region7: #{ss2d_forward.3} parent=1 // pred_check_branch
      %14 = sbr.rel (0) target = $region9
    $region8: #{ss2d_forward.3} parent=1 // pred_region
      _
    $region9: #{ss2d_forward.3} parent=1 // pred_fallthru
      _
    // Predicated region
    $region10: #{ss2d_forward.3} parent=1 // pred_check
      _
    $region11: #{ss2d_forward.3} parent=1 // pred_check_branch
      %16 = sbr.rel (0) target = $region13
    $region12: #{ss2d_forward.3} parent=1 // pred_region
      _
    $region13: #{ss2d_forward.3} parent=1 // pred_fallthru
      _
    // Predicated region
    $region14: #{ss2d_forward.3} parent=1 // pred_check
      _
    $region15: #{ss2d_forward.3} parent=1 // pred_check_branch
      %18 = sbr.rel (0) target = $region17
    $region16: #{ss2d_forward.3} parent=1 // pred_region
      _
    $region17: #{ss2d_forward.3} parent=1 // pred_fallthru
      _
    // Predicated region
    $region18: #{ss2d_forward.3} parent=1 // pred_check
      _
    $region19: #{ss2d_forward.3} parent=1 // pred_check_branch
      %20 = sbr.rel (0) target = $region21
    $region20: #{ss2d_forward.3} parent=1 // pred_region
      _
    $region21: #{ss2d_forward.3} parent=1 // pred_fallthru
      _
    %v21 = vld [vmem:[%s0] sm:$0xff]
    %v22 = vld [vmem:[%s0 + $0x8] sm:$0xff]
    %v23 = vld [vmem:[%s0 + $0x10] sm:$0xff]
    %v24 = vld [vmem:[%s0 + $0x18] sm:$0xff]
    %v25 = vld [vmem:[%s0 + $0x20] sm:$0xff]
    %v26 = vld [vmem:[%s0 + $0x28] sm:$0xff]
    %v27 = vld [vmem:[%s0 + $0x30] sm:$0xff]
    %v28 = vld [vmem:[%s0 + $0x38] sm:$0xff]
    %v29 = vld [vmem:[%s0 + $0x40] sm:$0xff]
    %v30 = vld [vmem:[%s0 + $0x48] sm:$0xff]
    %v31 = vld [vmem:[%s0 + $0x50] sm:$0xff]
    %v32 = vld [vmem:[%s0 + $0x58] sm:$0xff]
    %v33 = vld [vmem:[%s0 + $0x60] sm:$0xff]
    %v34 = vld [vmem:[%s0 + $0x68] sm:$0xff]
    %v35 = vld [vmem:[%s0 + $0x70] sm:$0xff]
    %v36 = vld [vmem:[%s0 + $0x78] sm:$0xff]
    %vm37 = vcmask 261120
    %v38 = vsel %vm37, %v21, 0.0
    %39 = vadd.xlane.f32.xlu0 %v38
    %v40 = vpop.xlane.xlu0 %39
    %v41 = vsel %vm37, %v22, 0.0
    %42 = vadd.xlane.f32.xlu0 %v41
    %v43 = vpop.xlane.xlu0 %42
    %v44 = vsel %vm37, %v23, 0.0
    %45 = vadd.xlane.f32.xlu0 %v44
    %v46 = vpop.xlane.xlu0 %45
    %v47 = vsel %vm37, %v24, 0.0
    %48 = vadd.xlane.f32.xlu0 %v47
    %v49 = vpop.xlane.xlu0 %48
    %v50 = vsel %vm37, %v25, 0.0
    %51 = vadd.xlane.f32.xlu0 %v50
    %v52 = vpop.xlane.xlu0 %51
    %v53 = vsel %vm37, %v26, 0.0
    %54 = vadd.xlane.f32.xlu0 %v53
    %v55 = vpop.xlane.xlu0 %54
    %v56 = vsel %vm37, %v27, 0.0
    %57 = vadd.xlane.f32.xlu0 %v56
    %v58 = vpop.xlane.xlu0 %57
    %v59 = vsel %vm37, %v28, 0.0
    %60 = vadd.xlane.f32.xlu0 %v59
    %v61 = vpop.xlane.xlu0 %60
    %v62 = vsel %vm37, %v29, 0.0
    %63 = vadd.xlane.f32.xlu0 %v62
    %v64 = vpop.xlane.xlu0 %63
    %v65 = vsel %vm37, %v30, 0.0
    %66 = vadd.xlane.f32.xlu0 %v65
    %v67 = vpop.xlane.xlu0 %66
    %v68 = vsel %vm37, %v31, 0.0
    %69 = vadd.xlane.f32.xlu0 %v68
    %v70 = vpop.xlane.xlu0 %69
    %v71 = vsel %vm37, %v32, 0.0
    %72 = vadd.xlane.f32.xlu0 %v71
    %v73 = vpop.xlane.xlu0 %72
    %v74 = vsel %vm37, %v33, 0.0
    %75 = vadd.xlane.f32.xlu0 %v74
    %v76 = vpop.xlane.xlu0 %75
    %v77 = vsel %vm37, %v34, 0.0
    %78 = vadd.xlane.f32.xlu0 %v77
    %v79 = vpop.xlane.xlu0 %78
    %v80 = vsel %vm37, %v35, 0.0
    %81 = vadd.xlane.f32.xlu0 %v80
    %v82 = vpop.xlane.xlu0 %81
    %v83 = vsel %vm37, %v36, 0.0
    %84 = vadd.xlane.f32.xlu0 %v83
    %v85 = vpop.xlane.xlu0 %84
    %v86 = vrcp.pop 32.0
    %v87 = vmul.f32 %v40, %v86
    %v88 = vmul.f32 %v43, %v86
    %v89 = vmul.f32 %v46, %v86
    %v90 = vmul.f32 %v49, %v86
    %v91 = vmul.f32 %v52, %v86
    %v92 = vmul.f32 %v55, %v86
    %v93 = vmul.f32 %v58, %v86
    %v94 = vmul.f32 %v61, %v86
    %v95 = vmul.f32 %v64, %v86
    %v96 = vmul.f32 %v67, %v86
    %v97 = vmul.f32 %v70, %v86
    %v98 = vmul.f32 %v73, %v86
    %v99 = vmul.f32 %v76, %v86
    %v100 = vmul.f32 %v79, %v86
    %v101 = vmul.f32 %v82, %v86
    %v102 = vmul.f32 %v85, %v86
    %v103 = vsub.f32 %v21, %v87
    %v104 = vsub.f32 %v22, %v88
    %v105 = vsub.f32 %v23, %v89
    %v106 = vsub.f32 %v24, %v90
    %v107 = vsub.f32 %v25, %v91
    %v108 = vsub.f32 %v26, %v92
    %v109 = vsub.f32 %v27, %v93
    %v110 = vsub.f32 %v28, %v94
    %v111 = vsub.f32 %v29, %v95
    %v112 = vsub.f32 %v30, %v96
    %v113 = vsub.f32 %v31, %v97
    %v114 = vsub.f32 %v32, %v98
    %v115 = vsub.f32 %v33, %v99
    %v116 = vsub.f32 %v34, %v100
    %v117 = vsub.f32 %v35, %v101
    %v118 = vsub.f32 %v36, %v102
    %v119 = vmul.f32 %v103, %v103
    %v120 = vmul.f32 %v104, %v104
    %v121 = vmul.f32 %v105, %v105
    %v122 = vmul.f32 %v106, %v106
    %v123 = vmul.f32 %v107, %v107
    %v124 = vmul.f32 %v108, %v108
    %v125 = vmul.f32 %v109, %v109
    %v126 = vmul.f32 %v110, %v110
    %v127 = vmul.f32 %v111, %v111
    %v128 = vmul.f32 %v112, %v112
    %v129 = vmul.f32 %v113, %v113
    %v130 = vmul.f32 %v114, %v114
    %v131 = vmul.f32 %v115, %v115
    %v132 = vmul.f32 %v116, %v116
    %v133 = vmul.f32 %v117, %v117
    %v134 = vmul.f32 %v118, %v118
    %v135 = vsel %vm37, %v119, 0.0
    %136 = vadd.xlane.f32.xlu0 %v135
    %v137 = vpop.xlane.xlu0 %136
    %v138 = vsel %vm37, %v120, 0.0
    %139 = vadd.xlane.f32.xlu0 %v138
    %v140 = vpop.xlane.xlu0 %139
    %v141 = vsel %vm37, %v121, 0.0
    %142 = vadd.xlane.f32.xlu0 %v141
    %v143 = vpop.xlane.xlu0 %142
    %v144 = vsel %vm37, %v122, 0.0
    %145 = vadd.xlane.f32.xlu0 %v144
    %v146 = vpop.xlane.xlu0 %145
    %v147 = vsel %vm37, %v123, 0.0
    %148 = vadd.xlane.f32.xlu0 %v147
    %v149 = vpop.xlane.xlu0 %148
    %v150 = vsel %vm37, %v124, 0.0
    %151 = vadd.xlane.f32.xlu0 %v150
    %v152 = vpop.xlane.xlu0 %151
    %v153 = vsel %vm37, %v125, 0.0
    %154 = vadd.xlane.f32.xlu0 %v153
    %v155 = vpop.xlane.xlu0 %154
    %v156 = vsel %vm37, %v126, 0.0
    %157 = vadd.xlane.f32.xlu0 %v156
    %v158 = vpop.xlane.xlu0 %157
    %v159 = vsel %vm37, %v127, 0.0
    %160 = vadd.xlane.f32.xlu0 %v159
    %v161 = vpop.xlane.xlu0 %160
    %v162 = vsel %vm37, %v128, 0.0
    %163 = vadd.xlane.f32.xlu0 %v162
    %v164 = vpop.xlane.xlu0 %163
    %v165 = vsel %vm37, %v129, 0.0
    %166 = vadd.xlane.f32.xlu0 %v165
    %v167 = vpop.xlane.xlu0 %166
    %v168 = vsel %vm37, %v130, 0.0
    %169 = vadd.xlane.f32.xlu0 %v168
    %v170 = vpop.xlane.xlu0 %169
    %v171 = vsel %vm37, %v131, 0.0
    %172 = vadd.xlane.f32.xlu0 %v171
    %v173 = vpop.xlane.xlu0 %172
    %v174 = vsel %vm37, %v132, 0.0
    %175 = vadd.xlane.f32.xlu0 %v174
    %v176 = vpop.xlane.xlu0 %175
    %v177 = vsel %vm37, %v133, 0.0
    %178 = vadd.xlane.f32.xlu0 %v177
    %v179 = vpop.xlane.xlu0 %178
    %v180 = vsel %vm37, %v134, 0.0
    %181 = vadd.xlane.f32.xlu0 %v180
    %v182 = vpop.xlane.xlu0 %181
    %v183 = vmul.f32 %v137, %v86
    %v184 = vmul.f32 %v140, %v86
    %v185 = vmul.f32 %v143, %v86
    %v186 = vmul.f32 %v146, %v86
    %v187 = vmul.f32 %v149, %v86
    %v188 = vmul.f32 %v152, %v86
    %v189 = vmul.f32 %v155, %v86
    %v190 = vmul.f32 %v158, %v86
    %v191 = vmul.f32 %v161, %v86
    %v192 = vmul.f32 %v164, %v86
    %v193 = vmul.f32 %v167, %v86
    %v194 = vmul.f32 %v170, %v86
    %v195 = vmul.f32 %v173, %v86
    %v196 = vmul.f32 %v176, %v86
    %v197 = vmul.f32 %v179, %v86
    %v198 = vmul.f32 %v182, %v86
    %v199 = vadd.f32 %v183, 1e-05
    %v200 = vadd.f32 %v184, 1e-05
    %v201 = vadd.f32 %v185, 1e-05
    %v202 = vadd.f32 %v186, 1e-05
    %v203 = vadd.f32 %v187, 1e-05
    %v204 = vadd.f32 %v188, 1e-05
    %v205 = vadd.f32 %v189, 1e-05
    %v206 = vadd.f32 %v190, 1e-05
    %v207 = vadd.f32 %v191, 1e-05
    %v208 = vadd.f32 %v192, 1e-05
    %v209 = vadd.f32 %v193, 1e-05
    %v210 = vadd.f32 %v194, 1e-05
    %v211 = vadd.f32 %v195, 1e-05
    %v212 = vadd.f32 %v196, 1e-05
    %v213 = vadd.f32 %v197, 1e-05
    %v214 = vadd.f32 %v198, 1e-05
    %v215 = vrsqrt.pop %v199
    %v216 = vrsqrt.pop %v200
    %v217 = vrsqrt.pop %v201
    %v218 = vrsqrt.pop %v202
    %v219 = vrsqrt.pop %v203
    %v220 = vrsqrt.pop %v204
    %v221 = vrsqrt.pop %v205
    %v222 = vrsqrt.pop %v206
    %v223 = vrsqrt.pop %v207
    %v224 = vrsqrt.pop %v208
    %v225 = vrsqrt.pop %v209
    %v226 = vrsqrt.pop %v210
    %v227 = vrsqrt.pop %v211
    %v228 = vrsqrt.pop %v212
    %v229 = vrsqrt.pop %v213
    %v230 = vrsqrt.pop %v214
    %v231 = vmul.f32 %v103, %v215
    %v232 = vmul.f32 %v104, %v216
    %v233 = vmul.f32 %v105, %v217
    %v234 = vmul.f32 %v106, %v218
    %v235 = vmul.f32 %v107, %v219
    %v236 = vmul.f32 %v108, %v220
    %v237 = vmul.f32 %v109, %v221
    %v238 = vmul.f32 %v110, %v222
    %v239 = vmul.f32 %v111, %v223
    %v240 = vmul.f32 %v112, %v224
    %v241 = vmul.f32 %v113, %v225
    %v242 = vmul.f32 %v114, %v226
    %v243 = vmul.f32 %v115, %v227
    %v244 = vmul.f32 %v116, %v228
    %v245 = vmul.f32 %v117, %v229
    %v246 = vmul.f32 %v118, %v230
    %v247 = vld [vmem:[%s2] sm:$0x1]
    %v249 = vlaneseq
    %v250 = vshrl.u32 %v249, 7
    %v251 = vsub.s32 0, %v250
    %v252 = vrot.slane %v247, %v251
    %v254 = vmul.f32 %v231, %v252
    %v255 = vmul.f32 %v232, %v252
    %v256 = vmul.f32 %v233, %v252
    %v257 = vmul.f32 %v234, %v252
    %v258 = vmul.f32 %v235, %v252
    %v259 = vmul.f32 %v236, %v252
    %v260 = vmul.f32 %v237, %v252
    %v261 = vmul.f32 %v238, %v252
    %v262 = vmul.f32 %v239, %v252
    %v263 = vmul.f32 %v240, %v252
    %v264 = vmul.f32 %v241, %v252
    %v265 = vmul.f32 %v242, %v252
    %v266 = vmul.f32 %v243, %v252
    %v267 = vmul.f32 %v244, %v252
    %v268 = vmul.f32 %v245, %v252
    %v269 = vmul.f32 %v246, %v252
    %v270 = vld [vmem:[%s3] sm:$0x1]
    %v272 = vlaneseq
    %v273 = vshrl.u32 %v272, 7
    %v274 = vsub.s32 0, %v273
    %v275 = vrot.slane %v270, %v274
    %v277 = vadd.f32 %v254, %v275
    %v278 = vadd.f32 %v255, %v275
    %v279 = vadd.f32 %v256, %v275
    %v280 = vadd.f32 %v257, %v275
    %v281 = vadd.f32 %v258, %v275
    %v282 = vadd.f32 %v259, %v275
    %v283 = vadd.f32 %v260, %v275
    %v284 = vadd.f32 %v261, %v275
    %v285 = vadd.f32 %v262, %v275
    %v286 = vadd.f32 %v263, %v275
    %v287 = vadd.f32 %v264, %v275
    %v288 = vadd.f32 %v265, %v275
    %v289 = vadd.f32 %v266, %v275
    %v290 = vadd.f32 %v267, %v275
    %v291 = vadd.f32 %v268, %v275
    %v292 = vadd.f32 %v269, %v275
    %v293 = vld [vmem:[%s1] sm:$0xff]
    %v294 = vld [vmem:[%s1 + $0x8] sm:$0xff]
    %v295 = vld [vmem:[%s1 + $0x10] sm:$0xff]
    %v296 = vld [vmem:[%s1 + $0x18] sm:$0xff]
    %v297 = vld [vmem:[%s1 + $0x20] sm:$0xff]
    %v298 = vld [vmem:[%s1 + $0x28] sm:$0xff]
    %v299 = vld [vmem:[%s1 + $0x30] sm:$0xff]
    %v300 = vld [vmem:[%s1 + $0x38] sm:$0xff]
    %v301 = vld [vmem:[%s1 + $0x40] sm:$0xff]
    %v302 = vld [vmem:[%s1 + $0x48] sm:$0xff]
    %v303 = vld [vmem:[%s1 + $0x50] sm:$0xff]
    %v304 = vld [vmem:[%s1 + $0x58] sm:$0xff]
    %v305 = vld [vmem:[%s1 + $0x60] sm:$0xff]
    %v306 = vld [vmem:[%s1 + $0x68] sm:$0xff]
    %v307 = vld [vmem:[%s1 + $0x70] sm:$0xff]
    %v308 = vld [vmem:[%s1 + $0x78] sm:$0xff]
    %v309 = vsub.f32 0.0, %v293
    %v310 = vsub.f32 0.0, %v294
    %v311 = vsub.f32 0.0, %v295
    %v312 = vsub.f32 0.0, %v296
    %v313 = vsub.f32 0.0, %v297
    %v314 = vsub.f32 0.0, %v298
    %v315 = vsub.f32 0.0, %v299
    %v316 = vsub.f32 0.0, %v300
    %v317 = vsub.f32 0.0, %v301
    %v318 = vsub.f32 0.0, %v302
    %v319 = vsub.f32 0.0, %v303
    %v320 = vsub.f32 0.0, %v304
    %v321 = vsub.f32 0.0, %v305
    %v322 = vsub.f32 0.0, %v306
    %v323 = vsub.f32 0.0, %v307
    %v324 = vsub.f32 0.0, %v308
    %v325 = vmul.f32 %v309, 1.442695
    %v326 = vpow.pop %v325
    %v327 = vmul.f32 %v310, 1.442695
    %v328 = vpow.pop %v327
    %v329 = vmul.f32 %v311, 1.442695
    %v330 = vpow.pop %v329
    %v331 = vmul.f32 %v312, 1.442695
    %v332 = vpow.pop %v331
    %v333 = vmul.f32 %v313, 1.442695
    %v334 = vpow.pop %v333
    %v335 = vmul.f32 %v314, 1.442695
    %v336 = vpow.pop %v335
    %v337 = vmul.f32 %v315, 1.442695
    %v338 = vpow.pop %v337
    %v339 = vmul.f32 %v316, 1.442695
    %v340 = vpow.pop %v339
    %v341 = vmul.f32 %v317, 1.442695
    %v342 = vpow.pop %v341
    %v343 = vmul.f32 %v318, 1.442695
    %v344 = vpow.pop %v343
    %v345 = vmul.f32 %v319, 1.442695
    %v346 = vpow.pop %v345
    %v347 = vmul.f32 %v320, 1.442695
    %v348 = vpow.pop %v347
    %v349 = vmul.f32 %v321, 1.442695
    %v350 = vpow.pop %v349
    %v351 = vmul.f32 %v322, 1.442695
    %v352 = vpow.pop %v351
    %v353 = vmul.f32 %v323, 1.442695
    %v354 = vpow.pop %v353
    %v355 = vmul.f32 %v324, 1.442695
    %v356 = vpow.pop %v355
    %v357 = vadd.f32 %v326, 1.0
    %v358 = vadd.f32 %v328, 1.0
    %v359 = vadd.f32 %v330, 1.0
    %v360 = vadd.f32 %v332, 1.0
    %v361 = vadd.f32 %v334, 1.0
    %v362 = vadd.f32 %v336, 1.0
    %v363 = vadd.f32 %v338, 1.0
    %v364 = vadd.f32 %v340, 1.0
    %v365 = vadd.f32 %v342, 1.0
    %v366 = vadd.f32 %v344, 1.0
    %v367 = vadd.f32 %v346, 1.0
    %v368 = vadd.f32 %v348, 1.0
    %v369 = vadd.f32 %v350, 1.0
    %v370 = vadd.f32 %v352, 1.0
    %v371 = vadd.f32 %v354, 1.0
    %v372 = vadd.f32 %v356, 1.0
    %v373 = vrcp.pop %v357
    %v374 = vmul.f32 %v293, %v373
    %v375 = vrcp.pop %v358
    %v376 = vmul.f32 %v294, %v375
    %v377 = vrcp.pop %v359
    %v378 = vmul.f32 %v295, %v377
    %v379 = vrcp.pop %v360
    %v380 = vmul.f32 %v296, %v379
    %v381 = vrcp.pop %v361
    %v382 = vmul.f32 %v297, %v381
    %v383 = vrcp.pop %v362
    %v384 = vmul.f32 %v298, %v383
    %v385 = vrcp.pop %v363
    %v386 = vmul.f32 %v299, %v385
    %v387 = vrcp.pop %v364
    %v388 = vmul.f32 %v300, %v387
    %v389 = vrcp.pop %v365
    %v390 = vmul.f32 %v301, %v389
    %v391 = vrcp.pop %v366
    %v392 = vmul.f32 %v302, %v391
    %v393 = vrcp.pop %v367
    %v394 = vmul.f32 %v303, %v393
    %v395 = vrcp.pop %v368
    %v396 = vmul.f32 %v304, %v395
    %v397 = vrcp.pop %v369
    %v398 = vmul.f32 %v305, %v397
    %v399 = vrcp.pop %v370
    %v400 = vmul.f32 %v306, %v399
    %v401 = vrcp.pop %v371
    %v402 = vmul.f32 %v307, %v401
    %v403 = vrcp.pop %v372
    %v404 = vmul.f32 %v308, %v403
    %v405 = vmul.f32 %v277, %v374
    %v406 = vmul.f32 %v278, %v376
    %v407 = vmul.f32 %v279, %v378
    %v408 = vmul.f32 %v280, %v380
    %v409 = vmul.f32 %v281, %v382
    %v410 = vmul.f32 %v282, %v384
    %v411 = vmul.f32 %v283, %v386
    %v412 = vmul.f32 %v284, %v388
    %v413 = vmul.f32 %v285, %v390
    %v414 = vmul.f32 %v286, %v392
    %v415 = vmul.f32 %v287, %v394
    %v416 = vmul.f32 %v288, %v396
    %v417 = vmul.f32 %v289, %v398
    %v418 = vmul.f32 %v290, %v400
    %v419 = vmul.f32 %v291, %v402
    %v420 = vmul.f32 %v292, %v404
    %v421 = vld [vmem:[%s4] sm:$0xff]
    %v422 = vld [vmem:[%s4 + $0x8] sm:$0xff]
    %v423 = vld [vmem:[%s4 + $0x10] sm:$0xff]
    %v424 = vld [vmem:[%s4 + $0x18] sm:$0xff]
    %v426 = vsel %vm37, %v405, 0
    %v429 = vsel %vm37, %v406, 0
    %v432 = vsel %vm37, %v407, 0
    %v435 = vsel %vm37, %v408, 0
    %v438 = vsel %vm37, %v409, 0
    %v441 = vsel %vm37, %v410, 0
    %v444 = vsel %vm37, %v411, 0
    %v447 = vsel %vm37, %v412, 0
    %v450 = vsel %vm37, %v413, 0
    %v453 = vsel %vm37, %v414, 0
    %v456 = vsel %vm37, %v415, 0
    %v459 = vsel %vm37, %v416, 0
    %v462 = vsel %vm37, %v417, 0
    %v465 = vsel %vm37, %v418, 0
    %v468 = vsel %vm37, %v419, 0
    %v471 = vsel %vm37, %v420, 0
    %473 = vmatprep.subr.mxu0 0.0
    %v474 = vand.u32 %v421, 4294901760
    %475 = vmatpush1.msra.mxu0 %v474
    %476 = vmatprep.subr.mxu0 0.0
    %v477 = vand.u32 %v422, 4294901760
    %478 = vmatpush1.msra.mxu0 %v477
    %479 = vmatprep.subr.mxu0 0.0
    %v480 = vand.u32 %v423, 4294901760
    %481 = vmatpush1.msra.mxu0 %v480
    %482 = vmatprep.subr.mxu0 0.0
    %v483 = vand.u32 %v424, 4294901760
    %484 = vmatpush1.msra.mxu0 %v483
    %485 = vmatprep.subr.mxu0 0.0
    %486 = vmatpush1.msra.mxu0 0.0
    %487 = vmatprep.subr.mxu0 0.0
    %488 = vmatpush1.msra.mxu0 0.0
    %489 = vmatprep.subr.mxu0 0.0
    %490 = vmatpush1.msra.mxu0 0.0
    %491 = vmatprep.subr.mxu0 0.0
    %492 = vmatpush1.msra.mxu0 0.0
    %493 = vmatprep.subr.mxu0 0.0
    %494 = vmatpush1.msra.mxu0 0.0
    %495 = vmatprep.subr.mxu0 0.0
    %496 = vmatpush1.msra.mxu0 0.0
    %497 = vmatprep.subr.mxu0 0.0
    %498 = vmatpush1.msra.mxu0 0.0
    %499 = vmatprep.subr.mxu0 0.0
    %500 = vmatpush1.msra.mxu0 0.0
    %501 = vmatprep.subr.mxu0 0.0
    %502 = vmatpush1.msra.mxu0 0.0
    %503 = vmatprep.subr.mxu0 0.0
    %504 = vmatpush1.msra.mxu0 0.0
    %505 = vmatprep.subr.mxu0 0.0
    %506 = vmatpush1.msra.mxu0 0.0
    %507 = vmatprep.subr.mxu0 0.0
    %508 = vmatpush1.msra.mxu0 0.0
    %509 = vmatprep.subr.mxu0 0.0
    %510 = vmatpush1.msra.mxu0 0.0
    %511 = vmatprep.subr.mxu0 0.0
    %512 = vmatpush1.msra.mxu0 0.0
    %513 = vmatprep.subr.mxu0 0.0
    %514 = vmatpush1.msra.mxu0 0.0
    %515 = vmatprep.subr.mxu0 0.0
    %516 = vmatpush1.msra.mxu0 0.0
    %517 = vmatprep.subr.mxu0 0.0
    %518 = vmatpush1.msra.mxu0 0.0
    %519 = vmatprep.subr.mxu0 0.0
    %520 = vmatpush1.msra.mxu0 0.0
    %521 = vmatprep.subr.mxu0 0.0
    %522 = vmatpush1.msra.mxu0 0.0
    %523 = vmatprep.subr.mxu0 0.0
    %524 = vmatpush1.msra.mxu0 0.0
    %525 = vmatprep.subr.mxu0 0.0
    %526 = vmatpush1.msra.mxu0 0.0
    %527 = vmatprep.subr.mxu0 0.0
    %528 = vmatpush1.msra.mxu0 0.0
    %529 = vmatprep.subr.mxu0 0.0
    %530 = vmatpush1.msra.mxu0 0.0
    %531 = vmatprep.subr.mxu0 0.0
    %532 = vmatpush1.msra.mxu0 0.0
    %533 = vmatprep.subr.mxu0 0.0
    %534 = vmatpush1.msra.mxu0 0.0
    %535 = vmatprep.subr.mxu0 0.0
    %536 = vmatpush1.msra.mxu0 0.0
    %537 = vmatprep.subr.mxu0 0.0
    %538 = vmatpush1.msra.mxu0 0.0
    %539 = vmatprep.subr.mxu0 0.0
    %540 = vmatpush1.msra.mxu0 0.0
    %541 = vmatprep.mubr.f32.mxu0 0.0
    %v542 = vand.u32 %v426, 4294901760
    %v543 = vsub.f32 %v426, %v542
    %v544 = vand.u32 %v543, 4294901760
    %v545 = vsub.f32 %v543, %v544
    %v546 = vand.u32 %v545, 4294901760
    %547 = vmatmul.mubr.f32.gmra.mrb[0].mxu0 %v546
    %v548 = vpop.f32.mrb[0].mxu0
    %v549 = vadd.f32 0.0, %v548
    %v550 = vpop.f32.mrb[0].mxu0
    %551 = vmatprep.mubr.f32.mxu0 0.0
    %v552 = vand.u32 %v429, 4294901760
    %v553 = vsub.f32 %v429, %v552
    %v554 = vand.u32 %v553, 4294901760
    %v555 = vsub.f32 %v553, %v554
    %v556 = vand.u32 %v555, 4294901760
    %557 = vmatmul.mubr.f32.gmra.mrb[0].mxu0 %v556
    %v558 = vpop.f32.mrb[0].mxu0
    %v559 = vadd.f32 0.0, %v558
    %v560 = vpop.f32.mrb[0].mxu0
    %561 = vmatprep.mubr.f32.mxu0 0.0
    %v562 = vand.u32 %v432, 4294901760
    %v563 = vsub.f32 %v432, %v562
    %v564 = vand.u32 %v563, 4294901760
    %v565 = vsub.f32 %v563, %v564
    %v566 = vand.u32 %v565, 4294901760
    %567 = vmatmul.mubr.f32.gmra.mrb[0].mxu0 %v566
    %v568 = vpop.f32.mrb[0].mxu0
    %v569 = vadd.f32 0.0, %v568
    %v570 = vpop.f32.mrb[0].mxu0
    %571 = vmatprep.mubr.f32.mxu0 0.0
    %v572 = vand.u32 %v435, 4294901760
    %v573 = vsub.f32 %v435, %v572
    %v574 = vand.u32 %v573, 4294901760
    %v575 = vsub.f32 %v573, %v574
    %v576 = vand.u32 %v575, 4294901760
    %577 = vmatmul.mubr.f32.gmra.mrb[0].mxu0 %v576
    %v578 = vpop.f32.mrb[0].mxu0
    %v579 = vadd.f32 0.0, %v578
    %v580 = vpop.f32.mrb[0].mxu0
    %581 = vmatprep.mubr.f32.mxu0 0.0
    %v582 = vand.u32 %v438, 4294901760
    %v583 = vsub.f32 %v438, %v582
    %v584 = vand.u32 %v583, 4294901760
    %v585 = vsub.f32 %v583, %v584
    %v586 = vand.u32 %v585, 4294901760
    %587 = vmatmul.mubr.f32.gmra.mrb[0].mxu0 %v586
    %v588 = vpop.f32.mrb[0].mxu0
    %v589 = vadd.f32 0.0, %v588
    %v590 = vpop.f32.mrb[0].mxu0
    %591 = vmatprep.mubr.f32.mxu0 0.0
    %v592 = vand.u32 %v441, 4294901760
    %v593 = vsub.f32 %v441, %v592
    %v594 = vand.u32 %v593, 4294901760
    %v595 = vsub.f32 %v593, %v594
    %v596 = vand.u32 %v595, 4294901760
    %597 = vmatmul.mubr.f32.gmra.mrb[0].mxu0 %v596
    %v598 = vpop.f32.mrb[0].mxu0
    %v599 = vadd.f32 0.0, %v598
    %v600 = vpop.f32.mrb[0].mxu0
    %601 = vmatprep.mubr.f32.mxu0 0.0
    %v602 = vand.u32 %v444, 4294901760
    %v603 = vsub.f32 %v444, %v602
    %v604 = vand.u32 %v603, 4294901760
    %v605 = vsub.f32 %v603, %v604
    %v606 = vand.u32 %v605, 4294901760
    %607 = vmatmul.mubr.f32.gmra.mrb[0].mxu0 %v606
    %v608 = vpop.f32.mrb[0].mxu0
    %v609 = vadd.f32 0.0, %v608
    %v610 = vpop.f32.mrb[0].mxu0
    %611 = vmatprep.mubr.f32.mxu0 0.0
    %v612 = vand.u32 %v447, 4294901760
    %v613 = vsub.f32 %v447, %v612
    %v614 = vand.u32 %v613, 4294901760
    %v615 = vsub.f32 %v613, %v614
    %v616 = vand.u32 %v615, 4294901760
    %617 = vmatmul.mubr.f32.gmra.mrb[0].mxu0 %v616
    %v618 = vpop.f32.mrb[0].mxu0
    %v619 = vadd.f32 0.0, %v618
    %v620 = vpop.f32.mrb[0].mxu0
    %621 = vmatprep.mubr.f32.mxu0 0.0
    %v622 = vand.u32 %v450, 4294901760
    %v623 = vsub.f32 %v450, %v622
    %v624 = vand.u32 %v623, 4294901760
    %v625 = vsub.f32 %v623, %v624
    %v626 = vand.u32 %v625, 4294901760
    %627 = vmatmul.mubr.f32.gmra.mrb[0].mxu0 %v626
    %v628 = vpop.f32.mrb[0].mxu0
    %v629 = vadd.f32 0.0, %v628
    %v630 = vpop.f32.mrb[0].mxu0
    %631 = vmatprep.mubr.f32.mxu0 0.0
    %v632 = vand.u32 %v453, 4294901760
    %v633 = vsub.f32 %v453, %v632
    %v634 = vand.u32 %v633, 4294901760
    %v635 = vsub.f32 %v633, %v634
    %v636 = vand.u32 %v635, 4294901760
    %637 = vmatmul.mubr.f32.gmra.mrb[0].mxu0 %v636
    %v638 = vpop.f32.mrb[0].mxu0
    %v639 = vadd.f32 0.0, %v638
    %v640 = vpop.f32.mrb[0].mxu0
    %641 = vmatprep.mubr.f32.mxu0 0.0
    %v642 = vand.u32 %v456, 4294901760
    %v643 = vsub.f32 %v456, %v642
    %v644 = vand.u32 %v643, 4294901760
    %v645 = vsub.f32 %v643, %v644
    %v646 = vand.u32 %v645, 4294901760
    %647 = vmatmul.mubr.f32.gmra.mrb[0].mxu0 %v646
    %v648 = vpop.f32.mrb[0].mxu0
    %v649 = vadd.f32 0.0, %v648
    %v650 = vpop.f32.mrb[0].mxu0
    %651 = vmatprep.mubr.f32.mxu0 0.0
    %v652 = vand.u32 %v459, 4294901760
    %v653 = vsub.f32 %v459, %v652
    %v654 = vand.u32 %v653, 4294901760
    %v655 = vsub.f32 %v653, %v654
    %v656 = vand.u32 %v655, 4294901760
    %657 = vmatmul.mubr.f32.gmra.mrb[0].mxu0 %v656
    %v658 = vpop.f32.mrb[0].mxu0
    %v659 = vadd.f32 0.0, %v658
    %v660 = vpop.f32.mrb[0].mxu0
    %661 = vmatprep.mubr.f32.mxu0 0.0
    %v662 = vand.u32 %v462, 4294901760
    %v663 = vsub.f32 %v462, %v662
    %v664 = vand.u32 %v663, 4294901760
    %v665 = vsub.f32 %v663, %v664
    %v666 = vand.u32 %v665, 4294901760
    %667 = vmatmul.mubr.f32.gmra.mrb[0].mxu0 %v666
    %v668 = vpop.f32.mrb[0].mxu0
    %v669 = vadd.f32 0.0, %v668
    %v670 = vpop.f32.mrb[0].mxu0
    %671 = vmatprep.mubr.f32.mxu0 0.0
    %v672 = vand.u32 %v465, 4294901760
    %v673 = vsub.f32 %v465, %v672
    %v674 = vand.u32 %v673, 4294901760
    %v675 = vsub.f32 %v673, %v674
    %v676 = vand.u32 %v675, 4294901760
    %677 = vmatmul.mubr.f32.gmra.mrb[0].mxu0 %v676
    %v678 = vpop.f32.mrb[0].mxu0
    %v679 = vadd.f32 0.0, %v678
    %v680 = vpop.f32.mrb[0].mxu0
    %681 = vmatprep.mubr.f32.mxu0 0.0
    %v682 = vand.u32 %v468, 4294901760
    %v683 = vsub.f32 %v468, %v682
    %v684 = vand.u32 %v683, 4294901760
    %v685 = vsub.f32 %v683, %v684
    %v686 = vand.u32 %v685, 4294901760
    %687 = vmatmul.mubr.f32.gmra.mrb[0].mxu0 %v686
    %v688 = vpop.f32.mrb[0].mxu0
    %v689 = vadd.f32 0.0, %v688
    %v690 = vpop.f32.mrb[0].mxu0
    %691 = vmatprep.mubr.f32.mxu0 0.0
    %v692 = vand.u32 %v471, 4294901760
    %v693 = vsub.f32 %v471, %v692
    %v694 = vand.u32 %v693, 4294901760
    %v695 = vsub.f32 %v693, %v694
    %v696 = vand.u32 %v695, 4294901760
    %697 = vmatmul.mubr.f32.gmra.mrb[0].mxu0 %v696
    %v698 = vpop.f32.mrb[0].mxu0
    %v699 = vadd.f32 0.0, %v698
    %v700 = vpop.f32.mrb[0].mxu0
    %701 = vdwg.mxu0
    %702 = vmatprep.subr.mxu0 0.0
    %v703 = vand.u32 %v421, 4294901760
    %v704 = vsub.f32 %v421, %v703
    %v705 = vand.u32 %v704, 4294901760
    %v706 = vsub.f32 %v704, %v705
    %v707 = vand.u32 %v706, 4294901760
    %708 = vmatpush1.msra.mxu0 %v707
    %709 = vmatprep.subr.mxu0 0.0
    %v710 = vand.u32 %v422, 4294901760
    %v711 = vsub.f32 %v422, %v710
    %v712 = vand.u32 %v711, 4294901760
    %v713 = vsub.f32 %v711, %v712
    %v714 = vand.u32 %v713, 4294901760
    %715 = vmatpush1.msra.mxu0 %v714
    %716 = vmatprep.subr.mxu0 0.0
    %v717 = vand.u32 %v423, 4294901760
    %v718 = vsub.f32 %v423, %v717
    %v719 = vand.u32 %v718, 4294901760
    %v720 = vsub.f32 %v718, %v719
    %v721 = vand.u32 %v720, 4294901760
    %722 = vmatpush1.msra.mxu0 %v721
    %723 = vmatprep.subr.mxu0 0.0
    %v724 = vand.u32 %v424, 4294901760
    %v725 = vsub.f32 %v424, %v724
    %v726 = vand.u32 %v725, 4294901760
    %v727 = vsub.f32 %v725, %v726
    %v728 = vand.u32 %v727, 4294901760
    %729 = vmatpush1.msra.mxu0 %v728
    %730 = vmatprep.subr.mxu0 0.0
    %731 = vmatpush1.msra.mxu0 0.0
    %732 = vmatprep.subr.mxu0 0.0
    %733 = vmatpush1.msra.mxu0 0.0
    %734 = vmatprep.subr.mxu0 0.0
    %735 = vmatpush1.msra.mxu0 0.0
    %736 = vmatprep.subr.mxu0 0.0
    %737 = vmatpush1.msra.mxu0 0.0
    %738 = vmatprep.subr.mxu0 0.0
    %739 = vmatpush1.msra.mxu0 0.0
    %740 = vmatprep.subr.mxu0 0.0
    %741 = vmatpush1.msra.mxu0 0.0
    %742 = vmatprep.subr.mxu0 0.0
    %743 = vmatpush1.msra.mxu0 0.0
    %744 = vmatprep.subr.mxu0 0.0
    %745 = vmatpush1.msra.mxu0 0.0
    %746 = vmatprep.subr.mxu0 0.0
    %747 = vmatpush1.msra.mxu0 0.0
    %748 = vmatprep.subr.mxu0 0.0
    %749 = vmatpush1.msra.mxu0 0.0
    %750 = vmatprep.subr.mxu0 0.0
    %751 = vmatpush1.msra.mxu0 0.0
    %752 = vmatprep.subr.mxu0 0.0
    %753 = vmatpush1.msra.mxu0 0.0
    %754 = vmatprep.subr.mxu0 0.0
    %755 = vmatpush1.msra.mxu0 0.0
    %756 = vmatprep.subr.mxu0 0.0
    %757 = vmatpush1.msra.mxu0 0.0
    %758 = vmatprep.subr.mxu0 0.0
    %759 = vmatpush1.msra.mxu0 0.0
    %760 = vmatprep.subr.mxu0 0.0
    %761 = vmatpush1.msra.mxu0 0.0
    %762 = vmatprep.subr.mxu0 0.0
    %763 = vmatpush1.msra.mxu0 0.0
    %764 = vmatprep.subr.mxu0 0.0
    %765 = vmatpush1.msra.mxu0 0.0
    %766 = vmatprep.subr.mxu0 0.0
    %767 = vmatpush1.msra.mxu0 0.0
    %768 = vmatprep.subr.mxu0 0.0
    %769 = vmatpush1.msra.mxu0 0.0
    %770 = vmatprep.subr.mxu0 0.0
    %771 = vmatpush1.msra.mxu0 0.0
    %772 = vmatprep.subr.mxu0 0.0
    %773 = vmatpush1.msra.mxu0 0.0
    %774 = vmatprep.subr.mxu0 0.0
    %775 = vmatpush1.msra.mxu0 0.0
    %776 = vmatprep.subr.mxu0 0.0
    %777 = vmatpush1.msra.mxu0 0.0
    %778 = vmatprep.subr.mxu0 0.0
    %779 = vmatpush1.msra.mxu0 0.0
    %780 = vmatprep.subr.mxu0 0.0
    %781 = vmatpush1.msra.mxu0 0.0
    %782 = vmatprep.subr.mxu0 0.0
    %783 = vmatpush1.msra.mxu0 0.0
    %784 = vmatprep.subr.mxu0 0.0
    %785 = vmatpush1.msra.mxu0 0.0
    %786 = vmatprep.mubr.f32.mxu0 0.0
    %v787 = vand.u32 %v426, 4294901760
    %788 = vmatmul.mubr.f32.gmra.mrb[0].mxu0 %v787
    %v789 = vpop.f32.mrb[0].mxu0
    %v790 = vadd.f32 %v549, %v789
    %v791 = vpop.f32.mrb[0].mxu0
    %792 = vmatprep.mubr.f32.mxu0 0.0
    %v793 = vand.u32 %v429, 4294901760
    %794 = vmatmul.mubr.f32.gmra.mrb[0].mxu0 %v793
    %v795 = vpop.f32.mrb[0].mxu0
    %v796 = vadd.f32 %v559, %v795
    %v797 = vpop.f32.mrb[0].mxu0
    %798 = vmatprep.mubr.f32.mxu0 0.0
    %v799 = vand.u32 %v432, 4294901760
    %800 = vmatmul.mubr.f32.gmra.mrb[0].mxu0 %v799
    %v801 = vpop.f32.mrb[0].mxu0
    %v802 = vadd.f32 %v569, %v801
    %v803 = vpop.f32.mrb[0].mxu0
    %804 = vmatprep.mubr.f32.mxu0 0.0
    %v805 = vand.u32 %v435, 4294901760
    %806 = vmatmul.mubr.f32.gmra.mrb[0].mxu0 %v805
    %v807 = vpop.f32.mrb[0].mxu0
    %v808 = vadd.f32 %v579, %v807
    %v809 = vpop.f32.mrb[0].mxu0
    %810 = vmatprep.mubr.f32.mxu0 0.0
    %v811 = vand.u32 %v438, 4294901760
    %812 = vmatmul.mubr.f32.gmra.mrb[0].mxu0 %v811
    %v813 = vpop.f32.mrb[0].mxu0
    %v814 = vadd.f32 %v589, %v813
    %v815 = vpop.f32.mrb[0].mxu0
    %816 = vmatprep.mubr.f32.mxu0 0.0
    %v817 = vand.u32 %v441, 4294901760
    %818 = vmatmul.mubr.f32.gmra.mrb[0].mxu0 %v817
    %v819 = vpop.f32.mrb[0].mxu0
    %v820 = vadd.f32 %v599, %v819
    %v821 = vpop.f32.mrb[0].mxu0
    %822 = vmatprep.mubr.f32.mxu0 0.0
    %v823 = vand.u32 %v444, 4294901760
    %824 = vmatmul.mubr.f32.gmra.mrb[0].mxu0 %v823
    %v825 = vpop.f32.mrb[0].mxu0
    %v826 = vadd.f32 %v609, %v825
    %v827 = vpop.f32.mrb[0].mxu0
    %828 = vmatprep.mubr.f32.mxu0 0.0
    %v829 = vand.u32 %v447, 4294901760
    %830 = vmatmul.mubr.f32.gmra.mrb[0].mxu0 %v829
    %v831 = vpop.f32.mrb[0].mxu0
    %v832 = vadd.f32 %v619, %v831
    %v833 = vpop.f32.mrb[0].mxu0
    %834 = vmatprep.mubr.f32.mxu0 0.0
    %v835 = vand.u32 %v450, 4294901760
    %836 = vmatmul.mubr.f32.gmra.mrb[0].mxu0 %v835
    %v837 = vpop.f32.mrb[0].mxu0
    %v838 = vadd.f32 %v629, %v837
    %v839 = vpop.f32.mrb[0].mxu0
    %840 = vmatprep.mubr.f32.mxu0 0.0
    %v841 = vand.u32 %v453, 4294901760
    %842 = vmatmul.mubr.f32.gmra.mrb[0].mxu0 %v841
    %v843 = vpop.f32.mrb[0].mxu0
    %v844 = vadd.f32 %v639, %v843
    %v845 = vpop.f32.mrb[0].mxu0
    %846 = vmatprep.mubr.f32.mxu0 0.0
    %v847 = vand.u32 %v456, 4294901760
    %848 = vmatmul.mubr.f32.gmra.mrb[0].mxu0 %v847
    %v849 = vpop.f32.mrb[0].mxu0
    %v850 = vadd.f32 %v649, %v849
    %v851 = vpop.f32.mrb[0].mxu0
    %852 = vmatprep.mubr.f32.mxu0 0.0
    %v853 = vand.u32 %v459, 4294901760
    %854 = vmatmul.mubr.f32.gmra.mrb[0].mxu0 %v853
    %v855 = vpop.f32.mrb[0].mxu0
    %v856 = vadd.f32 %v659, %v855
    %v857 = vpop.f32.mrb[0].mxu0
    %858 = vmatprep.mubr.f32.mxu0 0.0
    %v859 = vand.u32 %v462, 4294901760
    %860 = vmatmul.mubr.f32.gmra.mrb[0].mxu0 %v859
    %v861 = vpop.f32.mrb[0].mxu0
    %v862 = vadd.f32 %v669, %v861
    %v863 = vpop.f32.mrb[0].mxu0
    %864 = vmatprep.mubr.f32.mxu0 0.0
    %v865 = vand.u32 %v465, 4294901760
    %866 = vmatmul.mubr.f32.gmra.mrb[0].mxu0 %v865
    %v867 = vpop.f32.mrb[0].mxu0
    %v868 = vadd.f32 %v679, %v867
    %v869 = vpop.f32.mrb[0].mxu0
    %870 = vmatprep.mubr.f32.mxu0 0.0
    %v871 = vand.u32 %v468, 4294901760
    %872 = vmatmul.mubr.f32.gmra.mrb[0].mxu0 %v871
    %v873 = vpop.f32.mrb[0].mxu0
    %v874 = vadd.f32 %v689, %v873
    %v875 = vpop.f32.mrb[0].mxu0
    %876 = vmatprep.mubr.f32.mxu0 0.0
    %v877 = vand.u32 %v471, 4294901760
    %878 = vmatmul.mubr.f32.gmra.mrb[0].mxu0 %v877
    %v879 = vpop.f32.mrb[0].mxu0
    %v880 = vadd.f32 %v699, %v879
    %v881 = vpop.f32.mrb[0].mxu0
    %882 = vdwg.mxu0
    %883 = vmatprep.subr.mxu0 0.0
    %v884 = vand.u32 %v421, 4294901760
    %v885 = vsub.f32 %v421, %v884
    %886 = vmatpush1.msra.mxu0 %v885
    %887 = vmatprep.subr.mxu0 0.0
    %v888 = vand.u32 %v422, 4294901760
    %v889 = vsub.f32 %v422, %v888
    %890 = vmatpush1.msra.mxu0 %v889
    %891 = vmatprep.subr.mxu0 0.0
    %v892 = vand.u32 %v423, 4294901760
    %v893 = vsub.f32 %v423, %v892
    %894 = vmatpush1.msra.mxu0 %v893
    %895 = vmatprep.subr.mxu0 0.0
    %v896 = vand.u32 %v424, 4294901760
    %v897 = vsub.f32 %v424, %v896
    %898 = vmatpush1.msra.mxu0 %v897
    %899 = vmatprep.subr.mxu0 0.0
    %900 = vmatpush1.msra.mxu0 0.0
    %901 = vmatprep.subr.mxu0 0.0
    %902 = vmatpush1.msra.mxu0 0.0
    %903 = vmatprep.subr.mxu0 0.0
    %904 = vmatpush1.msra.mxu0 0.0
    %905 = vmatprep.subr.mxu0 0.0
    %906 = vmatpush1.msra.mxu0 0.0
    %907 = vmatprep.subr.mxu0 0.0
    %908 = vmatpush1.msra.mxu0 0.0
    %909 = vmatprep.subr.mxu0 0.0
    %910 = vmatpush1.msra.mxu0 0.0
    %911 = vmatprep.subr.mxu0 0.0
    %912 = vmatpush1.msra.mxu0 0.0
    %913 = vmatprep.subr.mxu0 0.0
    %914 = vmatpush1.msra.mxu0 0.0
    %915 = vmatprep.subr.mxu0 0.0
    %916 = vmatpush1.msra.mxu0 0.0
    %917 = vmatprep.subr.mxu0 0.0
    %918 = vmatpush1.msra.mxu0 0.0
    %919 = vmatprep.subr.mxu0 0.0
    %920 = vmatpush1.msra.mxu0 0.0
    %921 = vmatprep.subr.mxu0 0.0
    %922 = vmatpush1.msra.mxu0 0.0
    %923 = vmatprep.subr.mxu0 0.0
    %924 = vmatpush1.msra.mxu0 0.0
    %925 = vmatprep.subr.mxu0 0.0
    %926 = vmatpush1.msra.mxu0 0.0
    %927 = vmatprep.subr.mxu0 0.0
    %928 = vmatpush1.msra.mxu0 0.0
    %929 = vmatprep.subr.mxu0 0.0
    %930 = vmatpush1.msra.mxu0 0.0
    %931 = vmatprep.subr.mxu0 0.0
    %932 = vmatpush1.msra.mxu0 0.0
    %933 = vmatprep.subr.mxu0 0.0
    %934 = vmatpush1.msra.mxu0 0.0
    %935 = vmatprep.subr.mxu0 0.0
    %936 = vmatpush1.msra.mxu0 0.0
    %937 = vmatprep.subr.mxu0 0.0
    %938 = vmatpush1.msra.mxu0 0.0
    %939 = vmatprep.subr.mxu0 0.0
    %940 = vmatpush1.msra.mxu0 0.0
    %941 = vmatprep.subr.mxu0 0.0
    %942 = vmatpush1.msra.mxu0 0.0
    %943 = vmatprep.subr.mxu0 0.0
    %944 = vmatpush1.msra.mxu0 0.0
    %945 = vmatprep.subr.mxu0 0.0
    %946 = vmatpush1.msra.mxu0 0.0
    %947 = vmatprep.subr.mxu0 0.0
    %948 = vmatpush1.msra.mxu0 0.0
    %949 = vmatprep.subr.mxu0 0.0
    %950 = vmatpush1.msra.mxu0 0.0
    %951 = vmatprep.subr.mxu0 0.0
    %952 = vmatpush1.msra.mxu0 0.0
    %953 = vmatprep.subr.mxu0 0.0
    %954 = vmatpush1.msra.mxu0 0.0
    %955 = vmatprep.mubr.f32.mxu0 0.0
    %v956 = vand.u32 %v426, 4294901760
    %v957 = vsub.f32 %v426, %v956
    %958 = vmatmul.mubr.f32.gmra.mrb[0].mxu0 %v957
    %v959 = vpop.f32.mrb[0].mxu0
    %v960 = vadd.f32 %v790, %v959
    %v961 = vpop.f32.mrb[0].mxu0
    %962 = vmatprep.mubr.f32.mxu0 0.0
    %v963 = vand.u32 %v429, 4294901760
    %v964 = vsub.f32 %v429, %v963
    %965 = vmatmul.mubr.f32.gmra.mrb[0].mxu0 %v964
    %v966 = vpop.f32.mrb[0].mxu0
    %v967 = vadd.f32 %v796, %v966
    %v968 = vpop.f32.mrb[0].mxu0
    %969 = vmatprep.mubr.f32.mxu0 0.0
    %v970 = vand.u32 %v432, 4294901760
    %v971 = vsub.f32 %v432, %v970
    %972 = vmatmul.mubr.f32.gmra.mrb[0].mxu0 %v971
    %v973 = vpop.f32.mrb[0].mxu0
    %v974 = vadd.f32 %v802, %v973
    %v975 = vpop.f32.mrb[0].mxu0
    %976 = vmatprep.mubr.f32.mxu0 0.0
    %v977 = vand.u32 %v435, 4294901760
    %v978 = vsub.f32 %v435, %v977
    %979 = vmatmul.mubr.f32.gmra.mrb[0].mxu0 %v978
    %v980 = vpop.f32.mrb[0].mxu0
    %v981 = vadd.f32 %v808, %v980
    %v982 = vpop.f32.mrb[0].mxu0
    %983 = vmatprep.mubr.f32.mxu0 0.0
    %v984 = vand.u32 %v438, 4294901760
    %v985 = vsub.f32 %v438, %v984
    %986 = vmatmul.mubr.f32.gmra.mrb[0].mxu0 %v985
    %v987 = vpop.f32.mrb[0].mxu0
    %v988 = vadd.f32 %v814, %v987
    %v989 = vpop.f32.mrb[0].mxu0
    %990 = vmatprep.mubr.f32.mxu0 0.0
    %v991 = vand.u32 %v441, 4294901760
    %v992 = vsub.f32 %v441, %v991
    %993 = vmatmul.mubr.f32.gmra.mrb[0].mxu0 %v992
    %v994 = vpop.f32.mrb[0].mxu0
    %v995 = vadd.f32 %v820, %v994
    %v996 = vpop.f32.mrb[0].mxu0
    %997 = vmatprep.mubr.f32.mxu0 0.0
    %v998 = vand.u32 %v444, 4294901760
    %v999 = vsub.f32 %v444, %v998
    %1000 = vmatmul.mubr.f32.gmra.mrb[0].mxu0 %v999
    %v1001 = vpop.f32.mrb[0].mxu0
    %v1002 = vadd.f32 %v826, %v1001
    %v1003 = vpop.f32.mrb[0].mxu0
    %1004 = vmatprep.mubr.f32.mxu0 0.0
    %v1005 = vand.u32 %v447, 4294901760
    %v1006 = vsub.f32 %v447, %v1005
    %1007 = vmatmul.mubr.f32.gmra.mrb[0].mxu0 %v1006
    %v1008 = vpop.f32.mrb[0].mxu0
    %v1009 = vadd.f32 %v832, %v1008
    %v1010 = vpop.f32.mrb[0].mxu0
    %1011 = vmatprep.mubr.f32.mxu0 0.0
    %v1012 = vand.u32 %v450, 4294901760
    %v1013 = vsub.f32 %v450, %v1012
    %1014 = vmatmul.mubr.f32.gmra.mrb[0].mxu0 %v1013
    %v1015 = vpop.f32.mrb[0].mxu0
    %v1016 = vadd.f32 %v838, %v1015
    %v1017 = vpop.f32.mrb[0].mxu0
    %1018 = vmatprep.mubr.f32.mxu0 0.0
    %v1019 = vand.u32 %v453, 4294901760
    %v1020 = vsub.f32 %v453, %v1019
    %1021 = vmatmul.mubr.f32.gmra.mrb[0].mxu0 %v1020
    %v1022 = vpop.f32.mrb[0].mxu0
    %v1023 = vadd.f32 %v844, %v1022
    %v1024 = vpop.f32.mrb[0].mxu0
    %1025 = vmatprep.mubr.f32.mxu0 0.0
    %v1026 = vand.u32 %v456, 4294901760
    %v1027 = vsub.f32 %v456, %v1026
    %1028 = vmatmul.mubr.f32.gmra.mrb[0].mxu0 %v1027
    %v1029 = vpop.f32.mrb[0].mxu0
    %v1030 = vadd.f32 %v850, %v1029
    %v1031 = vpop.f32.mrb[0].mxu0
    %1032 = vmatprep.mubr.f32.mxu0 0.0
    %v1033 = vand.u32 %v459, 4294901760
    %v1034 = vsub.f32 %v459, %v1033
    %1035 = vmatmul.mubr.f32.gmra.mrb[0].mxu0 %v1034
    %v1036 = vpop.f32.mrb[0].mxu0
    %v1037 = vadd.f32 %v856, %v1036
    %v1038 = vpop.f32.mrb[0].mxu0
    %1039 = vmatprep.mubr.f32.mxu0 0.0
    %v1040 = vand.u32 %v462, 4294901760
    %v1041 = vsub.f32 %v462, %v1040
    %1042 = vmatmul.mubr.f32.gmra.mrb[0].mxu0 %v1041
    %v1043 = vpop.f32.mrb[0].mxu0
    %v1044 = vadd.f32 %v862, %v1043
    %v1045 = vpop.f32.mrb[0].mxu0
    %1046 = vmatprep.mubr.f32.mxu0 0.0
    %v1047 = vand.u32 %v465, 4294901760
    %v1048 = vsub.f32 %v465, %v1047
    %1049 = vmatmul.mubr.f32.gmra.mrb[0].mxu0 %v1048
    %v1050 = vpop.f32.mrb[0].mxu0
    %v1051 = vadd.f32 %v868, %v1050
    %v1052 = vpop.f32.mrb[0].mxu0
    %1053 = vmatprep.mubr.f32.mxu0 0.0
    %v1054 = vand.u32 %v468, 4294901760
    %v1055 = vsub.f32 %v468, %v1054
    %1056 = vmatmul.mubr.f32.gmra.mrb[0].mxu0 %v1055
    %v1057 = vpop.f32.mrb[0].mxu0
    %v1058 = vadd.f32 %v874, %v1057
    %v1059 = vpop.f32.mrb[0].mxu0
    %1060 = vmatprep.mubr.f32.mxu0 0.0
    %v1061 = vand.u32 %v471, 4294901760
    %v1062 = vsub.f32 %v471, %v1061
    %1063 = vmatmul.mubr.f32.gmra.mrb[0].mxu0 %v1062
    %v1064 = vpop.f32.mrb[0].mxu0
    %v1065 = vadd.f32 %v880, %v1064
    %v1066 = vpop.f32.mrb[0].mxu0
    %1067 = vdwg.mxu0
    %1068 = vmatprep.subr.mxu0 0.0
    %v1069 = vand.u32 %v421, 4294901760
    %1070 = vmatpush1.msra.mxu0 %v1069
    %1071 = vmatprep.subr.mxu0 0.0
    %v1072 = vand.u32 %v422, 4294901760
    %1073 = vmatpush1.msra.mxu0 %v1072
    %1074 = vmatprep.subr.mxu0 0.0
    %v1075 = vand.u32 %v423, 4294901760
    %1076 = vmatpush1.msra.mxu0 %v1075
    %1077 = vmatprep.subr.mxu0 0.0
    %v1078 = vand.u32 %v424, 4294901760
    %1079 = vmatpush1.msra.mxu0 %v1078
    %1080 = vmatprep.subr.mxu0 0.0
    %1081 = vmatpush1.msra.mxu0 0.0
    %1082 = vmatprep.subr.mxu0 0.0
    %1083 = vmatpush1.msra.mxu0 0.0
    %1084 = vmatprep.subr.mxu0 0.0
    %1085 = vmatpush1.msra.mxu0 0.0
    %1086 = vmatprep.subr.mxu0 0.0
    %1087 = vmatpush1.msra.mxu0 0.0
    %1088 = vmatprep.subr.mxu0 0.0
    %1089 = vmatpush1.msra.mxu0 0.0
    %1090 = vmatprep.subr.mxu0 0.0
    %1091 = vmatpush1.msra.mxu0 0.0
    %1092 = vmatprep.subr.mxu0 0.0
    %1093 = vmatpush1.msra.mxu0 0.0
    %1094 = vmatprep.subr.mxu0 0.0
    %1095 = vmatpush1.msra.mxu0 0.0
    %1096 = vmatprep.subr.mxu0 0.0
    %1097 = vmatpush1.msra.mxu0 0.0
    %1098 = vmatprep.subr.mxu0 0.0
    %1099 = vmatpush1.msra.mxu0 0.0
    %1100 = vmatprep.subr.mxu0 0.0
    %1101 = vmatpush1.msra.mxu0 0.0
    %1102 = vmatprep.subr.mxu0 0.0
    %1103 = vmatpush1.msra.mxu0 0.0
    %1104 = vmatprep.subr.mxu0 0.0
    %1105 = vmatpush1.msra.mxu0 0.0
    %1106 = vmatprep.subr.mxu0 0.0
    %1107 = vmatpush1.msra.mxu0 0.0
    %1108 = vmatprep.subr.mxu0 0.0
    %1109 = vmatpush1.msra.mxu0 0.0
    %1110 = vmatprep.subr.mxu0 0.0
    %1111 = vmatpush1.msra.mxu0 0.0
    %1112 = vmatprep.subr.mxu0 0.0
    %1113 = vmatpush1.msra.mxu0 0.0
    %1114 = vmatprep.subr.mxu0 0.0
    %1115 = vmatpush1.msra.mxu0 0.0
    %1116 = vmatprep.subr.mxu0 0.0
    %1117 = vmatpush1.msra.mxu0 0.0
    %1118 = vmatprep.subr.mxu0 0.0
    %1119 = vmatpush1.msra.mxu0 0.0
    %1120 = vmatprep.subr.mxu0 0.0
    %1121 = vmatpush1.msra.mxu0 0.0
    %1122 = vmatprep.subr.mxu0 0.0
    %1123 = vmatpush1.msra.mxu0 0.0
    %1124 = vmatprep.subr.mxu0 0.0
    %1125 = vmatpush1.msra.mxu0 0.0
    %1126 = vmatprep.subr.mxu0 0.0
    %1127 = vmatpush1.msra.mxu0 0.0
    %1128 = vmatprep.subr.mxu0 0.0
    %1129 = vmatpush1.msra.mxu0 0.0
    %1130 = vmatprep.subr.mxu0 0.0
    %1131 = vmatpush1.msra.mxu0 0.0
    %1132 = vmatprep.subr.mxu0 0.0
    %1133 = vmatpush1.msra.mxu0 0.0
    %1134 = vmatprep.subr.mxu0 0.0
    %1135 = vmatpush1.msra.mxu0 0.0
    %1136 = vmatprep.mubr.f32.mxu0 0.0
    %v1137 = vand.u32 %v426, 4294901760
    %v1138 = vsub.f32 %v426, %v1137
    %v1139 = vand.u32 %v1138, 4294901760
    %1140 = vmatmul.mubr.f32.gmra.mrb[0].mxu0 %v1139
    %v1141 = vpop.f32.mrb[0].mxu0
    %v1142 = vadd.f32 %v960, %v1141
    %v1143 = vpop.f32.mrb[0].mxu0
    %1144 = vmatprep.mubr.f32.mxu0 0.0
    %v1145 = vand.u32 %v429, 4294901760
    %v1146 = vsub.f32 %v429, %v1145
    %v1147 = vand.u32 %v1146, 4294901760
    %1148 = vmatmul.mubr.f32.gmra.mrb[0].mxu0 %v1147
    %v1149 = vpop.f32.mrb[0].mxu0
    %v1150 = vadd.f32 %v967, %v1149
    %v1151 = vpop.f32.mrb[0].mxu0
    %1152 = vmatprep.mubr.f32.mxu0 0.0
    %v1153 = vand.u32 %v432, 4294901760
    %v1154 = vsub.f32 %v432, %v1153
    %v1155 = vand.u32 %v1154, 4294901760
    %1156 = vmatmul.mubr.f32.gmra.mrb[0].mxu0 %v1155
    %v1157 = vpop.f32.mrb[0].mxu0
    %v1158 = vadd.f32 %v974, %v1157
    %v1159 = vpop.f32.mrb[0].mxu0
    %1160 = vmatprep.mubr.f32.mxu0 0.0
    %v1161 = vand.u32 %v435, 4294901760
    %v1162 = vsub.f32 %v435, %v1161
    %v1163 = vand.u32 %v1162, 4294901760
    %1164 = vmatmul.mubr.f32.gmra.mrb[0].mxu0 %v1163
    %v1165 = vpop.f32.mrb[0].mxu0
    %v1166 = vadd.f32 %v981, %v1165
    %v1167 = vpop.f32.mrb[0].mxu0
    %1168 = vmatprep.mubr.f32.mxu0 0.0
    %v1169 = vand.u32 %v438, 4294901760
    %v1170 = vsub.f32 %v438, %v1169
    %v1171 = vand.u32 %v1170, 4294901760
    %1172 = vmatmul.mubr.f32.gmra.mrb[0].mxu0 %v1171
    %v1173 = vpop.f32.mrb[0].mxu0
    %v1174 = vadd.f32 %v988, %v1173
    %v1175 = vpop.f32.mrb[0].mxu0
    %1176 = vmatprep.mubr.f32.mxu0 0.0
    %v1177 = vand.u32 %v441, 4294901760
    %v1178 = vsub.f32 %v441, %v1177
    %v1179 = vand.u32 %v1178, 4294901760
    %1180 = vmatmul.mubr.f32.gmra.mrb[0].mxu0 %v1179
    %v1181 = vpop.f32.mrb[0].mxu0
    %v1182 = vadd.f32 %v995, %v1181
    %v1183 = vpop.f32.mrb[0].mxu0
    %1184 = vmatprep.mubr.f32.mxu0 0.0
    %v1185 = vand.u32 %v444, 4294901760
    %v1186 = vsub.f32 %v444, %v1185
    %v1187 = vand.u32 %v1186, 4294901760
    %1188 = vmatmul.mubr.f32.gmra.mrb[0].mxu0 %v1187
    %v1189 = vpop.f32.mrb[0].mxu0
    %v1190 = vadd.f32 %v1002, %v1189
    %v1191 = vpop.f32.mrb[0].mxu0
    %1192 = vmatprep.mubr.f32.mxu0 0.0
    %v1193 = vand.u32 %v447, 4294901760
    %v1194 = vsub.f32 %v447, %v1193
    %v1195 = vand.u32 %v1194, 4294901760
    %1196 = vmatmul.mubr.f32.gmra.mrb[0].mxu0 %v1195
    %v1197 = vpop.f32.mrb[0].mxu0
    %v1198 = vadd.f32 %v1009, %v1197
    %v1199 = vpop.f32.mrb[0].mxu0
    %1200 = vmatprep.mubr.f32.mxu0 0.0
    %v1201 = vand.u32 %v450, 4294901760
    %v1202 = vsub.f32 %v450, %v1201
    %v1203 = vand.u32 %v1202, 4294901760
    %1204 = vmatmul.mubr.f32.gmra.mrb[0].mxu0 %v1203
    %v1205 = vpop.f32.mrb[0].mxu0
    %v1206 = vadd.f32 %v1016, %v1205
    %v1207 = vpop.f32.mrb[0].mxu0
    %1208 = vmatprep.mubr.f32.mxu0 0.0
    %v1209 = vand.u32 %v453, 4294901760
    %v1210 = vsub.f32 %v453, %v1209
    %v1211 = vand.u32 %v1210, 4294901760
    %1212 = vmatmul.mubr.f32.gmra.mrb[0].mxu0 %v1211
    %v1213 = vpop.f32.mrb[0].mxu0
    %v1214 = vadd.f32 %v1023, %v1213
    %v1215 = vpop.f32.mrb[0].mxu0
    %1216 = vmatprep.mubr.f32.mxu0 0.0
    %v1217 = vand.u32 %v456, 4294901760
    %v1218 = vsub.f32 %v456, %v1217
    %v1219 = vand.u32 %v1218, 4294901760
    %1220 = vmatmul.mubr.f32.gmra.mrb[0].mxu0 %v1219
    %v1221 = vpop.f32.mrb[0].mxu0
    %v1222 = vadd.f32 %v1030, %v1221
    %v1223 = vpop.f32.mrb[0].mxu0
    %1224 = vmatprep.mubr.f32.mxu0 0.0
    %v1225 = vand.u32 %v459, 4294901760
    %v1226 = vsub.f32 %v459, %v1225
    %v1227 = vand.u32 %v1226, 4294901760
    %1228 = vmatmul.mubr.f32.gmra.mrb[0].mxu0 %v1227
    %v1229 = vpop.f32.mrb[0].mxu0
    %v1230 = vadd.f32 %v1037, %v1229
    %v1231 = vpop.f32.mrb[0].mxu0
    %1232 = vmatprep.mubr.f32.mxu0 0.0
    %v1233 = vand.u32 %v462, 4294901760
    %v1234 = vsub.f32 %v462, %v1233
    %v1235 = vand.u32 %v1234, 4294901760
    %1236 = vmatmul.mubr.f32.gmra.mrb[0].mxu0 %v1235
    %v1237 = vpop.f32.mrb[0].mxu0
    %v1238 = vadd.f32 %v1044, %v1237
    %v1239 = vpop.f32.mrb[0].mxu0
    %1240 = vmatprep.mubr.f32.mxu0 0.0
    %v1241 = vand.u32 %v465, 4294901760
    %v1242 = vsub.f32 %v465, %v1241
    %v1243 = vand.u32 %v1242, 4294901760
    %1244 = vmatmul.mubr.f32.gmra.mrb[0].mxu0 %v1243
    %v1245 = vpop.f32.mrb[0].mxu0
    %v1246 = vadd.f32 %v1051, %v1245
    %v1247 = vpop.f32.mrb[0].mxu0
    %1248 = vmatprep.mubr.f32.mxu0 0.0
    %v1249 = vand.u32 %v468, 4294901760
    %v1250 = vsub.f32 %v468, %v1249
    %v1251 = vand.u32 %v1250, 4294901760
    %1252 = vmatmul.mubr.f32.gmra.mrb[0].mxu0 %v1251
    %v1253 = vpop.f32.mrb[0].mxu0
    %v1254 = vadd.f32 %v1058, %v1253
    %v1255 = vpop.f32.mrb[0].mxu0
    %1256 = vmatprep.mubr.f32.mxu0 0.0
    %v1257 = vand.u32 %v471, 4294901760
    %v1258 = vsub.f32 %v471, %v1257
    %v1259 = vand.u32 %v1258, 4294901760
    %1260 = vmatmul.mubr.f32.gmra.mrb[0].mxu0 %v1259
    %v1261 = vpop.f32.mrb[0].mxu0
    %v1262 = vadd.f32 %v1065, %v1261
    %v1263 = vpop.f32.mrb[0].mxu0
    %1264 = vdwg.mxu0
    %1265 = vmatprep.subr.mxu0 0.0
    %v1266 = vand.u32 %v421, 4294901760
    %v1267 = vsub.f32 %v421, %v1266
    %v1268 = vand.u32 %v1267, 4294901760
    %1269 = vmatpush1.msra.mxu0 %v1268
    %1270 = vmatprep.subr.mxu0 0.0
    %v1271 = vand.u32 %v422, 4294901760
    %v1272 = vsub.f32 %v422, %v1271
    %v1273 = vand.u32 %v1272, 4294901760
    %1274 = vmatpush1.msra.mxu0 %v1273
    %1275 = vmatprep.subr.mxu0 0.0
    %v1276 = vand.u32 %v423, 4294901760
    %v1277 = vsub.f32 %v423, %v1276
    %v1278 = vand.u32 %v1277, 4294901760
    %1279 = vmatpush1.msra.mxu0 %v1278
    %1280 = vmatprep.subr.mxu0 0.0
    %v1281 = vand.u32 %v424, 4294901760
    %v1282 = vsub.f32 %v424, %v1281
    %v1283 = vand.u32 %v1282, 4294901760
    %1284 = vmatpush1.msra.mxu0 %v1283
    %1285 = vmatprep.subr.mxu0 0.0
    %1286 = vmatpush1.msra.mxu0 0.0
    %1287 = vmatprep.subr.mxu0 0.0
    %1288 = vmatpush1.msra.mxu0 0.0
    %1289 = vmatprep.subr.mxu0 0.0
    %1290 = vmatpush1.msra.mxu0 0.0
    %1291 = vmatprep.subr.mxu0 0.0
    %1292 = vmatpush1.msra.mxu0 0.0
    %1293 = vmatprep.subr.mxu0 0.0
    %1294 = vmatpush1.msra.mxu0 0.0
    %1295 = vmatprep.subr.mxu0 0.0
    %1296 = vmatpush1.msra.mxu0 0.0
    %1297 = vmatprep.subr.mxu0 0.0
    %1298 = vmatpush1.msra.mxu0 0.0
    %1299 = vmatprep.subr.mxu0 0.0
    %1300 = vmatpush1.msra.mxu0 0.0
    %1301 = vmatprep.subr.mxu0 0.0
    %1302 = vmatpush1.msra.mxu0 0.0
    %1303 = vmatprep.subr.mxu0 0.0
    %1304 = vmatpush1.msra.mxu0 0.0
    %1305 = vmatprep.subr.mxu0 0.0
    %1306 = vmatpush1.msra.mxu0 0.0
    %1307 = vmatprep.subr.mxu0 0.0
    %1308 = vmatpush1.msra.mxu0 0.0
    %1309 = vmatprep.subr.mxu0 0.0
    %1310 = vmatpush1.msra.mxu0 0.0
    %1311 = vmatprep.subr.mxu0 0.0
    %1312 = vmatpush1.msra.mxu0 0.0
    %1313 = vmatprep.subr.mxu0 0.0
    %1314 = vmatpush1.msra.mxu0 0.0
    %1315 = vmatprep.subr.mxu0 0.0
    %1316 = vmatpush1.msra.mxu0 0.0
    %1317 = vmatprep.subr.mxu0 0.0
    %1318 = vmatpush1.msra.mxu0 0.0
    %1319 = vmatprep.subr.mxu0 0.0
    %1320 = vmatpush1.msra.mxu0 0.0
    %1321 = vmatprep.subr.mxu0 0.0
    %1322 = vmatpush1.msra.mxu0 0.0
    %1323 = vmatprep.subr.mxu0 0.0
    %1324 = vmatpush1.msra.mxu0 0.0
    %1325 = vmatprep.subr.mxu0 0.0
    %1326 = vmatpush1.msra.mxu0 0.0
    %1327 = vmatprep.subr.mxu0 0.0
    %1328 = vmatpush1.msra.mxu0 0.0
    %1329 = vmatprep.subr.mxu0 0.0
    %1330 = vmatpush1.msra.mxu0 0.0
    %1331 = vmatprep.subr.mxu0 0.0
    %1332 = vmatpush1.msra.mxu0 0.0
    %1333 = vmatprep.subr.mxu0 0.0
    %1334 = vmatpush1.msra.mxu0 0.0
    %1335 = vmatprep.subr.mxu0 0.0
    %1336 = vmatpush1.msra.mxu0 0.0
    %1337 = vmatprep.subr.mxu0 0.0
    %1338 = vmatpush1.msra.mxu0 0.0
    %1339 = vmatprep.subr.mxu0 0.0
    %1340 = vmatpush1.msra.mxu0 0.0
    %1341 = vmatprep.mubr.f32.mxu0 0.0
    %v1342 = vand.u32 %v426, 4294901760
    %1343 = vmatmul.mubr.f32.gmra.mrb[0].mxu0 %v1342
    %v1344 = vpop.f32.mrb[0].mxu0
    %v1345 = vadd.f32 %v1142, %v1344
    %v1346 = vpop.f32.mrb[0].mxu0
    %1347 = vmatprep.mubr.f32.mxu0 0.0
    %v1348 = vand.u32 %v429, 4294901760
    %1349 = vmatmul.mubr.f32.gmra.mrb[0].mxu0 %v1348
    %v1350 = vpop.f32.mrb[0].mxu0
    %v1351 = vadd.f32 %v1150, %v1350
    %v1352 = vpop.f32.mrb[0].mxu0
    %1353 = vmatprep.mubr.f32.mxu0 0.0
    %v1354 = vand.u32 %v432, 4294901760
    %1355 = vmatmul.mubr.f32.gmra.mrb[0].mxu0 %v1354
    %v1356 = vpop.f32.mrb[0].mxu0
    %v1357 = vadd.f32 %v1158, %v1356
    %v1358 = vpop.f32.mrb[0].mxu0
    %1359 = vmatprep.mubr.f32.mxu0 0.0
    %v1360 = vand.u32 %v435, 4294901760
    %1361 = vmatmul.mubr.f32.gmra.mrb[0].mxu0 %v1360
    %v1362 = vpop.f32.mrb[0].mxu0
    %v1363 = vadd.f32 %v1166, %v1362
    %v1364 = vpop.f32.mrb[0].mxu0
    %1365 = vmatprep.mubr.f32.mxu0 0.0
    %v1366 = vand.u32 %v438, 4294901760
    %1367 = vmatmul.mubr.f32.gmra.mrb[0].mxu0 %v1366
    %v1368 = vpop.f32.mrb[0].mxu0
    %v1369 = vadd.f32 %v1174, %v1368
    %v1370 = vpop.f32.mrb[0].mxu0
    %1371 = vmatprep.mubr.f32.mxu0 0.0
    %v1372 = vand.u32 %v441, 4294901760
    %1373 = vmatmul.mubr.f32.gmra.mrb[0].mxu0 %v1372
    %v1374 = vpop.f32.mrb[0].mxu0
    %v1375 = vadd.f32 %v1182, %v1374
    %v1376 = vpop.f32.mrb[0].mxu0
    %1377 = vmatprep.mubr.f32.mxu0 0.0
    %v1378 = vand.u32 %v444, 4294901760
    %1379 = vmatmul.mubr.f32.gmra.mrb[0].mxu0 %v1378
    %v1380 = vpop.f32.mrb[0].mxu0
    %v1381 = vadd.f32 %v1190, %v1380
    %v1382 = vpop.f32.mrb[0].mxu0
    %1383 = vmatprep.mubr.f32.mxu0 0.0
    %v1384 = vand.u32 %v447, 4294901760
    %1385 = vmatmul.mubr.f32.gmra.mrb[0].mxu0 %v1384
    %v1386 = vpop.f32.mrb[0].mxu0
    %v1387 = vadd.f32 %v1198, %v1386
    %v1388 = vpop.f32.mrb[0].mxu0
    %1389 = vmatprep.mubr.f32.mxu0 0.0
    %v1390 = vand.u32 %v450, 4294901760
    %1391 = vmatmul.mubr.f32.gmra.mrb[0].mxu0 %v1390
    %v1392 = vpop.f32.mrb[0].mxu0
    %v1393 = vadd.f32 %v1206, %v1392
    %v1394 = vpop.f32.mrb[0].mxu0
    %1395 = vmatprep.mubr.f32.mxu0 0.0
    %v1396 = vand.u32 %v453, 4294901760
    %1397 = vmatmul.mubr.f32.gmra.mrb[0].mxu0 %v1396
    %v1398 = vpop.f32.mrb[0].mxu0
    %v1399 = vadd.f32 %v1214, %v1398
    %v1400 = vpop.f32.mrb[0].mxu0
    %1401 = vmatprep.mubr.f32.mxu0 0.0
    %v1402 = vand.u32 %v456, 4294901760
    %1403 = vmatmul.mubr.f32.gmra.mrb[0].mxu0 %v1402
    %v1404 = vpop.f32.mrb[0].mxu0
    %v1405 = vadd.f32 %v1222, %v1404
    %v1406 = vpop.f32.mrb[0].mxu0
    %1407 = vmatprep.mubr.f32.mxu0 0.0
    %v1408 = vand.u32 %v459, 4294901760
    %1409 = vmatmul.mubr.f32.gmra.mrb[0].mxu0 %v1408
    %v1410 = vpop.f32.mrb[0].mxu0
    %v1411 = vadd.f32 %v1230, %v1410
    %v1412 = vpop.f32.mrb[0].mxu0
    %1413 = vmatprep.mubr.f32.mxu0 0.0
    %v1414 = vand.u32 %v462, 4294901760
    %1415 = vmatmul.mubr.f32.gmra.mrb[0].mxu0 %v1414
    %v1416 = vpop.f32.mrb[0].mxu0
    %v1417 = vadd.f32 %v1238, %v1416
    %v1418 = vpop.f32.mrb[0].mxu0
    %1419 = vmatprep.mubr.f32.mxu0 0.0
    %v1420 = vand.u32 %v465, 4294901760
    %1421 = vmatmul.mubr.f32.gmra.mrb[0].mxu0 %v1420
    %v1422 = vpop.f32.mrb[0].mxu0
    %v1423 = vadd.f32 %v1246, %v1422
    %v1424 = vpop.f32.mrb[0].mxu0
    %1425 = vmatprep.mubr.f32.mxu0 0.0
    %v1426 = vand.u32 %v468, 4294901760
    %1427 = vmatmul.mubr.f32.gmra.mrb[0].mxu0 %v1426
    %v1428 = vpop.f32.mrb[0].mxu0
    %v1429 = vadd.f32 %v1254, %v1428
    %v1430 = vpop.f32.mrb[0].mxu0
    %1431 = vmatprep.mubr.f32.mxu0 0.0
    %v1432 = vand.u32 %v471, 4294901760
    %1433 = vmatmul.mubr.f32.gmra.mrb[0].mxu0 %v1432
    %v1434 = vpop.f32.mrb[0].mxu0
    %v1435 = vadd.f32 %v1262, %v1434
    %v1436 = vpop.f32.mrb[0].mxu0
    %1437 = vdwg.mxu0
    %1438 = vmatprep.subr.mxu0 0.0
    %v1439 = vand.u32 %v421, 4294901760
    %1440 = vmatpush1.msra.mxu0 %v1439
    %1441 = vmatprep.subr.mxu0 0.0
    %v1442 = vand.u32 %v422, 4294901760
    %1443 = vmatpush1.msra.mxu0 %v1442
    %1444 = vmatprep.subr.mxu0 0.0
    %v1445 = vand.u32 %v423, 4294901760
    %1446 = vmatpush1.msra.mxu0 %v1445
    %1447 = vmatprep.subr.mxu0 0.0
    %v1448 = vand.u32 %v424, 4294901760
    %1449 = vmatpush1.msra.mxu0 %v1448
    %1450 = vmatprep.subr.mxu0 0.0
    %1451 = vmatpush1.msra.mxu0 0.0
    %1452 = vmatprep.subr.mxu0 0.0
    %1453 = vmatpush1.msra.mxu0 0.0
    %1454 = vmatprep.subr.mxu0 0.0
    %1455 = vmatpush1.msra.mxu0 0.0
    %1456 = vmatprep.subr.mxu0 0.0
    %1457 = vmatpush1.msra.mxu0 0.0
    %1458 = vmatprep.subr.mxu0 0.0
    %1459 = vmatpush1.msra.mxu0 0.0
    %1460 = vmatprep.subr.mxu0 0.0
    %1461 = vmatpush1.msra.mxu0 0.0
    %1462 = vmatprep.subr.mxu0 0.0
    %1463 = vmatpush1.msra.mxu0 0.0
    %1464 = vmatprep.subr.mxu0 0.0
    %1465 = vmatpush1.msra.mxu0 0.0
    %1466 = vmatprep.subr.mxu0 0.0
    %1467 = vmatpush1.msra.mxu0 0.0
    %1468 = vmatprep.subr.mxu0 0.0
    %1469 = vmatpush1.msra.mxu0 0.0
    %1470 = vmatprep.subr.mxu0 0.0
    %1471 = vmatpush1.msra.mxu0 0.0
    %1472 = vmatprep.subr.mxu0 0.0
    %1473 = vmatpush1.msra.mxu0 0.0
    %1474 = vmatprep.subr.mxu0 0.0
    %1475 = vmatpush1.msra.mxu0 0.0
    %1476 = vmatprep.subr.mxu0 0.0
    %1477 = vmatpush1.msra.mxu0 0.0
    %1478 = vmatprep.subr.mxu0 0.0
    %1479 = vmatpush1.msra.mxu0 0.0
    %1480 = vmatprep.subr.mxu0 0.0
    %1481 = vmatpush1.msra.mxu0 0.0
    %1482 = vmatprep.subr.mxu0 0.0
    %1483 = vmatpush1.msra.mxu0 0.0
    %1484 = vmatprep.subr.mxu0 0.0
    %1485 = vmatpush1.msra.mxu0 0.0
    %1486 = vmatprep.subr.mxu0 0.0
    %1487 = vmatpush1.msra.mxu0 0.0
    %1488 = vmatprep.subr.mxu0 0.0
    %1489 = vmatpush1.msra.mxu0 0.0
    %1490 = vmatprep.subr.mxu0 0.0
    %1491 = vmatpush1.msra.mxu0 0.0
    %1492 = vmatprep.subr.mxu0 0.0
    %1493 = vmatpush1.msra.mxu0 0.0
    %1494 = vmatprep.subr.mxu0 0.0
    %1495 = vmatpush1.msra.mxu0 0.0
    %1496 = vmatprep.subr.mxu0 0.0
    %1497 = vmatpush1.msra.mxu0 0.0
    %1498 = vmatprep.subr.mxu0 0.0
    %1499 = vmatpush1.msra.mxu0 0.0
    %1500 = vmatprep.subr.mxu0 0.0
    %1501 = vmatpush1.msra.mxu0 0.0
    %1502 = vmatprep.subr.mxu0 0.0
    %1503 = vmatpush1.msra.mxu0 0.0
    %1504 = vmatprep.subr.mxu0 0.0
    %1505 = vmatpush1.msra.mxu0 0.0
    %1506 = vmatprep.mubr.f32.mxu0 0.0
    %v1507 = vand.u32 %v426, 4294901760
    %1508 = vmatmul.mubr.f32.gmra.mrb[0].mxu0 %v1507
    %v1509 = vpop.f32.mrb[0].mxu0
    %v1510 = vadd.f32 %v1345, %v1509
    %v1511 = vpop.f32.mrb[0].mxu0
    %1512 = vmatprep.mubr.f32.mxu0 0.0
    %v1513 = vand.u32 %v429, 4294901760
    %1514 = vmatmul.mubr.f32.gmra.mrb[0].mxu0 %v1513
    %v1515 = vpop.f32.mrb[0].mxu0
    %v1516 = vadd.f32 %v1351, %v1515
    %v1517 = vpop.f32.mrb[0].mxu0
    %1518 = vmatprep.mubr.f32.mxu0 0.0
    %v1519 = vand.u32 %v432, 4294901760
    %1520 = vmatmul.mubr.f32.gmra.mrb[0].mxu0 %v1519
    %v1521 = vpop.f32.mrb[0].mxu0
    %v1522 = vadd.f32 %v1357, %v1521
    %v1523 = vpop.f32.mrb[0].mxu0
    %1524 = vmatprep.mubr.f32.mxu0 0.0
    %v1525 = vand.u32 %v435, 4294901760
    %1526 = vmatmul.mubr.f32.gmra.mrb[0].mxu0 %v1525
    %v1527 = vpop.f32.mrb[0].mxu0
    %v1528 = vadd.f32 %v1363, %v1527
    %v1529 = vpop.f32.mrb[0].mxu0
    %1530 = vmatprep.mubr.f32.mxu0 0.0
    %v1531 = vand.u32 %v438, 4294901760
    %1532 = vmatmul.mubr.f32.gmra.mrb[0].mxu0 %v1531
    %v1533 = vpop.f32.mrb[0].mxu0
    %v1534 = vadd.f32 %v1369, %v1533
    %v1535 = vpop.f32.mrb[0].mxu0
    %1536 = vmatprep.mubr.f32.mxu0 0.0
    %v1537 = vand.u32 %v441, 4294901760
    %1538 = vmatmul.mubr.f32.gmra.mrb[0].mxu0 %v1537
    %v1539 = vpop.f32.mrb[0].mxu0
    %v1540 = vadd.f32 %v1375, %v1539
    %v1541 = vpop.f32.mrb[0].mxu0
    %1542 = vmatprep.mubr.f32.mxu0 0.0
    %v1543 = vand.u32 %v444, 4294901760
    %1544 = vmatmul.mubr.f32.gmra.mrb[0].mxu0 %v1543
    %v1545 = vpop.f32.mrb[0].mxu0
    %v1546 = vadd.f32 %v1381, %v1545
    %v1547 = vpop.f32.mrb[0].mxu0
    %1548 = vmatprep.mubr.f32.mxu0 0.0
    %v1549 = vand.u32 %v447, 4294901760
    %1550 = vmatmul.mubr.f32.gmra.mrb[0].mxu0 %v1549
    %v1551 = vpop.f32.mrb[0].mxu0
    %v1552 = vadd.f32 %v1387, %v1551
    %v1553 = vpop.f32.mrb[0].mxu0
    %1554 = vmatprep.mubr.f32.mxu0 0.0
    %v1555 = vand.u32 %v450, 4294901760
    %1556 = vmatmul.mubr.f32.gmra.mrb[0].mxu0 %v1555
    %v1557 = vpop.f32.mrb[0].mxu0
    %v1558 = vadd.f32 %v1393, %v1557
    %v1559 = vpop.f32.mrb[0].mxu0
    %1560 = vmatprep.mubr.f32.mxu0 0.0
    %v1561 = vand.u32 %v453, 4294901760
    %1562 = vmatmul.mubr.f32.gmra.mrb[0].mxu0 %v1561
    %v1563 = vpop.f32.mrb[0].mxu0
    %v1564 = vadd.f32 %v1399, %v1563
    %v1565 = vpop.f32.mrb[0].mxu0
    %1566 = vmatprep.mubr.f32.mxu0 0.0
    %v1567 = vand.u32 %v456, 4294901760
    %1568 = vmatmul.mubr.f32.gmra.mrb[0].mxu0 %v1567
    %v1569 = vpop.f32.mrb[0].mxu0
    %v1570 = vadd.f32 %v1405, %v1569
    %v1571 = vpop.f32.mrb[0].mxu0
    %1572 = vmatprep.mubr.f32.mxu0 0.0
    %v1573 = vand.u32 %v459, 4294901760
    %1574 = vmatmul.mubr.f32.gmra.mrb[0].mxu0 %v1573
    %v1575 = vpop.f32.mrb[0].mxu0
    %v1576 = vadd.f32 %v1411, %v1575
    %v1577 = vpop.f32.mrb[0].mxu0
    %1578 = vmatprep.mubr.f32.mxu0 0.0
    %v1579 = vand.u32 %v462, 4294901760
    %1580 = vmatmul.mubr.f32.gmra.mrb[0].mxu0 %v1579
    %v1581 = vpop.f32.mrb[0].mxu0
    %v1582 = vadd.f32 %v1417, %v1581
    %v1583 = vpop.f32.mrb[0].mxu0
    %1584 = vmatprep.mubr.f32.mxu0 0.0
    %v1585 = vand.u32 %v465, 4294901760
    %1586 = vmatmul.mubr.f32.gmra.mrb[0].mxu0 %v1585
    %v1587 = vpop.f32.mrb[0].mxu0
    %v1588 = vadd.f32 %v1423, %v1587
    %v1589 = vpop.f32.mrb[0].mxu0
    %1590 = vmatprep.mubr.f32.mxu0 0.0
    %v1591 = vand.u32 %v468, 4294901760
    %1592 = vmatmul.mubr.f32.gmra.mrb[0].mxu0 %v1591
    %v1593 = vpop.f32.mrb[0].mxu0
    %v1594 = vadd.f32 %v1429, %v1593
    %v1595 = vpop.f32.mrb[0].mxu0
    %1596 = vmatprep.mubr.f32.mxu0 0.0
    %v1597 = vand.u32 %v471, 4294901760
    %1598 = vmatmul.mubr.f32.gmra.mrb[0].mxu0 %v1597
    %v1599 = vpop.f32.mrb[0].mxu0
    %v1600 = vadd.f32 %v1435, %v1599
    %v1601 = vpop.f32.mrb[0].mxu0
    %1602 = vdwg.mxu0
    %vm1603 = vcmask 130048
    %1604 = vst.msk [vmem:[#allocation2] sm:$0xff] %vm1603, %v1510
    %1605 = vst.msk [vmem:[#allocation2 + $0x8] sm:$0xff] %vm1603, %v1516
    %1606 = vst.msk [vmem:[#allocation2 + $0x10] sm:$0xff] %vm1603, %v1522
    %1607 = vst.msk [vmem:[#allocation2 + $0x18] sm:$0xff] %vm1603, %v1528
    %1608 = vst.msk [vmem:[#allocation2 + $0x20] sm:$0xff] %vm1603, %v1534
    %1609 = vst.msk [vmem:[#allocation2 + $0x28] sm:$0xff] %vm1603, %v1540
    %1610 = vst.msk [vmem:[#allocation2 + $0x30] sm:$0xff] %vm1603, %v1546
    %1611 = vst.msk [vmem:[#allocation2 + $0x38] sm:$0xff] %vm1603, %v1552
    %1612 = vst.msk [vmem:[#allocation2 + $0x40] sm:$0xff] %vm1603, %v1558
    %1613 = vst.msk [vmem:[#allocation2 + $0x48] sm:$0xff] %vm1603, %v1564
    %1614 = vst.msk [vmem:[#allocation2 + $0x50] sm:$0xff] %vm1603, %v1570
    %1615 = vst.msk [vmem:[#allocation2 + $0x58] sm:$0xff] %vm1603, %v1576
    %1616 = vst.msk [vmem:[#allocation2 + $0x60] sm:$0xff] %vm1603, %v1582
    %1617 = vst.msk [vmem:[#allocation2 + $0x68] sm:$0xff] %vm1603, %v1588
    %1618 = vst.msk [vmem:[#allocation2 + $0x70] sm:$0xff] %vm1603, %v1594
    %1619 = vst.msk [vmem:[#allocation2 + $0x78] sm:$0xff] %vm1603, %v1600
    // Predicated region
    $region22: #{ss2d_forward.3} parent=1 // pred_check
      _
    $region23: #{ss2d_forward.3} parent=1 // pred_check_branch
      %1621 = sbr.rel (0) target = $region25
    $region24: #{ss2d_forward.3} parent=1 // pred_region
      %s1623 = ssub.s32 2048, 2048
      %1624 = vsyncadd [#allocation3], %s1623
      %s1625 = sshll.u32 [#allocation2], 4
      %s1626 = int_to_ptr.vmem [resolvable:$true] %s1625
      %1631 = dma.vmem_to_hbm [thread:$0]  %s1626, 2048, %s5, [#allocation3], 128, 128, 8
    $region25: #{ss2d_forward.3} parent=1 // pred_fallthru
      _
    // Predicated region
    $region26: #{ss2d_forward.3} parent=1 // pred_check
      _
    $region27: #{ss2d_forward.3} parent=1 // pred_check_branch
      %1633 = sbr.rel (0) target = $region29
    $region28: #{ss2d_forward.3} parent=1 // pred_region
      %1634 = dma.done [#allocation3], 2048
    $region29: #{ss2d_forward.3} parent=1 // pred_fallthru
      _
    %1635 = vsyncpa [#allocation3], 1

</llo_original>
